<compile_context>
chip_gen: v5e
topology: v5e:2x2
jax: 0.10.0
libtpu: 0.0.40
codegen_flags: <defaults>
</compile_context>

<pallas_src>
import functools

import jax
import jax.numpy as jnp
from jax.experimental import pallas as pl
from jax.experimental.pallas import tpu as pltpu


def _round_up(x, m):
    return ((x + m - 1) // m) * m


# ----------------------------------------------------------------------------
# Fused RRDB kernel: one grid step == full RRDB forward for one batch element.
# ----------------------------------------------------------------------------
def _rrdb_kernel(x_ref, w_ref, b_ref, o_ref, slab_ref, acc_ref,
                 *, H, W, nf, gc, Cpad, Wpad):
    # x_ref   : (1, H, W, nf)            input (real channels only)
    # w_ref   : (135, Cpad, Cpad) bf16   per-(conv,tap) weights; output columns
    #                                    placed at the destination channel off
    # b_ref   : (15, 1, Cpad) f32        biases placed at dst channel offset
    # o_ref   : (1, H, W, nf)            output
    # slab_ref: (H+2, Wpad, Cpad) f32    zero-padded activation slab (VMEM)
    # acc_ref : (H*W, Cpad) f32          per-conv MXU accumulator (VMEM)
    HW = H * W
    f32 = jnp.float32

    # ---- per-grid-step slab init: zero only the 1-pixel halo border --------
    zrow = jnp.zeros((1, Wpad, Cpad), f32)
    slab_ref[pl.ds(0, 1), :, :] = zrow
    slab_ref[pl.ds(H + 1, 1), :, :] = zrow
    zcol = jnp.zeros((H, 1, Cpad), f32)
    slab_ref[pl.ds(1, H), pl.ds(0, 1), :] = zcol
    slab_ref[pl.ds(1, H), pl.ds(W + 1, 1), :] = zcol

    # Interior: channels [0:nf] <- x, channels [nf:] <- 0.
    slab_ref[pl.ds(1, H), pl.ds(1, W), pl.ds(0, nf)] = x_ref[0]
    slab_ref[pl.ds(1, H), pl.ds(1, W), pl.ds(nf, Cpad - nf)] = jnp.zeros(
        (H, W, Cpad - nf), f32)

    # ---- 15 dense convs (3 RDB blocks x 5 convs) ----------------------------
    def conv_step(ci, carry):
        k = ci % 5                       # conv index inside the RDB block

        # New RDB block (blocks 2 and 3): clear the x1..x4 channel bands so the
        # additive update below starts from zero in the destination bands.
        @pl.when(jnp.logical_and(k == 0, ci > 0))
        def _():
            slab_ref[pl.ds(1, H), pl.ds(1, W), pl.ds(nf, 4 * gc)] = jnp.zeros(
                (H, W, 4 * gc), f32)

        # 9-tap accumulation: bf16 operands on the MXU, f32 accumulate in VMEM.
        for t in range(9):
            kh, kw = t // 3, t % 3
            tap = slab_ref[pl.ds(kh, H), pl.ds(kw, W), :]          # (H, W, Cpad)
            lhs = tap.reshape(HW, Cpad).astype(jnp.bfloat16)
            part = jnp.dot(lhs, w_ref[ci * 9 + t],
                           preferred_element_type=f32)
            if t == 0:
                acc_ref[...] = part
            else:
                acc_ref[...] += part

        acc = acc_ref[...] + b_ref[ci]            # (HW, Cpad), f32 bias add
        lrelu = jnp.maximum(acc, 0.2 * acc)       # LeakyReLU(0.2)
        scaled = 0.2 * acc                        # conv5 path: x5 * 0.2
        is_last = (k == 4).astype(f32)            # scalar 0/1 blend
        upd = is_last * scaled + (1.0 - is_last) * lrelu

        # acc (hence upd) is exactly zero outside the destination channel band
        # (padded weight columns / bias entries are exact zeros, preserved by
        # the bf16 cast), so a plain lane-dense add places the result with no
        # mask: k<4 writes x_{k+1}; k==4 adds 0.2*x5 to the RDB carry.
        old = slab_ref[pl.ds(1, H), pl.ds(1, W), :].reshape(HW, Cpad)
        slab_ref[pl.ds(1, H), pl.ds(1, W), :] = (old + upd).reshape(H, W, Cpad)
        return carry

    jax.lax.fori_loop(0, 15, conv_step, 0)

    # ---- final RRDB residual: out = RDB3(RDB2(RDB1(x))) * 0.2 + x -----------
    carry3 = slab_ref[pl.ds(1, H), pl.ds(1, W), pl.ds(0, nf)]      # (H, W, nf)
    o_ref[...] = (0.2 * carry3 + x_ref[0]).reshape(1, H, W, nf)


# ----------------------------------------------------------------------------
# Weight packing: (135, Cpad, Cpad) bf16 slab (index = conv*9 + tap) with the
# output columns placed at the destination channel offset, plus (15,1,Cpad)
# f32 biases.  Invariant relied upon by the kernel's unmasked additive update:
# every padded K row / N column / bias entry is EXACTLY zero (bf16-exact).
# ----------------------------------------------------------------------------
def _pack_rrdb_params(rrdb_params, nf, gc, Cpad):
    w_all, b_all = [], []
    for block in rrdb_params:                    # 3 RDB blocks
        for k, (w, b) in enumerate(block):       # 5 convs: w (3,3,Cin,Cout)
            cin, cout = w.shape[2], w.shape[3]
            dst = 0 if k == 4 else nf + k * gc   # conv5 writes back to [0:nf]
            wp = jnp.zeros((9, Cpad, Cpad), jnp.float32)
            wp = wp.at[:, :cin, dst:dst + cout].set(w.reshape(9, cin, cout))
            w_all.append(wp)
            bp = jnp.zeros((Cpad,), jnp.float32).at[dst:dst + cout].set(b)
            b_all.append(bp)
    w_packed = jnp.concatenate(w_all, axis=0).astype(jnp.bfloat16)  # (135,Cpad,Cpad)
    b_packed = jnp.stack(b_all)[:, None, :]                         # (15,1,Cpad) f32
    return w_packed, b_packed


# ----------------------------------------------------------------------------
# Wrapper: NCHW <-> NHWC at the boundary (PyTorch layout outside).
# ----------------------------------------------------------------------------
@functools.partial(jax.jit, static_argnames=("nf", "gc"))
def rrdb_forward(x_nchw, rrdb_params, *, nf, gc):
    B, C, H, W = x_nchw.shape
    assert C == nf
    Cpad = max(128, _round_up(nf + 4 * gc, 128))
    Wpad = _round_up(W + 2, 8)                   # sublane-aligned slab rows

    w_packed, b_packed = _pack_rrdb_params(rrdb_params, nf, gc, Cpad)

    x = jnp.transpose(x_nchw, (0, 2, 3, 1)).astype(jnp.float32)     # NCHW->NHWC

    kern = functools.partial(_rrdb_kernel, H=H, W=W, nf=nf, gc=gc,
                             Cpad=Cpad, Wpad=Wpad)

    # Re-derive the VMEM working set from the actual shapes (instead of a flat
    # limit), leaving a fixed margin for compiler-internal scratch.
    vmem_bytes = (
        135 * Cpad * Cpad * 2            # bf16 weights, single-buffered in VMEM
        + 15 * Cpad * 4                  # f32 biases in VMEM
        + (H + 2) * Wpad * Cpad * 4      # activation slab scratch
        + H * W * Cpad * 4               # f32 conv accumulator scratch
        + 2 * 2 * H * W * nf * 4         # double-buffered x / out blocks
    )
    vmem_limit = int(min(vmem_bytes + (16 << 20), 100 << 20))

    out = pl.pallas_call(
        kern,
        out_shape=jax.ShapeDtypeStruct((B, H, W, nf), jnp.float32),
        grid=(B,),
        in_specs=[
            pl.BlockSpec((1, H, W, nf), lambda b: (b, 0, 0, 0)),
            # Constant across grid steps -> fully VMEM-resident, single buffer
            # (no per-step re-DMA, no double-buffer VMEM waste).
            pl.BlockSpec(memory_space=pltpu.MemorySpace.VMEM),
            pl.BlockSpec(memory_space=pltpu.MemorySpace.VMEM),
        ],
        out_specs=pl.BlockSpec((1, H, W, nf), lambda b: (b, 0, 0, 0)),
        scratch_shapes=[
            pltpu.VMEM((H + 2, Wpad, Cpad), jnp.float32),   # activation slab
            pltpu.VMEM((H * W, Cpad), jnp.float32),         # conv accumulator
        ],
        compiler_params=pltpu.CompilerParams(
            dimension_semantics=("parallel",),
            vmem_limit_bytes=vmem_limit,
        ),
    )(x, w_packed, b_packed)

    return jnp.transpose(out, (0, 3, 1, 2))                         # NHWC->NCHW


# ----------------------------------------------------------------------------
# Plain-XLA reference.  operand_dtype=jnp.bfloat16 reproduces the kernel's MXU
# numerics (bf16 operands, f32 accumulation); jnp.float32 is the exact module.
# ----------------------------------------------------------------------------
def _conv_ref(x, w, b, operand_dtype):
    precision = (jax.lax.Precision.HIGHEST
                 if operand_dtype == jnp.float32 else None)
    y = jax.lax.conv_general_dilated(
        x.astype(operand_dtype), w.astype(operand_dtype),
        window_strides=(1, 1), padding="SAME",
        dimension_numbers=("NHWC", "HWIO", "NHWC"),
        preferred_element_type=jnp.float32,
        precision=precision)
    return y + b


def rrdb_reference(x_nchw, rrdb_params, operand_dtype=jnp.float32):
    lrelu = lambda t: jnp.where(t >= 0.0, t, 0.2 * t)
    conv = functools.partial(_conv_ref, operand_dtype=operand_dtype)
    x = jnp.transpose(x_nchw, (0, 2, 3, 1))
    out = x
    for block in rrdb_params:
        (w1, b1), (w2, b2), (w3, b3), (w4, b4), (w5, b5) = block
        x1 = lrelu(conv(out, w1, b1))
        x2 = lrelu(conv(jnp.concatenate([out, x1], -1), w2, b2))
        x3 = lrelu(conv(jnp.concatenate([out, x1, x2], -1), w3, b3))
        x4 = lrelu(conv(jnp.concatenate([out, x1, x2, x3], -1), w4, b4))
        x5 = conv(jnp.concatenate([out, x1, x2, x3, x4], -1), w5, b5)
        out = x5 * 0.2 + out
    out = out * 0.2 + x
    return jnp.transpose(out, (0, 3, 1, 2))


# ----------------------------------------------------------------------------
# Deterministic parameter initialization (shapes follow the module __init__).
# ----------------------------------------------------------------------------
def init_rrdb_params(key, nf, gc):
    params = []
    for _ in range(3):  # three RDB blocks
        in_chs = [nf, nf + gc, nf + 2 * gc, nf + 3 * gc, nf + 4 * gc]
        out_chs = [gc, gc, gc, gc, nf]
        block = []
        for cin, cout in zip(in_chs, out_chs):
            key, kw, kb = jax.random.split(key, 3)
            w = 0.05 * jax.random.normal(kw, (3, 3, cin, cout), jnp.float32)
            b = 0.05 * jax.random.normal(kb, (cout,), jnp.float32)
            block.append((w, b))
        params.append(block)
    return params


if __name__ == "__main__":
    nf, gc = 32, 16
    B, H, W = 2, 16, 16

    key = jax.random.PRNGKey(0)
    key, kx = jax.random.split(key)
    x = jax.random.normal(kx, (B, nf, H, W), jnp.float32)   # NCHW like PyTorch

    params = init_rrdb_params(key, nf, gc)

    out = rrdb_forward(x, params, nf=nf, gc=gc)
    out = jax.block_until_ready(out)

    assert out.shape == (B, nf, H, W), out.shape
    assert bool(jnp.all(jnp.isfinite(out)))

    # (1) Numerics-matched reference (same bf16 conv operands, f32 accumulate):
    #     tight tolerance — only summation-order differences remain.
    ref_bf16 = rrdb_reference(x, params, operand_dtype=jnp.bfloat16)
    err_bf16 = float(jnp.max(jnp.abs(out - ref_bf16)))
    assert err_bf16 < 5e-3, f"bf16-matched reference mismatch: {err_bf16}"

    # (2) Full-f32 reference: tolerance sized deliberately for the bf16-operand
    #     MXU switch (a pure-f32 kernel sits at ~1e-5 here).
    ref_f32 = rrdb_reference(x, params, operand_dtype=jnp.float32)
    err_f32 = float(jnp.max(jnp.abs(out - ref_f32)))
    assert err_f32 < 3e-2, f"f32 reference mismatch: {err_f32}"

    print("KERNEL_OK")
</pallas_src>

<mosaic_0001>
module attributes {stable_mosaic.version = 11 : i64} {
  func.func @_rrdb_kernel(%arg0: i32, %arg1: memref<1x16x16x32xf32, #tpu.memory_space<vmem>>, %arg2: memref<135x128x128xbf16, #tpu.memory_space<vmem>>, %arg3: memref<15x1x128xf32, #tpu.memory_space<vmem>>, %arg4: memref<1x16x16x32xf32, #tpu.memory_space<vmem>>, %arg5: memref<18x24x128xf32, #tpu.memory_space<vmem>>, %arg6: memref<256x128xf32, #tpu.memory_space<vmem>>) attributes {dimension_semantics = [#tpu.dimension_semantics<parallel>], iteration_bounds = array<i64: 2>, scalar_prefetch = 0 : i64, scratch_operands = 2 : i64, tpu.core_type = #tpu.core_type<tc>, window_params = [{transform_indices = @transform_0, window_bounds = array<i64: 1, 16, 16, 32>}, {pipeline_mode = #tpu.pipeline_mode<synchronous>, transform_indices = @transform_1, window_bounds = array<i64: 135, 128, 128>}, {pipeline_mode = #tpu.pipeline_mode<synchronous>, transform_indices = @transform_2, window_bounds = array<i64: 15, 1, 128>}, {transform_indices = @transform_3, window_bounds = array<i64: 1, 16, 16, 32>}]} {
    %cst = arith.constant 0.000000e+00 : f32
    %0 = vector.broadcast %cst : f32 to vector<1x24x128xf32>
    %c0 = arith.constant 0 : index
    %c0_0 = arith.constant 0 : index
    %c0_1 = arith.constant 0 : index
    %1 = vector.load %arg5[%c0, %c0_0, %c0_1] : memref<18x24x128xf32, #tpu.memory_space<vmem>>, vector<1x24x128xf32>
    tpu.vector_store %arg5[%c0, %c0_0, %c0_1], %0 {strides = array<i32>} : memref<18x24x128xf32, #tpu.memory_space<vmem>>, vector<1x24x128xf32>,
    %c17 = arith.constant 17 : index
    %c0_2 = arith.constant 0 : index
    %c0_3 = arith.constant 0 : index
    %2 = vector.load %arg5[%c17, %c0_2, %c0_3] : memref<18x24x128xf32, #tpu.memory_space<vmem>>, vector<1x24x128xf32>
    tpu.vector_store %arg5[%c17, %c0_2, %c0_3], %0 {strides = array<i32>} : memref<18x24x128xf32, #tpu.memory_space<vmem>>, vector<1x24x128xf32>,
    %cst_4 = arith.constant 0.000000e+00 : f32
    %3 = vector.broadcast %cst_4 : f32 to vector<16x1x128xf32>
    %c1 = arith.constant 1 : index
    %c0_5 = arith.constant 0 : index
    %c0_6 = arith.constant 0 : index
    %4 = vector.load %arg5[%c1, %c0_5, %c0_6] : memref<18x24x128xf32, #tpu.memory_space<vmem>>, vector<16x1x128xf32>
    tpu.vector_store %arg5[%c1, %c0_5, %c0_6], %3 {strides = array<i32>} : memref<18x24x128xf32, #tpu.memory_space<vmem>>, vector<16x1x128xf32>,
    %c1_7 = arith.constant 1 : index
    %c17_8 = arith.constant 17 : index
    %c0_9 = arith.constant 0 : index
    %5 = vector.load %arg5[%c1_7, %c17_8, %c0_9] : memref<18x24x128xf32, #tpu.memory_space<vmem>>, vector<16x1x128xf32>
    tpu.vector_store %arg5[%c1_7, %c17_8, %c0_9], %3 {strides = array<i32>} : memref<18x24x128xf32, #tpu.memory_space<vmem>>, vector<16x1x128xf32>,
    %c0_10 = arith.constant 0 : index
    %c0_11 = arith.constant 0 : index
    %c0_12 = arith.constant 0 : index
    %c0_13 = arith.constant 0 : index
    %6 = vector.load %arg1[%c0_10, %c0_11, %c0_12, %c0_13] : memref<1x16x16x32xf32, #tpu.memory_space<vmem>>, vector<1x16x16x32xf32>
    %7 = vector.shape_cast %6 : vector<1x16x16x32xf32> to vector<16x16x32xf32>
    %c1_14 = arith.constant 1 : index
    %c1_15 = arith.constant 1 : index
    %c0_16 = arith.constant 0 : index
    %8 = vector.load %arg5[%c1_14, %c1_15, %c0_16] : memref<18x24x128xf32, #tpu.memory_space<vmem>>, vector<16x16x32xf32>
    tpu.vector_store %arg5[%c1_14, %c1_15, %c0_16], %7 {strides = array<i32>} : memref<18x24x128xf32, #tpu.memory_space<vmem>>, vector<16x16x32xf32>,
    %cst_17 = arith.constant 0.000000e+00 : f32
    %9 = vector.broadcast %cst_17 : f32 to vector<16x16x96xf32>
    %c1_18 = arith.constant 1 : index
    %c1_19 = arith.constant 1 : index
    %c32 = arith.constant 32 : index
    %10 = vector.load %arg5[%c1_18, %c1_19, %c32] : memref<18x24x128xf32, #tpu.memory_space<vmem>>, vector<16x16x96xf32>
    tpu.vector_store %arg5[%c1_18, %c1_19, %c32], %9 {strides = array<i32>} : memref<18x24x128xf32, #tpu.memory_space<vmem>>, vector<16x16x96xf32>,
    %c0_i32 = arith.constant 0 : i32
    %c15_i32 = arith.constant 15 : i32
    %11 = arith.addi %c0_i32, %c15_i32 : i32
    %c1_i32 = arith.constant 1 : i32
    scf.for %arg7 = %c0_i32 to %11 step %c1_i32  : i32 {
      %c5_i32 = arith.constant 5 : i32
      %c0_i32_33 = arith.constant 0 : i32
      %20 = arith.cmpi eq, %c5_i32, %c0_i32_33 : i32
      %c1_i32_34 = arith.constant 1 : i32
      %21 = arith.select %20, %c1_i32_34, %c5_i32 : i32
      %22 = arith.remsi %arg7, %21 : i32
      %c0_i32_35 = arith.constant 0 : i32
      %23 = arith.cmpi ne, %22, %c0_i32_35 : i32
      %c0_i32_36 = arith.constant 0 : i32
      %24 = arith.cmpi slt, %22, %c0_i32_36 : i32
      %c0_i32_37 = arith.constant 0 : i32
      %25 = arith.cmpi slt, %21, %c0_i32_37 : i32
      %26 = arith.xori %24, %25 : i1
      %27 = arith.andi %26, %23 : i1
      %28 = arith.addi %22, %21 : i32
      %29 = arith.select %27, %28, %22 : i32
      %c0_i32_38 = arith.constant 0 : i32
      %30 = arith.cmpi eq, %29, %c0_i32_38 : i32
      %c0_i32_39 = arith.constant 0 : i32
      %31 = arith.cmpi sgt, %arg7, %c0_i32_39 : i32
      %32 = arith.andi %30, %31 : i1
      %33 = arith.extui %32 : i1 to i32
      %c0_i32_40 = arith.constant 0 : i32
      %34 = arith.cmpi ne, %33, %c0_i32_40 : i32
      scf.if %34 {
        %cst_153 = arith.constant 0.000000e+00 : f32
        %166 = vector.broadcast %cst_153 : f32 to vector<16x16x64xf32>
        %c1_154 = arith.constant 1 : index
        %c1_155 = arith.constant 1 : index
        %c32_156 = arith.constant 32 : index
        %167 = vector.load %arg5[%c1_154, %c1_155, %c32_156] : memref<18x24x128xf32, #tpu.memory_space<vmem>>, vector<16x16x64xf32>
        tpu.vector_store %arg5[%c1_154, %c1_155, %c32_156], %166 {strides = array<i32>} : memref<18x24x128xf32, #tpu.memory_space<vmem>>, vector<16x16x64xf32>,
      } else {
      }
      %c0_41 = arith.constant 0 : index
      %c0_42 = arith.constant 0 : index
      %c0_43 = arith.constant 0 : index
      %35 = vector.load %arg5[%c0_41, %c0_42, %c0_43] : memref<18x24x128xf32, #tpu.memory_space<vmem>>, vector<16x16x128xf32>
      %36 = vector.shape_cast %35 : vector<16x16x128xf32> to vector<256x128xf32>
      %37 = arith.truncf %36 : vector<256x128xf32> to vector<256x128xbf16>
      %c9_i32 = arith.constant 9 : i32
      %38 = arith.muli %arg7, %c9_i32 : i32
      %c0_i32_44 = arith.constant 0 : i32
      %39 = arith.addi %38, %c0_i32_44 : i32
      %40 = arith.index_cast %39 : i32 to index
      %c0_45 = arith.constant 0 : index
      %c0_46 = arith.constant 0 : index
      %41 = vector.load %arg2[%40, %c0_45, %c0_46] : memref<135x128x128xbf16, #tpu.memory_space<vmem>>, vector<1x128x128xbf16>
      %42 = vector.shape_cast %41 : vector<1x128x128xbf16> to vector<128x128xbf16>
      %cst_47 = arith.constant dense<0.000000e+00> : vector<256x128xf32>
      %43 = tpu.matmul %37, %42, %cst_47 {dimension_numbers = #tpu.dot_dimension_numbers<[1], [0], [0], [1], [0, 0, 1, 1], [], []>} : vector<256x128xbf16>, vector<128x128xbf16>, vector<256x128xf32> -> vector<256x128xf32>
      %c0_48 = arith.constant 0 : index
      %c0_49 = arith.constant 0 : index
      %44 = vector.load %arg6[%c0_48, %c0_49] : memref<256x128xf32, #tpu.memory_space<vmem>>, vector<256x128xf32>
      tpu.vector_store %arg6[%c0_48, %c0_49], %43 {strides = array<i32>} : memref<256x128xf32, #tpu.memory_space<vmem>>, vector<256x128xf32>,
      %c0_50 = arith.constant 0 : index
      %c1_51 = arith.constant 1 : index
      %c0_52 = arith.constant 0 : index
      %45 = vector.load %arg5[%c0_50, %c1_51, %c0_52] : memref<18x24x128xf32, #tpu.memory_space<vmem>>, vector<16x16x128xf32>
      %46 = vector.shape_cast %45 : vector<16x16x128xf32> to vector<256x128xf32>
      %47 = arith.truncf %46 : vector<256x128xf32> to vector<256x128xbf16>
      %c9_i32_53 = arith.constant 9 : i32
      %48 = arith.muli %arg7, %c9_i32_53 : i32
      %c1_i32_54 = arith.constant 1 : i32
      %49 = arith.addi %48, %c1_i32_54 : i32
      %50 = arith.index_cast %49 : i32 to index
      %c0_55 = arith.constant 0 : index
      %c0_56 = arith.constant 0 : index
      %51 = vector.load %arg2[%50, %c0_55, %c0_56] : memref<135x128x128xbf16, #tpu.memory_space<vmem>>, vector<1x128x128xbf16>
      %52 = vector.shape_cast %51 : vector<1x128x128xbf16> to vector<128x128xbf16>
      %cst_57 = arith.constant dense<0.000000e+00> : vector<256x128xf32>
      %53 = tpu.matmul %47, %52, %cst_57 {dimension_numbers = #tpu.dot_dimension_numbers<[1], [0], [0], [1], [0, 0, 1, 1], [], []>} : vector<256x128xbf16>, vector<128x128xbf16>, vector<256x128xf32> -> vector<256x128xf32>
      %c0_58 = arith.constant 0 : index
      %c0_59 = arith.constant 0 : index
      %54 = vector.load %arg6[%c0_58, %c0_59] : memref<256x128xf32, #tpu.memory_space<vmem>>, vector<256x128xf32>
      %55 = arith.addf %54, %53 : vector<256x128xf32>
      %c0_60 = arith.constant 0 : index
      %c0_61 = arith.constant 0 : index
      %56 = vector.load %arg6[%c0_60, %c0_61] : memref<256x128xf32, #tpu.memory_space<vmem>>, vector<256x128xf32>
      tpu.vector_store %arg6[%c0_60, %c0_61], %55 {strides = array<i32>} : memref<256x128xf32, #tpu.memory_space<vmem>>, vector<256x128xf32>,
      %c0_62 = arith.constant 0 : index
      %c2 = arith.constant 2 : index
      %c0_63 = arith.constant 0 : index
      %57 = vector.load %arg5[%c0_62, %c2, %c0_63] : memref<18x24x128xf32, #tpu.memory_space<vmem>>, vector<16x16x128xf32>
      %58 = vector.shape_cast %57 : vector<16x16x128xf32> to vector<256x128xf32>
      %59 = arith.truncf %58 : vector<256x128xf32> to vector<256x128xbf16>
      %c9_i32_64 = arith.constant 9 : i32
      %60 = arith.muli %arg7, %c9_i32_64 : i32
      %c2_i32 = arith.constant 2 : i32
      %61 = arith.addi %60, %c2_i32 : i32
      %62 = arith.index_cast %61 : i32 to index
      %c0_65 = arith.constant 0 : index
      %c0_66 = arith.constant 0 : index
      %63 = vector.load %arg2[%62, %c0_65, %c0_66] : memref<135x128x128xbf16, #tpu.memory_space<vmem>>, vector<1x128x128xbf16>
      %64 = vector.shape_cast %63 : vector<1x128x128xbf16> to vector<128x128xbf16>
      %cst_67 = arith.constant dense<0.000000e+00> : vector<256x128xf32>
      %65 = tpu.matmul %59, %64, %cst_67 {dimension_numbers = #tpu.dot_dimension_numbers<[1], [0], [0], [1], [0, 0, 1, 1], [], []>} : vector<256x128xbf16>, vector<128x128xbf16>, vector<256x128xf32> -> vector<256x128xf32>
      %c0_68 = arith.constant 0 : index
      %c0_69 = arith.constant 0 : index
      %66 = vector.load %arg6[%c0_68, %c0_69] : memref<256x128xf32, #tpu.memory_space<vmem>>, vector<256x128xf32>
      %67 = arith.addf %66, %65 : vector<256x128xf32>
      %c0_70 = arith.constant 0 : index
      %c0_71 = arith.constant 0 : index
      %68 = vector.load %arg6[%c0_70, %c0_71] : memref<256x128xf32, #tpu.memory_space<vmem>>, vector<256x128xf32>
      tpu.vector_store %arg6[%c0_70, %c0_71], %67 {strides = array<i32>} : memref<256x128xf32, #tpu.memory_space<vmem>>, vector<256x128xf32>,
      %c1_72 = arith.constant 1 : index
      %c0_73 = arith.constant 0 : index
      %c0_74 = arith.constant 0 : index
      %69 = vector.load %arg5[%c1_72, %c0_73, %c0_74] : memref<18x24x128xf32, #tpu.memory_space<vmem>>, vector<16x16x128xf32>
      %70 = vector.shape_cast %69 : vector<16x16x128xf32> to vector<256x128xf32>
      %71 = arith.truncf %70 : vector<256x128xf32> to vector<256x128xbf16>
      %c9_i32_75 = arith.constant 9 : i32
      %72 = arith.muli %arg7, %c9_i32_75 : i32
      %c3_i32 = arith.constant 3 : i32
      %73 = arith.addi %72, %c3_i32 : i32
      %74 = arith.index_cast %73 : i32 to index
      %c0_76 = arith.constant 0 : index
      %c0_77 = arith.constant 0 : index
      %75 = vector.load %arg2[%74, %c0_76, %c0_77] : memref<135x128x128xbf16, #tpu.memory_space<vmem>>, vector<1x128x128xbf16>
      %76 = vector.shape_cast %75 : vector<1x128x128xbf16> to vector<128x128xbf16>
      %cst_78 = arith.constant dense<0.000000e+00> : vector<256x128xf32>
      %77 = tpu.matmul %71, %76, %cst_78 {dimension_numbers = #tpu.dot_dimension_numbers<[1], [0], [0], [1], [0, 0, 1, 1], [], []>} : vector<256x128xbf16>, vector<128x128xbf16>, vector<256x128xf32> -> vector<256x128xf32>
      %c0_79 = arith.constant 0 : index
      %c0_80 = arith.constant 0 : index
      %78 = vector.load %arg6[%c0_79, %c0_80] : memref<256x128xf32, #tpu.memory_space<vmem>>, vector<256x128xf32>
      %79 = arith.addf %78, %77 : vector<256x128xf32>
      %c0_81 = arith.constant 0 : index
      %c0_82 = arith.constant 0 : index
      %80 = vector.load %arg6[%c0_81, %c0_82] : memref<256x128xf32, #tpu.memory_space<vmem>>, vector<256x128xf32>
      tpu.vector_store %arg6[%c0_81, %c0_82], %79 {strides = array<i32>} : memref<256x128xf32, #tpu.memory_space<vmem>>, vector<256x128xf32>,
      %c1_83 = arith.constant 1 : index
      %c1_84 = arith.constant 1 : index
      %c0_85 = arith.constant 0 : index
      %81 = vector.load %arg5[%c1_83, %c1_84, %c0_85] : memref<18x24x128xf32, #tpu.memory_space<vmem>>, vector<16x16x128xf32>
      %82 = vector.shape_cast %81 : vector<16x16x128xf32> to vector<256x128xf32>
      %83 = arith.truncf %82 : vector<256x128xf32> to vector<256x128xbf16>
      %c9_i32_86 = arith.constant 9 : i32
      %84 = arith.muli %arg7, %c9_i32_86 : i32
      %c4_i32 = arith.constant 4 : i32
      %85 = arith.addi %84, %c4_i32 : i32
      %86 = arith.index_cast %85 : i32 to index
      %c0_87 = arith.constant 0 : index
      %c0_88 = arith.constant 0 : index
      %87 = vector.load %arg2[%86, %c0_87, %c0_88] : memref<135x128x128xbf16, #tpu.memory_space<vmem>>, vector<1x128x128xbf16>
      %88 = vector.shape_cast %87 : vector<1x128x128xbf16> to vector<128x128xbf16>
      %cst_89 = arith.constant dense<0.000000e+00> : vector<256x128xf32>
      %89 = tpu.matmul %83, %88, %cst_89 {dimension_numbers = #tpu.dot_dimension_numbers<[1], [0], [0], [1], [0, 0, 1, 1], [], []>} : vector<256x128xbf16>, vector<128x128xbf16>, vector<256x128xf32> -> vector<256x128xf32>
      %c0_90 = arith.constant 0 : index
      %c0_91 = arith.constant 0 : index
      %90 = vector.load %arg6[%c0_90, %c0_91] : memref<256x128xf32, #tpu.memory_space<vmem>>, vector<256x128xf32>
      %91 = arith.addf %90, %89 : vector<256x128xf32>
      %c0_92 = arith.constant 0 : index
      %c0_93 = arith.constant 0 : index
      %92 = vector.load %arg6[%c0_92, %c0_93] : memref<256x128xf32, #tpu.memory_space<vmem>>, vector<256x128xf32>
      tpu.vector_store %arg6[%c0_92, %c0_93], %91 {strides = array<i32>} : memref<256x128xf32, #tpu.memory_space<vmem>>, vector<256x128xf32>,
      %c1_94 = arith.constant 1 : index
      %c2_95 = arith.constant 2 : index
      %c0_96 = arith.constant 0 : index
      %93 = vector.load %arg5[%c1_94, %c2_95, %c0_96] : memref<18x24x128xf32, #tpu.memory_space<vmem>>, vector<16x16x128xf32>
      %94 = vector.shape_cast %93 : vector<16x16x128xf32> to vector<256x128xf32>
      %95 = arith.truncf %94 : vector<256x128xf32> to vector<256x128xbf16>
      %c9_i32_97 = arith.constant 9 : i32
      %96 = arith.muli %arg7, %c9_i32_97 : i32
      %c5_i32_98 = arith.constant 5 : i32
      %97 = arith.addi %96, %c5_i32_98 : i32
      %98 = arith.index_cast %97 : i32 to index
      %c0_99 = arith.constant 0 : index
      %c0_100 = arith.constant 0 : index
      %99 = vector.load %arg2[%98, %c0_99, %c0_100] : memref<135x128x128xbf16, #tpu.memory_space<vmem>>, vector<1x128x128xbf16>
      %100 = vector.shape_cast %99 : vector<1x128x128xbf16> to vector<128x128xbf16>
      %cst_101 = arith.constant dense<0.000000e+00> : vector<256x128xf32>
      %101 = tpu.matmul %95, %100, %cst_101 {dimension_numbers = #tpu.dot_dimension_numbers<[1], [0], [0], [1], [0, 0, 1, 1], [], []>} : vector<256x128xbf16>, vector<128x128xbf16>, vector<256x128xf32> -> vector<256x128xf32>
      %c0_102 = arith.constant 0 : index
      %c0_103 = arith.constant 0 : index
      %102 = vector.load %arg6[%c0_102, %c0_103] : memref<256x128xf32, #tpu.memory_space<vmem>>, vector<256x128xf32>
      %103 = arith.addf %102, %101 : vector<256x128xf32>
      %c0_104 = arith.constant 0 : index
      %c0_105 = arith.constant 0 : index
      %104 = vector.load %arg6[%c0_104, %c0_105] : memref<256x128xf32, #tpu.memory_space<vmem>>, vector<256x128xf32>
      tpu.vector_store %arg6[%c0_104, %c0_105], %103 {strides = array<i32>} : memref<256x128xf32, #tpu.memory_space<vmem>>, vector<256x128xf32>,
      %c2_106 = arith.constant 2 : index
      %c0_107 = arith.constant 0 : index
      %c0_108 = arith.constant 0 : index
      %105 = vector.load %arg5[%c2_106, %c0_107, %c0_108] : memref<18x24x128xf32, #tpu.memory_space<vmem>>, vector<16x16x128xf32>
      %106 = vector.shape_cast %105 : vector<16x16x128xf32> to vector<256x128xf32>
      %107 = arith.truncf %106 : vector<256x128xf32> to vector<256x128xbf16>
      %c9_i32_109 = arith.constant 9 : i32
      %108 = arith.muli %arg7, %c9_i32_109 : i32
      %c6_i32 = arith.constant 6 : i32
      %109 = arith.addi %108, %c6_i32 : i32
      %110 = arith.index_cast %109 : i32 to index
      %c0_110 = arith.constant 0 : index
      %c0_111 = arith.constant 0 : index
      %111 = vector.load %arg2[%110, %c0_110, %c0_111] : memref<135x128x128xbf16, #tpu.memory_space<vmem>>, vector<1x128x128xbf16>
      %112 = vector.shape_cast %111 : vector<1x128x128xbf16> to vector<128x128xbf16>
      %cst_112 = arith.constant dense<0.000000e+00> : vector<256x128xf32>
      %113 = tpu.matmul %107, %112, %cst_112 {dimension_numbers = #tpu.dot_dimension_numbers<[1], [0], [0], [1], [0, 0, 1, 1], [], []>} : vector<256x128xbf16>, vector<128x128xbf16>, vector<256x128xf32> -> vector<256x128xf32>
      %c0_113 = arith.constant 0 : index
      %c0_114 = arith.constant 0 : index
      %114 = vector.load %arg6[%c0_113, %c0_114] : memref<256x128xf32, #tpu.memory_space<vmem>>, vector<256x128xf32>
      %115 = arith.addf %114, %113 : vector<256x128xf32>
      %c0_115 = arith.constant 0 : index
      %c0_116 = arith.constant 0 : index
      %116 = vector.load %arg6[%c0_115, %c0_116] : memref<256x128xf32, #tpu.memory_space<vmem>>, vector<256x128xf32>
      tpu.vector_store %arg6[%c0_115, %c0_116], %115 {strides = array<i32>} : memref<256x128xf32, #tpu.memory_space<vmem>>, vector<256x128xf32>,
      %c2_117 = arith.constant 2 : index
      %c1_118 = arith.constant 1 : index
      %c0_119 = arith.constant 0 : index
      %117 = vector.load %arg5[%c2_117, %c1_118, %c0_119] : memref<18x24x128xf32, #tpu.memory_space<vmem>>, vector<16x16x128xf32>
      %118 = vector.shape_cast %117 : vector<16x16x128xf32> to vector<256x128xf32>
      %119 = arith.truncf %118 : vector<256x128xf32> to vector<256x128xbf16>
      %c9_i32_120 = arith.constant 9 : i32
      %120 = arith.muli %arg7, %c9_i32_120 : i32
      %c7_i32 = arith.constant 7 : i32
      %121 = arith.addi %120, %c7_i32 : i32
      %122 = arith.index_cast %121 : i32 to index
      %c0_121 = arith.constant 0 : index
      %c0_122 = arith.constant 0 : index
      %123 = vector.load %arg2[%122, %c0_121, %c0_122] : memref<135x128x128xbf16, #tpu.memory_space<vmem>>, vector<1x128x128xbf16>
      %124 = vector.shape_cast %123 : vector<1x128x128xbf16> to vector<128x128xbf16>
      %cst_123 = arith.constant dense<0.000000e+00> : vector<256x128xf32>
      %125 = tpu.matmul %119, %124, %cst_123 {dimension_numbers = #tpu.dot_dimension_numbers<[1], [0], [0], [1], [0, 0, 1, 1], [], []>} : vector<256x128xbf16>, vector<128x128xbf16>, vector<256x128xf32> -> vector<256x128xf32>
      %c0_124 = arith.constant 0 : index
      %c0_125 = arith.constant 0 : index
      %126 = vector.load %arg6[%c0_124, %c0_125] : memref<256x128xf32, #tpu.memory_space<vmem>>, vector<256x128xf32>
      %127 = arith.addf %126, %125 : vector<256x128xf32>
      %c0_126 = arith.constant 0 : index
      %c0_127 = arith.constant 0 : index
      %128 = vector.load %arg6[%c0_126, %c0_127] : memref<256x128xf32, #tpu.memory_space<vmem>>, vector<256x128xf32>
      tpu.vector_store %arg6[%c0_126, %c0_127], %127 {strides = array<i32>} : memref<256x128xf32, #tpu.memory_space<vmem>>, vector<256x128xf32>,
      %c2_128 = arith.constant 2 : index
      %c2_129 = arith.constant 2 : index
      %c0_130 = arith.constant 0 : index
      %129 = vector.load %arg5[%c2_128, %c2_129, %c0_130] : memref<18x24x128xf32, #tpu.memory_space<vmem>>, vector<16x16x128xf32>
      %130 = vector.shape_cast %129 : vector<16x16x128xf32> to vector<256x128xf32>
      %131 = arith.truncf %130 : vector<256x128xf32> to vector<256x128xbf16>
      %c9_i32_131 = arith.constant 9 : i32
      %132 = arith.muli %arg7, %c9_i32_131 : i32
      %c8_i32 = arith.constant 8 : i32
      %133 = arith.addi %132, %c8_i32 : i32
      %134 = arith.index_cast %133 : i32 to index
      %c0_132 = arith.constant 0 : index
      %c0_133 = arith.constant 0 : index
      %135 = vector.load %arg2[%134, %c0_132, %c0_133] : memref<135x128x128xbf16, #tpu.memory_space<vmem>>, vector<1x128x128xbf16>
      %136 = vector.shape_cast %135 : vector<1x128x128xbf16> to vector<128x128xbf16>
      %cst_134 = arith.constant dense<0.000000e+00> : vector<256x128xf32>
      %137 = tpu.matmul %131, %136, %cst_134 {dimension_numbers = #tpu.dot_dimension_numbers<[1], [0], [0], [1], [0, 0, 1, 1], [], []>} : vector<256x128xbf16>, vector<128x128xbf16>, vector<256x128xf32> -> vector<256x128xf32>
      %c0_135 = arith.constant 0 : index
      %c0_136 = arith.constant 0 : index
      %138 = vector.load %arg6[%c0_135, %c0_136] : memref<256x128xf32, #tpu.memory_space<vmem>>, vector<256x128xf32>
      %139 = arith.addf %138, %137 : vector<256x128xf32>
      %c0_137 = arith.constant 0 : index
      %c0_138 = arith.constant 0 : index
      %140 = vector.load %arg6[%c0_137, %c0_138] : memref<256x128xf32, #tpu.memory_space<vmem>>, vector<256x128xf32>
      tpu.vector_store %arg6[%c0_137, %c0_138], %139 {strides = array<i32>} : memref<256x128xf32, #tpu.memory_space<vmem>>, vector<256x128xf32>,
      %c0_139 = arith.constant 0 : index
      %c0_140 = arith.constant 0 : index
      %141 = vector.load %arg6[%c0_139, %c0_140] : memref<256x128xf32, #tpu.memory_space<vmem>>, vector<256x128xf32>
      %142 = arith.index_cast %arg7 : i32 to index
      %c0_141 = arith.constant 0 : index
      %c0_142 = arith.constant 0 : index
      %143 = vector.load %arg3[%142, %c0_141, %c0_142] : memref<15x1x128xf32, #tpu.memory_space<vmem>>, vector<1x1x128xf32>
      %144 = vector.shape_cast %143 : vector<1x1x128xf32> to vector<1x128xf32>
      %145 = vector.broadcast %144 : vector<1x128xf32> to vector<256x128xf32>
      %146 = arith.addf %141, %145 : vector<256x128xf32>
      %cst_143 = arith.constant 2.000000e-01 : f32
      %147 = vector.broadcast %cst_143 : f32 to vector<256x128xf32>
      %148 = arith.mulf %147, %146 : vector<256x128xf32>
      %149 = arith.maximumf %146, %148 : vector<256x128xf32>
      %cst_144 = arith.constant 2.000000e-01 : f32
      %150 = vector.broadcast %cst_144 : f32 to vector<256x128xf32>
      %151 = arith.mulf %150, %146 : vector<256x128xf32>
      %c4_i32_145 = arith.constant 4 : i32
      %152 = arith.cmpi eq, %29, %c4_i32_145 : i32
      %153 = arith.extui %152 : i1 to i32
      %154 = arith.sitofp %153 : i32 to f32
      %155 = vector.broadcast %154 : f32 to vector<256x128xf32>
      %156 = arith.mulf %155, %151 : vector<256x128xf32>
      %cst_146 = arith.constant 1.000000e+00 : f32
      %157 = arith.subf %cst_146, %154 : f32
      %158 = vector.broadcast %157 : f32 to vector<256x128xf32>
      %159 = arith.mulf %158, %149 : vector<256x128xf32>
      %160 = arith.addf %156, %159 : vector<256x128xf32>
      %c1_147 = arith.constant 1 : index
      %c1_148 = arith.constant 1 : index
      %c0_149 = arith.constant 0 : index
      %161 = vector.load %arg5[%c1_147, %c1_148, %c0_149] : memref<18x24x128xf32, #tpu.memory_space<vmem>>, vector<16x16x128xf32>
      %162 = vector.shape_cast %161 : vector<16x16x128xf32> to vector<256x128xf32>
      %163 = arith.addf %162, %160 : vector<256x128xf32>
      %164 = vector.shape_cast %163 : vector<256x128xf32> to vector<16x16x128xf32>
      %c1_150 = arith.constant 1 : index
      %c1_151 = arith.constant 1 : index
      %c0_152 = arith.constant 0 : index
      %165 = vector.load %arg5[%c1_150, %c1_151, %c0_152] : memref<18x24x128xf32, #tpu.memory_space<vmem>>, vector<16x16x128xf32>
      tpu.vector_store %arg5[%c1_150, %c1_151, %c0_152], %164 {strides = array<i32>} : memref<18x24x128xf32, #tpu.memory_space<vmem>>, vector<16x16x128xf32>,
    }
    %c15_i32_20 = arith.constant 15 : i32
    %c1_21 = arith.constant 1 : index
    %c1_22 = arith.constant 1 : index
    %c0_23 = arith.constant 0 : index
    %12 = vector.load %arg5[%c1_21, %c1_22, %c0_23] : memref<18x24x128xf32, #tpu.memory_space<vmem>>, vector<16x16x32xf32>
    %cst_24 = arith.constant 2.000000e-01 : f32
    %13 = vector.broadcast %cst_24 : f32 to vector<16x16x32xf32>
    %14 = arith.mulf %13, %12 : vector<16x16x32xf32>
    %c0_25 = arith.constant 0 : index
    %c0_26 = arith.constant 0 : index
    %c0_27 = arith.constant 0 : index
    %c0_28 = arith.constant 0 : index
    %15 = vector.load %arg1[%c0_25, %c0_26, %c0_27, %c0_28] : memref<1x16x16x32xf32, #tpu.memory_space<vmem>>, vector<1x16x16x32xf32>
    %16 = vector.shape_cast %15 : vector<1x16x16x32xf32> to vector<16x16x32xf32>
    %17 = arith.addf %14, %16 : vector<16x16x32xf32>
    %18 = vector.shape_cast %17 : vector<16x16x32xf32> to vector<1x16x16x32xf32>
    %c0_29 = arith.constant 0 : index
    %c0_30 = arith.constant 0 : index
    %c0_31 = arith.constant 0 : index
    %c0_32 = arith.constant 0 : index
    %19 = vector.load %arg4[%c0_29, %c0_30, %c0_31, %c0_32] : memref<1x16x16x32xf32, #tpu.memory_space<vmem>>, vector<1x16x16x32xf32>
    tpu.vector_store %arg4[%c0_29, %c0_30, %c0_31, %c0_32], %18 {strides = array<i32>} : memref<1x16x16x32xf32, #tpu.memory_space<vmem>>, vector<1x16x16x32xf32>,
    return
  }
  func.func @transform_0(%arg0: i32) -> (i32, i32, i32, i32) {
    %c0_i32 = arith.constant 0 : i32
    %c0_i32_0 = arith.constant 0 : i32
    %c0_i32_1 = arith.constant 0 : i32
    %c0_i32_2 = arith.constant 0 : i32
    return %arg0, %c0_i32, %c0_i32_0, %c0_i32_1 : i32, i32, i32, i32
  }
  func.func @transform_1(%arg0: i32) -> (i32, i32, i32) {
    %c0_i32 = arith.constant 0 : i32
    %c0_i32_0 = arith.constant 0 : i32
    %c0_i32_1 = arith.constant 0 : i32
    %c0_i32_2 = arith.constant 0 : i32
    return %c0_i32, %c0_i32_0, %c0_i32_1 : i32, i32, i32
  }
  func.func @transform_2(%arg0: i32) -> (i32, i32, i32) {
    %c0_i32 = arith.constant 0 : i32
    %c0_i32_0 = arith.constant 0 : i32
    %c0_i32_1 = arith.constant 0 : i32
    %c0_i32_2 = arith.constant 0 : i32
    return %c0_i32, %c0_i32_0, %c0_i32_1 : i32, i32, i32
  }
  func.func @transform_3(%arg0: i32) -> (i32, i32, i32, i32) {
    %c0_i32 = arith.constant 0 : i32
    %c0_i32_0 = arith.constant 0 : i32
    %c0_i32_1 = arith.constant 0 : i32
    %c0_i32_2 = arith.constant 0 : i32
    return %arg0, %c0_i32, %c0_i32_0, %c0_i32_1 : i32, i32, i32, i32
  }
}

</mosaic_0001>

<llo_original>
// kernel: rrdb_forward.1
$region0: #{rrdb_forward.1}
  #allocation0 [shape = 'u32[]', space=smem, size = 0x4, offset = 0x4, fixed_abs, tag = 'smem constant byte address 0x4 - core index']
  #allocation1 [shape = 'u32[72,128]{1,0:T(1,128)}', space=vmem, size = 0x9000, scoped, tag = 'internal scratch']
  #allocation2 [shape = 'f32[18,24,128]{2,1,0:T(8,128)}', space=vmem, size = 0x36000, scoped, tag = 'scratch operand']
  #allocation3 [shape = 'f32[256,128]{1,0:T(8,128)}', space=vmem, size = 0x20000, scoped, tag = 'scratch operand']
  %s0 = inlined_call_operand.vmem [shape: f32[2,16,16,32], index: 0, kind: input, shape index: {}]
  %s1 = inlined_call_operand.vmem [shape: bf16[135,128,128], index: 1, kind: input, shape index: {}]
  %s2 = inlined_call_operand.vmem [shape: f32[15,1,128], index: 2, kind: input, shape index: {}]
  %s3 = inlined_call_operand.hbm [shape: f32[2,16,16,32], index: 3, kind: output, shape index: {}]
  %s4 = sld [smem:[#allocation0]]
  $region56: #{rrdb_forward.1} parent=0
    _
  %s6 = ssub.s32 1, %s4
  %s7 = scalar_select 0, %s6, %s4
  $region1: #{rrdb_forward.1} parent=0
    #allocation4 [shape = 'u8[262144]{0}', space=vmem, size = 0x40000, scoped, tag = 'output window, operand 0']
    #allocation5 [shape = 's32[2]{0}', space=sflag, size = 0x8, scoped, tag = 'scoped memory for rrdb_forward.1']
    %8 = vsyncpa [#allocation5], 0
    %s9 = scalar_lea.sflag [#allocation5], 1
    %10 = vsyncpa %s9, 0
    loop: start=0, step=1, limit=4
    $region2: #{rrdb_forward.1} parent=1 // loop_pre_header
      _
    $region3: #{rrdb_forward.1} parent=1 // loop_header
      %s12 = sphi 0, %s16
      %p13 = scmp.ge.s32.totalorder %s12, 4
      %s22 = sphi 0, %s24
      %s25 = sphi 0, %s22
      %s26 = sphi 0, %s25
      %s42 = sphi 0, %s26
      %s46 = sphi 0, %s46
      %s48 = sphi 0, %s46
      %s49 = sphi 0, %s48
      %s63 = sphi 0, %s49
      %s67 = sphi 0, %s67
      %s69 = sphi 0, %s67
      %s70 = sphi 0, %s69
      %s84 = sphi 0, %s70
      %s90 = sphi 0, %s92
      %s93 = sphi 0, %s90
      %s94 = sphi 0, %s93
      %s110 = sphi 0, %s94
    $region4: #{rrdb_forward.1} parent=1 // loop_header_branch
      %15 = sbr.rel (%p13) target = $region8
    $region5: #{rrdb_forward.1} parent=1 // loop_body
      %s17 = ssub.s32 %s12, 1
      %s18 = ssub.s32 %s12, 2
      %s19 = sadd.s32 %s12, 1
      %s20 = ssub.s32 %s12, %s19
      %p21 = scmp.eq.s32.totalorder %s20, 0
      %s23 = sadd.s32 %s22, 1
      %s24 = scalar_select %p21, %s22, %s23
      %p27 = pneg %p21
      %p28 = scmp.eq.s32.totalorder %s12, 1
      %p29 = por %p27, %p28
      %p30 = scmp.ne.s32.totalorder %s22, %s25
      %p31 = scmp.eq.s32.totalorder %s12, 0
      %p32 = por %p30, %p31
      %p33 = scmp.ne.s32.totalorder %s22, %s25
      %p34 = scmp.eq.s32.totalorder %s17, 1
      %p35 = por %p33, %p34
      %p36 = scmp.ne.s32.totalorder %s25, %s26
      %p37 = scmp.eq.s32.totalorder %s17, 0
      %p38 = por %p36, %p37
      %p39 = scmp.ne.s32.totalorder %s25, %s26
      %p40 = scmp.eq.s32.totalorder %s18, 1
      %p41 = por %p39, %p40
      %p43 = scmp.ne.s32.totalorder %s26, %s42
      %p44 = scmp.eq.s32.totalorder %s18, 0
      %p45 = por %p43, %p44
      %s47 = sadd.s32 %s46, 1
      %p50 = scmp.eq.s32.totalorder %s12, 1
      %p51 = scmp.ne.s32.totalorder %s46, %s48
      %p52 = scmp.eq.s32.totalorder %s12, 0
      %p53 = por %p51, %p52
      %p54 = scmp.ne.s32.totalorder %s46, %s48
      %p55 = scmp.eq.s32.totalorder %s17, 1
      %p56 = por %p54, %p55
      %p57 = scmp.ne.s32.totalorder %s48, %s49
      %p58 = scmp.eq.s32.totalorder %s17, 0
      %p59 = por %p57, %p58
      %p60 = scmp.ne.s32.totalorder %s48, %s49
      %p61 = scmp.eq.s32.totalorder %s18, 1
      %p62 = por %p60, %p61
      %p64 = scmp.ne.s32.totalorder %s49, %s63
      %p65 = scmp.eq.s32.totalorder %s18, 0
      %p66 = por %p64, %p65
      %s68 = sadd.s32 %s67, 1
      %p71 = scmp.eq.s32.totalorder %s12, 1
      %p72 = scmp.ne.s32.totalorder %s67, %s69
      %p73 = scmp.eq.s32.totalorder %s12, 0
      %p74 = por %p72, %p73
      %p75 = scmp.ne.s32.totalorder %s67, %s69
      %p76 = scmp.eq.s32.totalorder %s17, 1
      %p77 = por %p75, %p76
      %p78 = scmp.ne.s32.totalorder %s69, %s70
      %p79 = scmp.eq.s32.totalorder %s17, 0
      %p80 = por %p78, %p79
      %p81 = scmp.ne.s32.totalorder %s69, %s70
      %p82 = scmp.eq.s32.totalorder %s18, 1
      %p83 = por %p81, %p82
      %p85 = scmp.ne.s32.totalorder %s70, %s84
      %p86 = scmp.eq.s32.totalorder %s18, 0
      %p87 = por %p85, %p86
      %s88 = ssub.s32 %s12, %s19
      %p89 = scmp.eq.s32.totalorder %s88, 0
      %s91 = sadd.s32 %s90, 1
      %s92 = scalar_select %p89, %s90, %s91
      %p95 = pneg %p89
      %p96 = scmp.eq.s32.totalorder %s12, 1
      %p97 = por %p95, %p96
      %p98 = scmp.ne.s32.totalorder %s90, %s93
      %p99 = scmp.eq.s32.totalorder %s12, 0
      %p100 = por %p98, %p99
      %p101 = scmp.ne.s32.totalorder %s90, %s93
      %p102 = scmp.eq.s32.totalorder %s17, 1
      %p103 = por %p101, %p102
      %p104 = scmp.ne.s32.totalorder %s93, %s94
      %p105 = scmp.eq.s32.totalorder %s17, 0
      %p106 = por %p104, %p105
      %p107 = scmp.ne.s32.totalorder %s93, %s94
      %p108 = scmp.eq.s32.totalorder %s18, 1
      %p109 = por %p107, %p108
      %p111 = scmp.ne.s32.totalorder %s94, %s110
      %p112 = scmp.eq.s32.totalorder %s18, 0
      %p113 = por %p111, %p112
      %p114 = scmp.le.s32.totalorder 1, %s12
      %p115 = scmp.lt.s32.totalorder %s12, 3
      %p116 = pnand %p114, %p115
      %p117 = pneg %p116
      // Predicated region
      $region9: #{rrdb_forward.1} parent=5 // pred_check
        _
      $region10: #{rrdb_forward.1} parent=5 // pred_check_branch
        %119 = sbr.rel (%p116) target = $region12
      $region11: #{rrdb_forward.1} parent=5 // pred_region
        %s120 = ssub.s32 %s12, 1
        // Predicated region
        $region13: #{rrdb_forward.1} parent=11 // pred_check
          %p121 = pneg %p59
        $region14: #{rrdb_forward.1} parent=11 // pred_check_branch
          %123 = sbr.rel (%p121) target = $region16
        $region15: #{rrdb_forward.1} parent=11 // pred_region
          _
        $region16: #{rrdb_forward.1} parent=11 // pred_fallthru
          _
        // Predicated region
        $region17: #{rrdb_forward.1} parent=11 // pred_check
          %p124 = pneg %p80
        $region18: #{rrdb_forward.1} parent=11 // pred_check_branch
          %126 = sbr.rel (%p124) target = $region20
        $region19: #{rrdb_forward.1} parent=11 // pred_region
          _
        $region20: #{rrdb_forward.1} parent=11 // pred_fallthru
          _
      $region12: #{rrdb_forward.1} parent=5 // pred_fallthru
        _
      %p127 = scmp.lt.s32.totalorder %s12, 2
      // Predicated region
      $region21: #{rrdb_forward.1} parent=5 // pred_check
        %p128 = pneg %p127
      $region22: #{rrdb_forward.1} parent=5 // pred_check_branch
        %130 = sbr.rel (%p128) target = $region24
      $region23: #{rrdb_forward.1} parent=5 // pred_region
        // Predicated region
        $region25: #{rrdb_forward.1} parent=23 // pred_check
          %p131 = pneg %p32
        $region26: #{rrdb_forward.1} parent=23 // pred_check_branch
          %133 = sbr.rel (%p131) target = $region28
        $region27: #{rrdb_forward.1} parent=23 // pred_region
          %p134 = scmp.lt.s32.totalorder %s12, 1
          %s135 = scalar_select %p134, %s12, 1
          %s136 = smul.addr %s135, 32
          %s137 = smul.addr %s136, 8
          %s138 = scalar_lea.vmem %s0, %s137
        $region28: #{rrdb_forward.1} parent=23 // pred_fallthru
          _
      $region24: #{rrdb_forward.1} parent=5 // pred_fallthru
        _
      %p139 = scmp.le.s32.totalorder 1, %s12
      %p140 = scmp.lt.s32.totalorder %s12, 3
      %p141 = pnand %p139, %p140
      %p142 = pneg %p141
      // Predicated region
      $region29: #{rrdb_forward.1} parent=5 // pred_check
        _
      $region30: #{rrdb_forward.1} parent=5 // pred_check_branch
        %144 = sbr.rel (%p141) target = $region32
      $region31: #{rrdb_forward.1} parent=5 // pred_region
        %s145 = ssub.s32 %s12, 1
        %p146 = scmp.lt.s32.totalorder %s17, 1
        %s147 = scalar_select %p146, %s17, 1
        %s148 = smul.addr %s147, 32
        %s149 = smul.addr %s148, 8
        %s150 = scalar_lea.vmem %s0, %s149
        %p151 = pneg %p38
        %p152 = pneg %p35
        %p153 = pneg %p59
        %p154 = pneg %p56
        %p155 = pneg %p80
        %p156 = pneg %p77
        %p157 = pneg %p106
        %p158 = pneg %p103
        %s159 = sand.u32 %s93, 1
        %s160 = scalar_lea.sflag [#allocation5], %s159
        %s161 = sand.u32 %s93, 1
        %s162 = smul.addr %s161, 256
        %s163 = scalar_lea.vmem [#allocation4], %s162
        %p164 = scmp.lt.s32.totalorder %s17, 1
        %s165 = scalar_select %p164, %s17, 1
        %s166 = smul.addr %s165, 32
        %s167 = smul.addr %s166, 8
        %s168 = scalar_lea.vmem %s0, %s167
        %169 = vst [vmem:[#allocation2] sm:$0xff] 0.0
        %170 = vst [vmem:[#allocation2 + $0x8] sm:$0xff] 0.0
        %171 = vst [vmem:[#allocation2 + $0x10] sm:$0xff] 0.0
        %s172 = scalar_lea.vmem [#allocation2], 408
        %173 = vst [vmem:[%s172] sm:$0xff] 0.0
        %174 = vst [vmem:[%s172 + $0x8] sm:$0xff] 0.0
        %175 = vst [vmem:[%s172 + $0x10] sm:$0xff] 0.0
        %s176 = scalar_lea.vmem [#allocation2], 24
        %177 = vst [vmem:[%s176] sm:$0x1] 0.0
        %178 = vst [vmem:[%s176 + $0x18] sm:$0x1] 0.0
        %179 = vst [vmem:[%s176 + $0x30] sm:$0x1] 0.0
        %180 = vst [vmem:[%s176 + $0x48] sm:$0x1] 0.0
        %181 = vst [vmem:[%s176 + $0x60] sm:$0x1] 0.0
        %182 = vst [vmem:[%s176 + $0x78] sm:$0x1] 0.0
        %183 = vst [vmem:[%s176 + $0x90] sm:$0x1] 0.0
        %184 = vst [vmem:[%s176 + $0xa8] sm:$0x1] 0.0
        %185 = vst [vmem:[%s176 + $0xc0] sm:$0x1] 0.0
        %186 = vst [vmem:[%s176 + $0xd8] sm:$0x1] 0.0
        %187 = vst [vmem:[%s176 + $0xf0] sm:$0x1] 0.0
        %188 = vst [vmem:[%s176 + $0x108] sm:$0x1] 0.0
        %189 = vst [vmem:[%s176 + $0x120] sm:$0x1] 0.0
        %190 = vst [vmem:[%s176 + $0x138] sm:$0x1] 0.0
        %191 = vst [vmem:[%s176 + $0x150] sm:$0x1] 0.0
        %192 = vst [vmem:[%s176 + $0x168] sm:$0x1] 0.0
        %193 = vst [vmem:[%s176 + $0x11] sm:$0x1] 0.0
        %194 = vst [vmem:[%s176 + $0x29] sm:$0x1] 0.0
        %195 = vst [vmem:[%s176 + $0x41] sm:$0x1] 0.0
        %196 = vst [vmem:[%s176 + $0x59] sm:$0x1] 0.0
        %197 = vst [vmem:[%s176 + $0x71] sm:$0x1] 0.0
        %198 = vst [vmem:[%s176 + $0x89] sm:$0x1] 0.0
        %199 = vst [vmem:[%s176 + $0xa1] sm:$0x1] 0.0
        %200 = vst [vmem:[%s176 + $0xb9] sm:$0x1] 0.0
        %201 = vst [vmem:[%s176 + $0xd1] sm:$0x1] 0.0
        %202 = vst [vmem:[%s176 + $0xe9] sm:$0x1] 0.0
        %203 = vst [vmem:[%s176 + $0x101] sm:$0x1] 0.0
        %204 = vst [vmem:[%s176 + $0x119] sm:$0x1] 0.0
        %205 = vst [vmem:[%s176 + $0x131] sm:$0x1] 0.0
        %206 = vst [vmem:[%s176 + $0x149] sm:$0x1] 0.0
        %207 = vst [vmem:[%s176 + $0x161] sm:$0x1] 0.0
        %208 = vst [vmem:[%s176 + $0x179] sm:$0x1] 0.0
        %v209 = vld [vmem:[%s168] sm:$0xff]
        %v210 = vld [vmem:[%s168 + $0x8] sm:$0xff]
        %v211 = vld [vmem:[%s168 + $0x10] sm:$0xff]
        %v212 = vld [vmem:[%s168 + $0x18] sm:$0xff]
        %v213 = vld [vmem:[%s168 + $0x20] sm:$0xff]
        %v214 = vld [vmem:[%s168 + $0x28] sm:$0xff]
        %v215 = vld [vmem:[%s168 + $0x30] sm:$0xff]
        %v216 = vld [vmem:[%s168 + $0x38] sm:$0xff]
        %v217 = vld [vmem:[%s168 + $0x40] sm:$0xff]
        %v218 = vld [vmem:[%s168 + $0x48] sm:$0xff]
        %v219 = vld [vmem:[%s168 + $0x50] sm:$0xff]
        %v220 = vld [vmem:[%s168 + $0x58] sm:$0xff]
        %v221 = vld [vmem:[%s168 + $0x60] sm:$0xff]
        %v222 = vld [vmem:[%s168 + $0x68] sm:$0xff]
        %v223 = vld [vmem:[%s168 + $0x70] sm:$0xff]
        %v224 = vld [vmem:[%s168 + $0x78] sm:$0xff]
        %v225 = vld [vmem:[%s168 + $0x80] sm:$0xff]
        %v226 = vld [vmem:[%s168 + $0x88] sm:$0xff]
        %v227 = vld [vmem:[%s168 + $0x90] sm:$0xff]
        %v228 = vld [vmem:[%s168 + $0x98] sm:$0xff]
        %v229 = vld [vmem:[%s168 + $0xa0] sm:$0xff]
        %v230 = vld [vmem:[%s168 + $0xa8] sm:$0xff]
        %v231 = vld [vmem:[%s168 + $0xb0] sm:$0xff]
        %v232 = vld [vmem:[%s168 + $0xb8] sm:$0xff]
        %v233 = vld [vmem:[%s168 + $0xc0] sm:$0xff]
        %v234 = vld [vmem:[%s168 + $0xc8] sm:$0xff]
        %v235 = vld [vmem:[%s168 + $0xd0] sm:$0xff]
        %v236 = vld [vmem:[%s168 + $0xd8] sm:$0xff]
        %v237 = vld [vmem:[%s168 + $0xe0] sm:$0xff]
        %v238 = vld [vmem:[%s168 + $0xe8] sm:$0xff]
        %v239 = vld [vmem:[%s168 + $0xf0] sm:$0xff]
        %v240 = vld [vmem:[%s168 + $0xf8] sm:$0xff]
        %vm241 = vcmask 261120
        %242 = vst.msk [vmem:[%s176 + $0x1] sm:$0xff] %vm241, %v209
        %243 = vst.msk [vmem:[%s176 + $0x9] sm:$0xff] %vm241, %v210
        %244 = vst.msk [vmem:[%s176 + $0x19] sm:$0xff] %vm241, %v211
        %245 = vst.msk [vmem:[%s176 + $0x21] sm:$0xff] %vm241, %v212
        %246 = vst.msk [vmem:[%s176 + $0x31] sm:$0xff] %vm241, %v213
        %247 = vst.msk [vmem:[%s176 + $0x39] sm:$0xff] %vm241, %v214
        %248 = vst.msk [vmem:[%s176 + $0x49] sm:$0xff] %vm241, %v215
        %249 = vst.msk [vmem:[%s176 + $0x51] sm:$0xff] %vm241, %v216
        %250 = vst.msk [vmem:[%s176 + $0x61] sm:$0xff] %vm241, %v217
        %251 = vst.msk [vmem:[%s176 + $0x69] sm:$0xff] %vm241, %v218
        %252 = vst.msk [vmem:[%s176 + $0x79] sm:$0xff] %vm241, %v219
        %253 = vst.msk [vmem:[%s176 + $0x81] sm:$0xff] %vm241, %v220
        %254 = vst.msk [vmem:[%s176 + $0x91] sm:$0xff] %vm241, %v221
        %255 = vst.msk [vmem:[%s176 + $0x99] sm:$0xff] %vm241, %v222
        %256 = vst.msk [vmem:[%s176 + $0xa9] sm:$0xff] %vm241, %v223
        %257 = vst.msk [vmem:[%s176 + $0xb1] sm:$0xff] %vm241, %v224
        %258 = vst.msk [vmem:[%s176 + $0xc1] sm:$0xff] %vm241, %v225
        %259 = vst.msk [vmem:[%s176 + $0xc9] sm:$0xff] %vm241, %v226
        %260 = vst.msk [vmem:[%s176 + $0xd9] sm:$0xff] %vm241, %v227
        %261 = vst.msk [vmem:[%s176 + $0xe1] sm:$0xff] %vm241, %v228
        %262 = vst.msk [vmem:[%s176 + $0xf1] sm:$0xff] %vm241, %v229
        %263 = vst.msk [vmem:[%s176 + $0xf9] sm:$0xff] %vm241, %v230
        %264 = vst.msk [vmem:[%s176 + $0x109] sm:$0xff] %vm241, %v231
        %265 = vst.msk [vmem:[%s176 + $0x111] sm:$0xff] %vm241, %v232
        %266 = vst.msk [vmem:[%s176 + $0x121] sm:$0xff] %vm241, %v233
        %267 = vst.msk [vmem:[%s176 + $0x129] sm:$0xff] %vm241, %v234
        %268 = vst.msk [vmem:[%s176 + $0x139] sm:$0xff] %vm241, %v235
        %269 = vst.msk [vmem:[%s176 + $0x141] sm:$0xff] %vm241, %v236
        %270 = vst.msk [vmem:[%s176 + $0x151] sm:$0xff] %vm241, %v237
        %271 = vst.msk [vmem:[%s176 + $0x159] sm:$0xff] %vm241, %v238
        %272 = vst.msk [vmem:[%s176 + $0x169] sm:$0xff] %vm241, %v239
        %273 = vst.msk [vmem:[%s176 + $0x171] sm:$0xff] %vm241, %v240
        %vm274 = vcmask 1047808
        %275 = vst.msk [vmem:[%s176 + $0x1] sm:$0xff] %vm274, 0.0
        %276 = vst.msk [vmem:[%s176 + $0x9] sm:$0xff] %vm274, 0.0
        %277 = vst.msk [vmem:[%s176 + $0x19] sm:$0xff] %vm274, 0.0
        %278 = vst.msk [vmem:[%s176 + $0x21] sm:$0xff] %vm274, 0.0
        %279 = vst.msk [vmem:[%s176 + $0x31] sm:$0xff] %vm274, 0.0
        %280 = vst.msk [vmem:[%s176 + $0x39] sm:$0xff] %vm274, 0.0
        %281 = vst.msk [vmem:[%s176 + $0x49] sm:$0xff] %vm274, 0.0
        %282 = vst.msk [vmem:[%s176 + $0x51] sm:$0xff] %vm274, 0.0
        %283 = vst.msk [vmem:[%s176 + $0x61] sm:$0xff] %vm274, 0.0
        %284 = vst.msk [vmem:[%s176 + $0x69] sm:$0xff] %vm274, 0.0
        %285 = vst.msk [vmem:[%s176 + $0x79] sm:$0xff] %vm274, 0.0
        %286 = vst.msk [vmem:[%s176 + $0x81] sm:$0xff] %vm274, 0.0
        %287 = vst.msk [vmem:[%s176 + $0x91] sm:$0xff] %vm274, 0.0
        %288 = vst.msk [vmem:[%s176 + $0x99] sm:$0xff] %vm274, 0.0
        %289 = vst.msk [vmem:[%s176 + $0xa9] sm:$0xff] %vm274, 0.0
        %290 = vst.msk [vmem:[%s176 + $0xb1] sm:$0xff] %vm274, 0.0
        %291 = vst.msk [vmem:[%s176 + $0xc1] sm:$0xff] %vm274, 0.0
        %292 = vst.msk [vmem:[%s176 + $0xc9] sm:$0xff] %vm274, 0.0
        %293 = vst.msk [vmem:[%s176 + $0xd9] sm:$0xff] %vm274, 0.0
        %294 = vst.msk [vmem:[%s176 + $0xe1] sm:$0xff] %vm274, 0.0
        %295 = vst.msk [vmem:[%s176 + $0xf1] sm:$0xff] %vm274, 0.0
        %296 = vst.msk [vmem:[%s176 + $0xf9] sm:$0xff] %vm274, 0.0
        %297 = vst.msk [vmem:[%s176 + $0x109] sm:$0xff] %vm274, 0.0
        %298 = vst.msk [vmem:[%s176 + $0x111] sm:$0xff] %vm274, 0.0
        %299 = vst.msk [vmem:[%s176 + $0x121] sm:$0xff] %vm274, 0.0
        %300 = vst.msk [vmem:[%s176 + $0x129] sm:$0xff] %vm274, 0.0
        %301 = vst.msk [vmem:[%s176 + $0x139] sm:$0xff] %vm274, 0.0
        %302 = vst.msk [vmem:[%s176 + $0x141] sm:$0xff] %vm274, 0.0
        %303 = vst.msk [vmem:[%s176 + $0x151] sm:$0xff] %vm274, 0.0
        %304 = vst.msk [vmem:[%s176 + $0x159] sm:$0xff] %vm274, 0.0
        %305 = vst.msk [vmem:[%s176 + $0x169] sm:$0xff] %vm274, 0.0
        %306 = vst.msk [vmem:[%s176 + $0x171] sm:$0xff] %vm274, 0.0
        loop: start=0, step=1, limit=15
        $region33: #{rrdb_forward.1} parent=31 // loop_pre_header
          _
        $region34: #{rrdb_forward.1} parent=31 // loop_header
          %s308 = sphi 0, %s312
          %p309 = scmp.ge.s32.totalorder %s308, 15
        $region35: #{rrdb_forward.1} parent=31 // loop_header_branch
          %311 = sbr.rel (%p309) target = $region39
        $region36: #{rrdb_forward.1} parent=31 // loop_body
          %p313 = scmp.lt.s32.totalorder %s308, 0
          %s314 = ssub.s32 0, %s308
          %s315 = scalar_select %p313, %s314, %s308
          %s316 = sdiv.u32.pop %s315, 5
          %s317 = srem.u32.pop %s315, 5
          %s318 = ssub.s32 0, %s317
          %s319 = scalar_select %p313, %s318, %s317
          %p320 = scmp.ne.s32.totalorder %s319, 0
          %p321 = scmp.lt.s32.totalorder %s319, 0
          %p322 = pnand %p321, %p320
          %p323 = pneg %p322
          %s324 = sadd.s32 %s319, 5
          %s325 = scalar_select %p323, %s324, %s319
          %p326 = scmp.eq.s32.totalorder %s325, 0
          %p327 = scmp.gt.s32.totalorder %s308, 0
          %p328 = pnand %p326, %p327
          %p329 = pneg %p328
          // Predicated region
          $region40: #{rrdb_forward.1} parent=36 // pred_check
            _
          $region41: #{rrdb_forward.1} parent=36 // pred_check_branch
            %331 = sbr.rel (%p328) target = $region43
          $region42: #{rrdb_forward.1} parent=36 // pred_region
            %vm332 = vcmask 785664
            %333 = vst.msk [vmem:[%s176 + $0x1] sm:$0xff] %vm332, 0.0
            %334 = vst.msk [vmem:[%s176 + $0x9] sm:$0xff] %vm332, 0.0
            %335 = vst.msk [vmem:[%s176 + $0x19] sm:$0xff] %vm332, 0.0
            %336 = vst.msk [vmem:[%s176 + $0x21] sm:$0xff] %vm332, 0.0
            %337 = vst.msk [vmem:[%s176 + $0x31] sm:$0xff] %vm332, 0.0
            %338 = vst.msk [vmem:[%s176 + $0x39] sm:$0xff] %vm332, 0.0
            %339 = vst.msk [vmem:[%s176 + $0x49] sm:$0xff] %vm332, 0.0
            %340 = vst.msk [vmem:[%s176 + $0x51] sm:$0xff] %vm332, 0.0
            %341 = vst.msk [vmem:[%s176 + $0x61] sm:$0xff] %vm332, 0.0
            %342 = vst.msk [vmem:[%s176 + $0x69] sm:$0xff] %vm332, 0.0
            %343 = vst.msk [vmem:[%s176 + $0x79] sm:$0xff] %vm332, 0.0
            %344 = vst.msk [vmem:[%s176 + $0x81] sm:$0xff] %vm332, 0.0
            %345 = vst.msk [vmem:[%s176 + $0x91] sm:$0xff] %vm332, 0.0
            %346 = vst.msk [vmem:[%s176 + $0x99] sm:$0xff] %vm332, 0.0
            %347 = vst.msk [vmem:[%s176 + $0xa9] sm:$0xff] %vm332, 0.0
            %348 = vst.msk [vmem:[%s176 + $0xb1] sm:$0xff] %vm332, 0.0
            %349 = vst.msk [vmem:[%s176 + $0xc1] sm:$0xff] %vm332, 0.0
            %350 = vst.msk [vmem:[%s176 + $0xc9] sm:$0xff] %vm332, 0.0
            %351 = vst.msk [vmem:[%s176 + $0xd9] sm:$0xff] %vm332, 0.0
            %352 = vst.msk [vmem:[%s176 + $0xe1] sm:$0xff] %vm332, 0.0
            %353 = vst.msk [vmem:[%s176 + $0xf1] sm:$0xff] %vm332, 0.0
            %354 = vst.msk [vmem:[%s176 + $0xf9] sm:$0xff] %vm332, 0.0
            %355 = vst.msk [vmem:[%s176 + $0x109] sm:$0xff] %vm332, 0.0
            %356 = vst.msk [vmem:[%s176 + $0x111] sm:$0xff] %vm332, 0.0
            %357 = vst.msk [vmem:[%s176 + $0x121] sm:$0xff] %vm332, 0.0
            %358 = vst.msk [vmem:[%s176 + $0x129] sm:$0xff] %vm332, 0.0
            %359 = vst.msk [vmem:[%s176 + $0x139] sm:$0xff] %vm332, 0.0
            %360 = vst.msk [vmem:[%s176 + $0x141] sm:$0xff] %vm332, 0.0
            %361 = vst.msk [vmem:[%s176 + $0x151] sm:$0xff] %vm332, 0.0
            %362 = vst.msk [vmem:[%s176 + $0x159] sm:$0xff] %vm332, 0.0
            %363 = vst.msk [vmem:[%s176 + $0x169] sm:$0xff] %vm332, 0.0
            %364 = vst.msk [vmem:[%s176 + $0x171] sm:$0xff] %vm332, 0.0
          $region43: #{rrdb_forward.1} parent=36 // pred_fallthru
            _
          %v365 = vld [vmem:[#allocation2] sm:$0xff]
          %v366 = vld [vmem:[#allocation2 + $0x8] sm:$0xff]
          %v367 = vld [vmem:[#allocation2 + $0x18] sm:$0xff]
          %v368 = vld [vmem:[#allocation2 + $0x20] sm:$0xff]
          %v369 = vld [vmem:[#allocation2 + $0x30] sm:$0xff]
          %v370 = vld [vmem:[#allocation2 + $0x38] sm:$0xff]
          %v371 = vld [vmem:[#allocation2 + $0x48] sm:$0xff]
          %v372 = vld [vmem:[#allocation2 + $0x50] sm:$0xff]
          %v373 = vld [vmem:[#allocation2 + $0x60] sm:$0xff]
          %v374 = vld [vmem:[#allocation2 + $0x68] sm:$0xff]
          %v375 = vld [vmem:[#allocation2 + $0x78] sm:$0xff]
          %v376 = vld [vmem:[#allocation2 + $0x80] sm:$0xff]
          %v377 = vld [vmem:[#allocation2 + $0x90] sm:$0xff]
          %v378 = vld [vmem:[#allocation2 + $0x98] sm:$0xff]
          %v379 = vld [vmem:[#allocation2 + $0xa8] sm:$0xff]
          %v380 = vld [vmem:[#allocation2 + $0xb0] sm:$0xff]
          %v381 = vld [vmem:[#allocation2 + $0xc0] sm:$0xff]
          %v382 = vld [vmem:[#allocation2 + $0xc8] sm:$0xff]
          %v383 = vld [vmem:[#allocation2 + $0xd8] sm:$0xff]
          %v384 = vld [vmem:[#allocation2 + $0xe0] sm:$0xff]
          %v385 = vld [vmem:[#allocation2 + $0xf0] sm:$0xff]
          %v386 = vld [vmem:[#allocation2 + $0xf8] sm:$0xff]
          %v387 = vld [vmem:[#allocation2 + $0x108] sm:$0xff]
          %v388 = vld [vmem:[#allocation2 + $0x110] sm:$0xff]
          %v389 = vld [vmem:[#allocation2 + $0x120] sm:$0xff]
          %v390 = vld [vmem:[#allocation2 + $0x128] sm:$0xff]
          %v391 = vld [vmem:[#allocation2 + $0x138] sm:$0xff]
          %v392 = vld [vmem:[#allocation2 + $0x140] sm:$0xff]
          %v393 = vld [vmem:[#allocation2 + $0x150] sm:$0xff]
          %v394 = vld [vmem:[#allocation2 + $0x158] sm:$0xff]
          %v395 = vld [vmem:[#allocation2 + $0x168] sm:$0xff]
          %v396 = vld [vmem:[#allocation2 + $0x170] sm:$0xff]
          %v397 = vpack.c.bf16 %v366, %v365
          %v398 = vpack.c.bf16 %v368, %v367
          %v399 = vpack.c.bf16 %v370, %v369
          %v400 = vpack.c.bf16 %v372, %v371
          %v401 = vpack.c.bf16 %v374, %v373
          %v402 = vpack.c.bf16 %v376, %v375
          %v403 = vpack.c.bf16 %v378, %v377
          %v404 = vpack.c.bf16 %v380, %v379
          %v405 = vpack.c.bf16 %v382, %v381
          %v406 = vpack.c.bf16 %v384, %v383
          %v407 = vpack.c.bf16 %v386, %v385
          %v408 = vpack.c.bf16 %v388, %v387
          %v409 = vpack.c.bf16 %v390, %v389
          %v410 = vpack.c.bf16 %v392, %v391
          %v411 = vpack.c.bf16 %v394, %v393
          %v412 = vpack.c.bf16 %v396, %v395
          %s413 = smul.u32 %s308, 9
          %s414 = smul.u32 %s413, 16
          %s415 = smul.addr %s414, 4
          %s416 = scalar_lea.vmem %s1, %s415
          %v417 = vld [vmem:[%s416] sm:$0xf]
          %v418 = vld [vmem:[%s416 + $0x4] sm:$0xf]
          %v419 = vld [vmem:[%s416 + $0x8] sm:$0xf]
          %v420 = vld [vmem:[%s416 + $0xc] sm:$0xf]
          %v421 = vld [vmem:[%s416 + $0x10] sm:$0xf]
          %v422 = vld [vmem:[%s416 + $0x14] sm:$0xf]
          %v423 = vld [vmem:[%s416 + $0x18] sm:$0xf]
          %v424 = vld [vmem:[%s416 + $0x1c] sm:$0xf]
          %v425 = vld [vmem:[%s416 + $0x20] sm:$0xf]
          %v426 = vld [vmem:[%s416 + $0x24] sm:$0xf]
          %v427 = vld [vmem:[%s416 + $0x28] sm:$0xf]
          %v428 = vld [vmem:[%s416 + $0x2c] sm:$0xf]
          %v429 = vld [vmem:[%s416 + $0x30] sm:$0xf]
          %v430 = vld [vmem:[%s416 + $0x34] sm:$0xf]
          %v431 = vld [vmem:[%s416 + $0x38] sm:$0xf]
          %v432 = vld [vmem:[%s416 + $0x3c] sm:$0xf]
          %v449 = vunpack.c.l.b16 %v417
          %v450 = vunpack.c.l.b16 %v418
          %v451 = vunpack.c.l.b16 %v419
          %v452 = vunpack.c.l.b16 %v420
          %v453 = vunpack.c.l.b16 %v421
          %v454 = vunpack.c.l.b16 %v422
          %v455 = vunpack.c.l.b16 %v423
          %v456 = vunpack.c.l.b16 %v424
          %v457 = vunpack.c.l.b16 %v425
          %v458 = vunpack.c.l.b16 %v426
          %v459 = vunpack.c.l.b16 %v427
          %v460 = vunpack.c.l.b16 %v428
          %v461 = vunpack.c.l.b16 %v429
          %v462 = vunpack.c.l.b16 %v430
          %v463 = vunpack.c.l.b16 %v431
          %v464 = vunpack.c.l.b16 %v432
          %v465 = vpack.c.b16 %v450, %v449
          %v466 = vpack.c.b16 %v452, %v451
          %v467 = vpack.c.b16 %v454, %v453
          %v468 = vpack.c.b16 %v456, %v455
          %v469 = vpack.c.b16 %v458, %v457
          %v470 = vpack.c.b16 %v460, %v459
          %v471 = vpack.c.b16 %v462, %v461
          %v472 = vpack.c.b16 %v464, %v463
          %481 = vmatpush.bf16.msra.mxu0 %v472
          %482 = vmatpush.bf16.msra.mxu0 %v471
          %483 = vmatpush.bf16.msra.mxu0 %v470
          %484 = vmatpush.bf16.msra.mxu0 %v469
          %485 = vmatpush.bf16.msra.mxu0 %v468
          %486 = vmatpush.bf16.msra.mxu0 %v467
          %487 = vmatpush.bf16.msra.mxu0 %v466
          %488 = vmatpush.bf16.msra.mxu0 %v465
          %489 = vmatmul.bf16.gmra.mxu0 %v397
          %v490 = vpop.f32.mrf.mxu0
          %v491 = vadd.f32 0.0, %v490
          %v492 = vpop.f32.mrf.mxu0
          %v493 = vadd.f32 0.0, %v492
          %494 = vmatmul.bf16.gmra.mxu0 %v398
          %v495 = vpop.f32.mrf.mxu0
          %v496 = vadd.f32 0.0, %v495
          %v497 = vpop.f32.mrf.mxu0
          %v498 = vadd.f32 0.0, %v497
          %499 = vmatmul.bf16.gmra.mxu0 %v399
          %v500 = vpop.f32.mrf.mxu0
          %v501 = vadd.f32 0.0, %v500
          %v502 = vpop.f32.mrf.mxu0
          %v503 = vadd.f32 0.0, %v502
          %504 = vmatmul.bf16.gmra.mxu0 %v400
          %v505 = vpop.f32.mrf.mxu0
          %v506 = vadd.f32 0.0, %v505
          %v507 = vpop.f32.mrf.mxu0
          %v508 = vadd.f32 0.0, %v507
          %509 = vmatmul.bf16.gmra.mxu0 %v401
          %v510 = vpop.f32.mrf.mxu0
          %v511 = vadd.f32 0.0, %v510
          %v512 = vpop.f32.mrf.mxu0
          %v513 = vadd.f32 0.0, %v512
          %514 = vmatmul.bf16.gmra.mxu0 %v402
          %v515 = vpop.f32.mrf.mxu0
          %v516 = vadd.f32 0.0, %v515
          %v517 = vpop.f32.mrf.mxu0
          %v518 = vadd.f32 0.0, %v517
          %519 = vmatmul.bf16.gmra.mxu0 %v403
          %v520 = vpop.f32.mrf.mxu0
          %v521 = vadd.f32 0.0, %v520
          %v522 = vpop.f32.mrf.mxu0
          %v523 = vadd.f32 0.0, %v522
          %524 = vmatmul.bf16.gmra.mxu0 %v404
          %v525 = vpop.f32.mrf.mxu0
          %v526 = vadd.f32 0.0, %v525
          %v527 = vpop.f32.mrf.mxu0
          %v528 = vadd.f32 0.0, %v527
          %529 = vmatmul.bf16.gmra.mxu0 %v405
          %v530 = vpop.f32.mrf.mxu0
          %v531 = vadd.f32 0.0, %v530
          %v532 = vpop.f32.mrf.mxu0
          %v533 = vadd.f32 0.0, %v532
          %534 = vmatmul.bf16.gmra.mxu0 %v406
          %v535 = vpop.f32.mrf.mxu0
          %v536 = vadd.f32 0.0, %v535
          %v537 = vpop.f32.mrf.mxu0
          %v538 = vadd.f32 0.0, %v537
          %539 = vmatmul.bf16.gmra.mxu0 %v407
          %v540 = vpop.f32.mrf.mxu0
          %v541 = vadd.f32 0.0, %v540
          %v542 = vpop.f32.mrf.mxu0
          %v543 = vadd.f32 0.0, %v542
          %544 = vmatmul.bf16.gmra.mxu0 %v408
          %v545 = vpop.f32.mrf.mxu0
          %v546 = vadd.f32 0.0, %v545
          %v547 = vpop.f32.mrf.mxu0
          %v548 = vadd.f32 0.0, %v547
          %549 = vmatmul.bf16.gmra.mxu0 %v409
          %v550 = vpop.f32.mrf.mxu0
          %v551 = vadd.f32 0.0, %v550
          %v552 = vpop.f32.mrf.mxu0
          %v553 = vadd.f32 0.0, %v552
          %554 = vmatmul.bf16.gmra.mxu0 %v410
          %v555 = vpop.f32.mrf.mxu0
          %v556 = vadd.f32 0.0, %v555
          %v557 = vpop.f32.mrf.mxu0
          %v558 = vadd.f32 0.0, %v557
          %559 = vmatmul.bf16.gmra.mxu0 %v411
          %v560 = vpop.f32.mrf.mxu0
          %v561 = vadd.f32 0.0, %v560
          %v562 = vpop.f32.mrf.mxu0
          %v563 = vadd.f32 0.0, %v562
          %564 = vmatmul.bf16.gmra.mxu0 %v412
          %v565 = vpop.f32.mrf.mxu0
          %v566 = vadd.f32 0.0, %v565
          %v567 = vpop.f32.mrf.mxu0
          %v568 = vadd.f32 0.0, %v567
          %569 = vdwg.mxu0
          %570 = vst [vmem:[#allocation3] sm:$0xff] %v491
          %571 = vst [vmem:[#allocation3 + $0x8] sm:$0xff] %v493
          %572 = vst [vmem:[#allocation3 + $0x10] sm:$0xff] %v496
          %573 = vst [vmem:[#allocation3 + $0x18] sm:$0xff] %v498
          %574 = vst [vmem:[#allocation3 + $0x20] sm:$0xff] %v501
          %575 = vst [vmem:[#allocation3 + $0x28] sm:$0xff] %v503
          %576 = vst [vmem:[#allocation3 + $0x30] sm:$0xff] %v506
          %577 = vst [vmem:[#allocation3 + $0x38] sm:$0xff] %v508
          %578 = vst [vmem:[#allocation3 + $0x40] sm:$0xff] %v511
          %579 = vst [vmem:[#allocation3 + $0x48] sm:$0xff] %v513
          %580 = vst [vmem:[#allocation3 + $0x50] sm:$0xff] %v516
          %581 = vst [vmem:[#allocation3 + $0x58] sm:$0xff] %v518
          %582 = vst [vmem:[#allocation3 + $0x60] sm:$0xff] %v521
          %583 = vst [vmem:[#allocation3 + $0x68] sm:$0xff] %v523
          %584 = vst [vmem:[#allocation3 + $0x70] sm:$0xff] %v526
          %585 = vst [vmem:[#allocation3 + $0x78] sm:$0xff] %v528
          %586 = vst [vmem:[#allocation3 + $0x80] sm:$0xff] %v531
          %587 = vst [vmem:[#allocation3 + $0x88] sm:$0xff] %v533
          %588 = vst [vmem:[#allocation3 + $0x90] sm:$0xff] %v536
          %589 = vst [vmem:[#allocation3 + $0x98] sm:$0xff] %v538
          %590 = vst [vmem:[#allocation3 + $0xa0] sm:$0xff] %v541
          %591 = vst [vmem:[#allocation3 + $0xa8] sm:$0xff] %v543
          %592 = vst [vmem:[#allocation3 + $0xb0] sm:$0xff] %v546
          %593 = vst [vmem:[#allocation3 + $0xb8] sm:$0xff] %v548
          %594 = vst [vmem:[#allocation3 + $0xc0] sm:$0xff] %v551
          %595 = vst [vmem:[#allocation3 + $0xc8] sm:$0xff] %v553
          %596 = vst [vmem:[#allocation3 + $0xd0] sm:$0xff] %v556
          %597 = vst [vmem:[#allocation3 + $0xd8] sm:$0xff] %v558
          %598 = vst [vmem:[#allocation3 + $0xe0] sm:$0xff] %v561
          %599 = vst [vmem:[#allocation3 + $0xe8] sm:$0xff] %v563
          %600 = vst [vmem:[#allocation3 + $0xf0] sm:$0xff] %v566
          %601 = vst [vmem:[#allocation3 + $0xf8] sm:$0xff] %v568
          %v602 = vld [vmem:[#allocation2 + $0x1] sm:$0xff]
          %v603 = vld [vmem:[#allocation2 + $0x9] sm:$0xff]
          %v604 = vld [vmem:[#allocation2 + $0x19] sm:$0xff]
          %v605 = vld [vmem:[#allocation2 + $0x21] sm:$0xff]
          %v606 = vld [vmem:[#allocation2 + $0x31] sm:$0xff]
          %v607 = vld [vmem:[#allocation2 + $0x39] sm:$0xff]
          %v608 = vld [vmem:[#allocation2 + $0x49] sm:$0xff]
          %v609 = vld [vmem:[#allocation2 + $0x51] sm:$0xff]
          %v610 = vld [vmem:[#allocation2 + $0x61] sm:$0xff]
          %v611 = vld [vmem:[#allocation2 + $0x69] sm:$0xff]
          %v612 = vld [vmem:[#allocation2 + $0x79] sm:$0xff]
          %v613 = vld [vmem:[#allocation2 + $0x81] sm:$0xff]
          %v614 = vld [vmem:[#allocation2 + $0x91] sm:$0xff]
          %v615 = vld [vmem:[#allocation2 + $0x99] sm:$0xff]
          %v616 = vld [vmem:[#allocation2 + $0xa9] sm:$0xff]
          %v617 = vld [vmem:[#allocation2 + $0xb1] sm:$0xff]
          %v618 = vld [vmem:[#allocation2 + $0xc1] sm:$0xff]
          %v619 = vld [vmem:[#allocation2 + $0xc9] sm:$0xff]
          %v620 = vld [vmem:[#allocation2 + $0xd9] sm:$0xff]
          %v621 = vld [vmem:[#allocation2 + $0xe1] sm:$0xff]
          %v622 = vld [vmem:[#allocation2 + $0xf1] sm:$0xff]
          %v623 = vld [vmem:[#allocation2 + $0xf9] sm:$0xff]
          %v624 = vld [vmem:[#allocation2 + $0x109] sm:$0xff]
          %v625 = vld [vmem:[#allocation2 + $0x111] sm:$0xff]
          %v626 = vld [vmem:[#allocation2 + $0x121] sm:$0xff]
          %v627 = vld [vmem:[#allocation2 + $0x129] sm:$0xff]
          %v628 = vld [vmem:[#allocation2 + $0x139] sm:$0xff]
          %v629 = vld [vmem:[#allocation2 + $0x141] sm:$0xff]
          %v630 = vld [vmem:[#allocation2 + $0x151] sm:$0xff]
          %v631 = vld [vmem:[#allocation2 + $0x159] sm:$0xff]
          %v632 = vld [vmem:[#allocation2 + $0x169] sm:$0xff]
          %v633 = vld [vmem:[#allocation2 + $0x171] sm:$0xff]
          %v634 = vpack.c.bf16 %v603, %v602
          %v635 = vpack.c.bf16 %v605, %v604
          %v636 = vpack.c.bf16 %v607, %v606
          %v637 = vpack.c.bf16 %v609, %v608
          %v638 = vpack.c.bf16 %v611, %v610
          %v639 = vpack.c.bf16 %v613, %v612
          %v640 = vpack.c.bf16 %v615, %v614
          %v641 = vpack.c.bf16 %v617, %v616
          %v642 = vpack.c.bf16 %v619, %v618
          %v643 = vpack.c.bf16 %v621, %v620
          %v644 = vpack.c.bf16 %v623, %v622
          %v645 = vpack.c.bf16 %v625, %v624
          %v646 = vpack.c.bf16 %v627, %v626
          %v647 = vpack.c.bf16 %v629, %v628
          %v648 = vpack.c.bf16 %v631, %v630
          %v649 = vpack.c.bf16 %v633, %v632
          %s650 = sadd.s32 %s413, 1
          %s651 = smul.u32 %s650, 16
          %s652 = smul.addr %s651, 4
          %s653 = scalar_lea.vmem %s1, %s652
          %v654 = vld [vmem:[%s653] sm:$0xf]
          %v655 = vld [vmem:[%s653 + $0x4] sm:$0xf]
          %v656 = vld [vmem:[%s653 + $0x8] sm:$0xf]
          %v657 = vld [vmem:[%s653 + $0xc] sm:$0xf]
          %v658 = vld [vmem:[%s653 + $0x10] sm:$0xf]
          %v659 = vld [vmem:[%s653 + $0x14] sm:$0xf]
          %v660 = vld [vmem:[%s653 + $0x18] sm:$0xf]
          %v661 = vld [vmem:[%s653 + $0x1c] sm:$0xf]
          %v662 = vld [vmem:[%s653 + $0x20] sm:$0xf]
          %v663 = vld [vmem:[%s653 + $0x24] sm:$0xf]
          %v664 = vld [vmem:[%s653 + $0x28] sm:$0xf]
          %v665 = vld [vmem:[%s653 + $0x2c] sm:$0xf]
          %v666 = vld [vmem:[%s653 + $0x30] sm:$0xf]
          %v667 = vld [vmem:[%s653 + $0x34] sm:$0xf]
          %v668 = vld [vmem:[%s653 + $0x38] sm:$0xf]
          %v669 = vld [vmem:[%s653 + $0x3c] sm:$0xf]
          %v686 = vunpack.c.l.b16 %v654
          %v687 = vunpack.c.l.b16 %v655
          %v688 = vunpack.c.l.b16 %v656
          %v689 = vunpack.c.l.b16 %v657
          %v690 = vunpack.c.l.b16 %v658
          %v691 = vunpack.c.l.b16 %v659
          %v692 = vunpack.c.l.b16 %v660
          %v693 = vunpack.c.l.b16 %v661
          %v694 = vunpack.c.l.b16 %v662
          %v695 = vunpack.c.l.b16 %v663
          %v696 = vunpack.c.l.b16 %v664
          %v697 = vunpack.c.l.b16 %v665
          %v698 = vunpack.c.l.b16 %v666
          %v699 = vunpack.c.l.b16 %v667
          %v700 = vunpack.c.l.b16 %v668
          %v701 = vunpack.c.l.b16 %v669
          %v702 = vpack.c.b16 %v687, %v686
          %v703 = vpack.c.b16 %v689, %v688
          %v704 = vpack.c.b16 %v691, %v690
          %v705 = vpack.c.b16 %v693, %v692
          %v706 = vpack.c.b16 %v695, %v694
          %v707 = vpack.c.b16 %v697, %v696
          %v708 = vpack.c.b16 %v699, %v698
          %v709 = vpack.c.b16 %v701, %v700
          %718 = vmatpush.bf16.msra.mxu0 %v709
          %719 = vmatpush.bf16.msra.mxu0 %v708
          %720 = vmatpush.bf16.msra.mxu0 %v707
          %721 = vmatpush.bf16.msra.mxu0 %v706
          %722 = vmatpush.bf16.msra.mxu0 %v705
          %723 = vmatpush.bf16.msra.mxu0 %v704
          %724 = vmatpush.bf16.msra.mxu0 %v703
          %725 = vmatpush.bf16.msra.mxu0 %v702
          %726 = vmatmul.bf16.gmra.mxu0 %v634
          %v727 = vpop.f32.mrf.mxu0
          %v728 = vadd.f32 0.0, %v727
          %v729 = vpop.f32.mrf.mxu0
          %v730 = vadd.f32 0.0, %v729
          %731 = vmatmul.bf16.gmra.mxu0 %v635
          %v732 = vpop.f32.mrf.mxu0
          %v733 = vadd.f32 0.0, %v732
          %v734 = vpop.f32.mrf.mxu0
          %v735 = vadd.f32 0.0, %v734
          %736 = vmatmul.bf16.gmra.mxu0 %v636
          %v737 = vpop.f32.mrf.mxu0
          %v738 = vadd.f32 0.0, %v737
          %v739 = vpop.f32.mrf.mxu0
          %v740 = vadd.f32 0.0, %v739
          %741 = vmatmul.bf16.gmra.mxu0 %v637
          %v742 = vpop.f32.mrf.mxu0
          %v743 = vadd.f32 0.0, %v742
          %v744 = vpop.f32.mrf.mxu0
          %v745 = vadd.f32 0.0, %v744
          %746 = vmatmul.bf16.gmra.mxu0 %v638
          %v747 = vpop.f32.mrf.mxu0
          %v748 = vadd.f32 0.0, %v747
          %v749 = vpop.f32.mrf.mxu0
          %v750 = vadd.f32 0.0, %v749
          %751 = vmatmul.bf16.gmra.mxu0 %v639
          %v752 = vpop.f32.mrf.mxu0
          %v753 = vadd.f32 0.0, %v752
          %v754 = vpop.f32.mrf.mxu0
          %v755 = vadd.f32 0.0, %v754
          %756 = vmatmul.bf16.gmra.mxu0 %v640
          %v757 = vpop.f32.mrf.mxu0
          %v758 = vadd.f32 0.0, %v757
          %v759 = vpop.f32.mrf.mxu0
          %v760 = vadd.f32 0.0, %v759
          %761 = vmatmul.bf16.gmra.mxu0 %v641
          %v762 = vpop.f32.mrf.mxu0
          %v763 = vadd.f32 0.0, %v762
          %v764 = vpop.f32.mrf.mxu0
          %v765 = vadd.f32 0.0, %v764
          %766 = vmatmul.bf16.gmra.mxu0 %v642
          %v767 = vpop.f32.mrf.mxu0
          %v768 = vadd.f32 0.0, %v767
          %v769 = vpop.f32.mrf.mxu0
          %v770 = vadd.f32 0.0, %v769
          %771 = vmatmul.bf16.gmra.mxu0 %v643
          %v772 = vpop.f32.mrf.mxu0
          %v773 = vadd.f32 0.0, %v772
          %v774 = vpop.f32.mrf.mxu0
          %v775 = vadd.f32 0.0, %v774
          %776 = vmatmul.bf16.gmra.mxu0 %v644
          %v777 = vpop.f32.mrf.mxu0
          %v778 = vadd.f32 0.0, %v777
          %v779 = vpop.f32.mrf.mxu0
          %v780 = vadd.f32 0.0, %v779
          %781 = vmatmul.bf16.gmra.mxu0 %v645
          %v782 = vpop.f32.mrf.mxu0
          %v783 = vadd.f32 0.0, %v782
          %v784 = vpop.f32.mrf.mxu0
          %v785 = vadd.f32 0.0, %v784
          %786 = vmatmul.bf16.gmra.mxu0 %v646
          %v787 = vpop.f32.mrf.mxu0
          %v788 = vadd.f32 0.0, %v787
          %v789 = vpop.f32.mrf.mxu0
          %v790 = vadd.f32 0.0, %v789
          %791 = vmatmul.bf16.gmra.mxu0 %v647
          %v792 = vpop.f32.mrf.mxu0
          %v793 = vadd.f32 0.0, %v792
          %v794 = vpop.f32.mrf.mxu0
          %v795 = vadd.f32 0.0, %v794
          %796 = vmatmul.bf16.gmra.mxu0 %v648
          %v797 = vpop.f32.mrf.mxu0
          %v798 = vadd.f32 0.0, %v797
          %v799 = vpop.f32.mrf.mxu0
          %v800 = vadd.f32 0.0, %v799
          %801 = vmatmul.bf16.gmra.mxu0 %v649
          %v802 = vpop.f32.mrf.mxu0
          %v803 = vadd.f32 0.0, %v802
          %v804 = vpop.f32.mrf.mxu0
          %v805 = vadd.f32 0.0, %v804
          %806 = vdwg.mxu0
          %v807 = vld [vmem:[#allocation3] sm:$0xff]
          %v808 = vld [vmem:[#allocation3 + $0x8] sm:$0xff]
          %v809 = vld [vmem:[#allocation3 + $0x10] sm:$0xff]
          %v810 = vld [vmem:[#allocation3 + $0x18] sm:$0xff]
          %v811 = vld [vmem:[#allocation3 + $0x20] sm:$0xff]
          %v812 = vld [vmem:[#allocation3 + $0x28] sm:$0xff]
          %v813 = vld [vmem:[#allocation3 + $0x30] sm:$0xff]
          %v814 = vld [vmem:[#allocation3 + $0x38] sm:$0xff]
          %v815 = vld [vmem:[#allocation3 + $0x40] sm:$0xff]
          %v816 = vld [vmem:[#allocation3 + $0x48] sm:$0xff]
          %v817 = vld [vmem:[#allocation3 + $0x50] sm:$0xff]
          %v818 = vld [vmem:[#allocation3 + $0x58] sm:$0xff]
          %v819 = vld [vmem:[#allocation3 + $0x60] sm:$0xff]
          %v820 = vld [vmem:[#allocation3 + $0x68] sm:$0xff]
          %v821 = vld [vmem:[#allocation3 + $0x70] sm:$0xff]
          %v822 = vld [vmem:[#allocation3 + $0x78] sm:$0xff]
          %v823 = vld [vmem:[#allocation3 + $0x80] sm:$0xff]
          %v824 = vld [vmem:[#allocation3 + $0x88] sm:$0xff]
          %v825 = vld [vmem:[#allocation3 + $0x90] sm:$0xff]
          %v826 = vld [vmem:[#allocation3 + $0x98] sm:$0xff]
          %v827 = vld [vmem:[#allocation3 + $0xa0] sm:$0xff]
          %v828 = vld [vmem:[#allocation3 + $0xa8] sm:$0xff]
          %v829 = vld [vmem:[#allocation3 + $0xb0] sm:$0xff]
          %v830 = vld [vmem:[#allocation3 + $0xb8] sm:$0xff]
          %v831 = vld [vmem:[#allocation3 + $0xc0] sm:$0xff]
          %v832 = vld [vmem:[#allocation3 + $0xc8] sm:$0xff]
          %v833 = vld [vmem:[#allocation3 + $0xd0] sm:$0xff]
          %v834 = vld [vmem:[#allocation3 + $0xd8] sm:$0xff]
          %v835 = vld [vmem:[#allocation3 + $0xe0] sm:$0xff]
          %v836 = vld [vmem:[#allocation3 + $0xe8] sm:$0xff]
          %v837 = vld [vmem:[#allocation3 + $0xf0] sm:$0xff]
          %v838 = vld [vmem:[#allocation3 + $0xf8] sm:$0xff]
          %v839 = vadd.f32 %v807, %v728
          %v840 = vadd.f32 %v808, %v730
          %v841 = vadd.f32 %v809, %v733
          %v842 = vadd.f32 %v810, %v735
          %v843 = vadd.f32 %v811, %v738
          %v844 = vadd.f32 %v812, %v740
          %v845 = vadd.f32 %v813, %v743
          %v846 = vadd.f32 %v814, %v745
          %v847 = vadd.f32 %v815, %v748
          %v848 = vadd.f32 %v816, %v750
          %v849 = vadd.f32 %v817, %v753
          %v850 = vadd.f32 %v818, %v755
          %v851 = vadd.f32 %v819, %v758
          %v852 = vadd.f32 %v820, %v760
          %v853 = vadd.f32 %v821, %v763
          %v854 = vadd.f32 %v822, %v765
          %v855 = vadd.f32 %v823, %v768
          %v856 = vadd.f32 %v824, %v770
          %v857 = vadd.f32 %v825, %v773
          %v858 = vadd.f32 %v826, %v775
          %v859 = vadd.f32 %v827, %v778
          %v860 = vadd.f32 %v828, %v780
          %v861 = vadd.f32 %v829, %v783
          %v862 = vadd.f32 %v830, %v785
          %v863 = vadd.f32 %v831, %v788
          %v864 = vadd.f32 %v832, %v790
          %v865 = vadd.f32 %v833, %v793
          %v866 = vadd.f32 %v834, %v795
          %v867 = vadd.f32 %v835, %v798
          %v868 = vadd.f32 %v836, %v800
          %v869 = vadd.f32 %v837, %v803
          %v870 = vadd.f32 %v838, %v805
          %871 = vst [vmem:[#allocation3] sm:$0xff] %v839
          %872 = vst [vmem:[#allocation3 + $0x8] sm:$0xff] %v840
          %873 = vst [vmem:[#allocation3 + $0x10] sm:$0xff] %v841
          %874 = vst [vmem:[#allocation3 + $0x18] sm:$0xff] %v842
          %875 = vst [vmem:[#allocation3 + $0x20] sm:$0xff] %v843
          %876 = vst [vmem:[#allocation3 + $0x28] sm:$0xff] %v844
          %877 = vst [vmem:[#allocation3 + $0x30] sm:$0xff] %v845
          %878 = vst [vmem:[#allocation3 + $0x38] sm:$0xff] %v846
          %879 = vst [vmem:[#allocation3 + $0x40] sm:$0xff] %v847
          %880 = vst [vmem:[#allocation3 + $0x48] sm:$0xff] %v848
          %881 = vst [vmem:[#allocation3 + $0x50] sm:$0xff] %v849
          %882 = vst [vmem:[#allocation3 + $0x58] sm:$0xff] %v850
          %883 = vst [vmem:[#allocation3 + $0x60] sm:$0xff] %v851
          %884 = vst [vmem:[#allocation3 + $0x68] sm:$0xff] %v852
          %885 = vst [vmem:[#allocation3 + $0x70] sm:$0xff] %v853
          %886 = vst [vmem:[#allocation3 + $0x78] sm:$0xff] %v854
          %887 = vst [vmem:[#allocation3 + $0x80] sm:$0xff] %v855
          %888 = vst [vmem:[#allocation3 + $0x88] sm:$0xff] %v856
          %889 = vst [vmem:[#allocation3 + $0x90] sm:$0xff] %v857
          %890 = vst [vmem:[#allocation3 + $0x98] sm:$0xff] %v858
          %891 = vst [vmem:[#allocation3 + $0xa0] sm:$0xff] %v859
          %892 = vst [vmem:[#allocation3 + $0xa8] sm:$0xff] %v860
          %893 = vst [vmem:[#allocation3 + $0xb0] sm:$0xff] %v861
          %894 = vst [vmem:[#allocation3 + $0xb8] sm:$0xff] %v862
          %895 = vst [vmem:[#allocation3 + $0xc0] sm:$0xff] %v863
          %896 = vst [vmem:[#allocation3 + $0xc8] sm:$0xff] %v864
          %897 = vst [vmem:[#allocation3 + $0xd0] sm:$0xff] %v865
          %898 = vst [vmem:[#allocation3 + $0xd8] sm:$0xff] %v866
          %899 = vst [vmem:[#allocation3 + $0xe0] sm:$0xff] %v867
          %900 = vst [vmem:[#allocation3 + $0xe8] sm:$0xff] %v868
          %901 = vst [vmem:[#allocation3 + $0xf0] sm:$0xff] %v869
          %902 = vst [vmem:[#allocation3 + $0xf8] sm:$0xff] %v870
          %v903 = vld [vmem:[#allocation2 + $0x2] sm:$0xff]
          %v904 = vld [vmem:[#allocation2 + $0xa] sm:$0xff]
          %v905 = vld [vmem:[#allocation2 + $0x1a] sm:$0xff]
          %v906 = vld [vmem:[#allocation2 + $0x22] sm:$0xff]
          %v907 = vld [vmem:[#allocation2 + $0x32] sm:$0xff]
          %v908 = vld [vmem:[#allocation2 + $0x3a] sm:$0xff]
          %v909 = vld [vmem:[#allocation2 + $0x4a] sm:$0xff]
          %v910 = vld [vmem:[#allocation2 + $0x52] sm:$0xff]
          %v911 = vld [vmem:[#allocation2 + $0x62] sm:$0xff]
          %v912 = vld [vmem:[#allocation2 + $0x6a] sm:$0xff]
          %v913 = vld [vmem:[#allocation2 + $0x7a] sm:$0xff]
          %v914 = vld [vmem:[#allocation2 + $0x82] sm:$0xff]
          %v915 = vld [vmem:[#allocation2 + $0x92] sm:$0xff]
          %v916 = vld [vmem:[#allocation2 + $0x9a] sm:$0xff]
          %v917 = vld [vmem:[#allocation2 + $0xaa] sm:$0xff]
          %v918 = vld [vmem:[#allocation2 + $0xb2] sm:$0xff]
          %v919 = vld [vmem:[#allocation2 + $0xc2] sm:$0xff]
          %v920 = vld [vmem:[#allocation2 + $0xca] sm:$0xff]
          %v921 = vld [vmem:[#allocation2 + $0xda] sm:$0xff]
          %v922 = vld [vmem:[#allocation2 + $0xe2] sm:$0xff]
          %v923 = vld [vmem:[#allocation2 + $0xf2] sm:$0xff]
          %v924 = vld [vmem:[#allocation2 + $0xfa] sm:$0xff]
          %v925 = vld [vmem:[#allocation2 + $0x10a] sm:$0xff]
          %v926 = vld [vmem:[#allocation2 + $0x112] sm:$0xff]
          %v927 = vld [vmem:[#allocation2 + $0x122] sm:$0xff]
          %v928 = vld [vmem:[#allocation2 + $0x12a] sm:$0xff]
          %v929 = vld [vmem:[#allocation2 + $0x13a] sm:$0xff]
          %v930 = vld [vmem:[#allocation2 + $0x142] sm:$0xff]
          %v931 = vld [vmem:[#allocation2 + $0x152] sm:$0xff]
          %v932 = vld [vmem:[#allocation2 + $0x15a] sm:$0xff]
          %v933 = vld [vmem:[#allocation2 + $0x16a] sm:$0xff]
          %v934 = vld [vmem:[#allocation2 + $0x172] sm:$0xff]
          %v935 = vpack.c.bf16 %v904, %v903
          %v936 = vpack.c.bf16 %v906, %v905
          %v937 = vpack.c.bf16 %v908, %v907
          %v938 = vpack.c.bf16 %v910, %v909
          %v939 = vpack.c.bf16 %v912, %v911
          %v940 = vpack.c.bf16 %v914, %v913
          %v941 = vpack.c.bf16 %v916, %v915
          %v942 = vpack.c.bf16 %v918, %v917
          %v943 = vpack.c.bf16 %v920, %v919
          %v944 = vpack.c.bf16 %v922, %v921
          %v945 = vpack.c.bf16 %v924, %v923
          %v946 = vpack.c.bf16 %v926, %v925
          %v947 = vpack.c.bf16 %v928, %v927
          %v948 = vpack.c.bf16 %v930, %v929
          %v949 = vpack.c.bf16 %v932, %v931
          %v950 = vpack.c.bf16 %v934, %v933
          %s951 = sadd.s32 %s413, 2
          %s952 = smul.u32 %s951, 16
          %s953 = smul.addr %s952, 4
          %s954 = scalar_lea.vmem %s1, %s953
          %v955 = vld [vmem:[%s954] sm:$0xf]
          %v956 = vld [vmem:[%s954 + $0x4] sm:$0xf]
          %v957 = vld [vmem:[%s954 + $0x8] sm:$0xf]
          %v958 = vld [vmem:[%s954 + $0xc] sm:$0xf]
          %v959 = vld [vmem:[%s954 + $0x10] sm:$0xf]
          %v960 = vld [vmem:[%s954 + $0x14] sm:$0xf]
          %v961 = vld [vmem:[%s954 + $0x18] sm:$0xf]
          %v962 = vld [vmem:[%s954 + $0x1c] sm:$0xf]
          %v963 = vld [vmem:[%s954 + $0x20] sm:$0xf]
          %v964 = vld [vmem:[%s954 + $0x24] sm:$0xf]
          %v965 = vld [vmem:[%s954 + $0x28] sm:$0xf]
          %v966 = vld [vmem:[%s954 + $0x2c] sm:$0xf]
          %v967 = vld [vmem:[%s954 + $0x30] sm:$0xf]
          %v968 = vld [vmem:[%s954 + $0x34] sm:$0xf]
          %v969 = vld [vmem:[%s954 + $0x38] sm:$0xf]
          %v970 = vld [vmem:[%s954 + $0x3c] sm:$0xf]
          %v987 = vunpack.c.l.b16 %v955
          %v988 = vunpack.c.l.b16 %v956
          %v989 = vunpack.c.l.b16 %v957
          %v990 = vunpack.c.l.b16 %v958
          %v991 = vunpack.c.l.b16 %v959
          %v992 = vunpack.c.l.b16 %v960
          %v993 = vunpack.c.l.b16 %v961
          %v994 = vunpack.c.l.b16 %v962
          %v995 = vunpack.c.l.b16 %v963
          %v996 = vunpack.c.l.b16 %v964
          %v997 = vunpack.c.l.b16 %v965
          %v998 = vunpack.c.l.b16 %v966
          %v999 = vunpack.c.l.b16 %v967
          %v1000 = vunpack.c.l.b16 %v968
          %v1001 = vunpack.c.l.b16 %v969
          %v1002 = vunpack.c.l.b16 %v970
          %v1003 = vpack.c.b16 %v988, %v987
          %v1004 = vpack.c.b16 %v990, %v989
          %v1005 = vpack.c.b16 %v992, %v991
          %v1006 = vpack.c.b16 %v994, %v993
          %v1007 = vpack.c.b16 %v996, %v995
          %v1008 = vpack.c.b16 %v998, %v997
          %v1009 = vpack.c.b16 %v1000, %v999
          %v1010 = vpack.c.b16 %v1002, %v1001
          %1019 = vmatpush.bf16.msra.mxu0 %v1010
          %1020 = vmatpush.bf16.msra.mxu0 %v1009
          %1021 = vmatpush.bf16.msra.mxu0 %v1008
          %1022 = vmatpush.bf16.msra.mxu0 %v1007
          %1023 = vmatpush.bf16.msra.mxu0 %v1006
          %1024 = vmatpush.bf16.msra.mxu0 %v1005
          %1025 = vmatpush.bf16.msra.mxu0 %v1004
          %1026 = vmatpush.bf16.msra.mxu0 %v1003
          %1027 = vmatmul.bf16.gmra.mxu0 %v935
          %v1028 = vpop.f32.mrf.mxu0
          %v1029 = vadd.f32 0.0, %v1028
          %v1030 = vpop.f32.mrf.mxu0
          %v1031 = vadd.f32 0.0, %v1030
          %1032 = vmatmul.bf16.gmra.mxu0 %v936
          %v1033 = vpop.f32.mrf.mxu0
          %v1034 = vadd.f32 0.0, %v1033
          %v1035 = vpop.f32.mrf.mxu0
          %v1036 = vadd.f32 0.0, %v1035
          %1037 = vmatmul.bf16.gmra.mxu0 %v937
          %v1038 = vpop.f32.mrf.mxu0
          %v1039 = vadd.f32 0.0, %v1038
          %v1040 = vpop.f32.mrf.mxu0
          %v1041 = vadd.f32 0.0, %v1040
          %1042 = vmatmul.bf16.gmra.mxu0 %v938
          %v1043 = vpop.f32.mrf.mxu0
          %v1044 = vadd.f32 0.0, %v1043
          %v1045 = vpop.f32.mrf.mxu0
          %v1046 = vadd.f32 0.0, %v1045
          %1047 = vmatmul.bf16.gmra.mxu0 %v939
          %v1048 = vpop.f32.mrf.mxu0
          %v1049 = vadd.f32 0.0, %v1048
          %v1050 = vpop.f32.mrf.mxu0
          %v1051 = vadd.f32 0.0, %v1050
          %1052 = vmatmul.bf16.gmra.mxu0 %v940
          %v1053 = vpop.f32.mrf.mxu0
          %v1054 = vadd.f32 0.0, %v1053
          %v1055 = vpop.f32.mrf.mxu0
          %v1056 = vadd.f32 0.0, %v1055
          %1057 = vmatmul.bf16.gmra.mxu0 %v941
          %v1058 = vpop.f32.mrf.mxu0
          %v1059 = vadd.f32 0.0, %v1058
          %v1060 = vpop.f32.mrf.mxu0
          %v1061 = vadd.f32 0.0, %v1060
          %1062 = vmatmul.bf16.gmra.mxu0 %v942
          %v1063 = vpop.f32.mrf.mxu0
          %v1064 = vadd.f32 0.0, %v1063
          %v1065 = vpop.f32.mrf.mxu0
          %v1066 = vadd.f32 0.0, %v1065
          %1067 = vmatmul.bf16.gmra.mxu0 %v943
          %v1068 = vpop.f32.mrf.mxu0
          %v1069 = vadd.f32 0.0, %v1068
          %v1070 = vpop.f32.mrf.mxu0
          %v1071 = vadd.f32 0.0, %v1070
          %1072 = vmatmul.bf16.gmra.mxu0 %v944
          %v1073 = vpop.f32.mrf.mxu0
          %v1074 = vadd.f32 0.0, %v1073
          %v1075 = vpop.f32.mrf.mxu0
          %v1076 = vadd.f32 0.0, %v1075
          %1077 = vmatmul.bf16.gmra.mxu0 %v945
          %v1078 = vpop.f32.mrf.mxu0
          %v1079 = vadd.f32 0.0, %v1078
          %v1080 = vpop.f32.mrf.mxu0
          %v1081 = vadd.f32 0.0, %v1080
          %1082 = vmatmul.bf16.gmra.mxu0 %v946
          %v1083 = vpop.f32.mrf.mxu0
          %v1084 = vadd.f32 0.0, %v1083
          %v1085 = vpop.f32.mrf.mxu0
          %v1086 = vadd.f32 0.0, %v1085
          %1087 = vmatmul.bf16.gmra.mxu0 %v947
          %v1088 = vpop.f32.mrf.mxu0
          %v1089 = vadd.f32 0.0, %v1088
          %v1090 = vpop.f32.mrf.mxu0
          %v1091 = vadd.f32 0.0, %v1090
          %1092 = vmatmul.bf16.gmra.mxu0 %v948
          %v1093 = vpop.f32.mrf.mxu0
          %v1094 = vadd.f32 0.0, %v1093
          %v1095 = vpop.f32.mrf.mxu0
          %v1096 = vadd.f32 0.0, %v1095
          %1097 = vmatmul.bf16.gmra.mxu0 %v949
          %v1098 = vpop.f32.mrf.mxu0
          %v1099 = vadd.f32 0.0, %v1098
          %v1100 = vpop.f32.mrf.mxu0
          %v1101 = vadd.f32 0.0, %v1100
          %1102 = vmatmul.bf16.gmra.mxu0 %v950
          %v1103 = vpop.f32.mrf.mxu0
          %v1104 = vadd.f32 0.0, %v1103
          %v1105 = vpop.f32.mrf.mxu0
          %v1106 = vadd.f32 0.0, %v1105
          %1107 = vdwg.mxu0
          %v1108 = vld [vmem:[#allocation3] sm:$0xff]
          %v1109 = vld [vmem:[#allocation3 + $0x8] sm:$0xff]
          %v1110 = vld [vmem:[#allocation3 + $0x10] sm:$0xff]
          %v1111 = vld [vmem:[#allocation3 + $0x18] sm:$0xff]
          %v1112 = vld [vmem:[#allocation3 + $0x20] sm:$0xff]
          %v1113 = vld [vmem:[#allocation3 + $0x28] sm:$0xff]
          %v1114 = vld [vmem:[#allocation3 + $0x30] sm:$0xff]
          %v1115 = vld [vmem:[#allocation3 + $0x38] sm:$0xff]
          %v1116 = vld [vmem:[#allocation3 + $0x40] sm:$0xff]
          %v1117 = vld [vmem:[#allocation3 + $0x48] sm:$0xff]
          %v1118 = vld [vmem:[#allocation3 + $0x50] sm:$0xff]
          %v1119 = vld [vmem:[#allocation3 + $0x58] sm:$0xff]
          %v1120 = vld [vmem:[#allocation3 + $0x60] sm:$0xff]
          %v1121 = vld [vmem:[#allocation3 + $0x68] sm:$0xff]
          %v1122 = vld [vmem:[#allocation3 + $0x70] sm:$0xff]
          %v1123 = vld [vmem:[#allocation3 + $0x78] sm:$0xff]
          %v1124 = vld [vmem:[#allocation3 + $0x80] sm:$0xff]
          %v1125 = vld [vmem:[#allocation3 + $0x88] sm:$0xff]
          %v1126 = vld [vmem:[#allocation3 + $0x90] sm:$0xff]
          %v1127 = vld [vmem:[#allocation3 + $0x98] sm:$0xff]
          %v1128 = vld [vmem:[#allocation3 + $0xa0] sm:$0xff]
          %v1129 = vld [vmem:[#allocation3 + $0xa8] sm:$0xff]
          %v1130 = vld [vmem:[#allocation3 + $0xb0] sm:$0xff]
          %v1131 = vld [vmem:[#allocation3 + $0xb8] sm:$0xff]
          %v1132 = vld [vmem:[#allocation3 + $0xc0] sm:$0xff]
          %v1133 = vld [vmem:[#allocation3 + $0xc8] sm:$0xff]
          %v1134 = vld [vmem:[#allocation3 + $0xd0] sm:$0xff]
          %v1135 = vld [vmem:[#allocation3 + $0xd8] sm:$0xff]
          %v1136 = vld [vmem:[#allocation3 + $0xe0] sm:$0xff]
          %v1137 = vld [vmem:[#allocation3 + $0xe8] sm:$0xff]
          %v1138 = vld [vmem:[#allocation3 + $0xf0] sm:$0xff]
          %v1139 = vld [vmem:[#allocation3 + $0xf8] sm:$0xff]
          %v1140 = vadd.f32 %v1108, %v1029
          %v1141 = vadd.f32 %v1109, %v1031
          %v1142 = vadd.f32 %v1110, %v1034
          %v1143 = vadd.f32 %v1111, %v1036
          %v1144 = vadd.f32 %v1112, %v1039
          %v1145 = vadd.f32 %v1113, %v1041
          %v1146 = vadd.f32 %v1114, %v1044
          %v1147 = vadd.f32 %v1115, %v1046
          %v1148 = vadd.f32 %v1116, %v1049
          %v1149 = vadd.f32 %v1117, %v1051
          %v1150 = vadd.f32 %v1118, %v1054
          %v1151 = vadd.f32 %v1119, %v1056
          %v1152 = vadd.f32 %v1120, %v1059
          %v1153 = vadd.f32 %v1121, %v1061
          %v1154 = vadd.f32 %v1122, %v1064
          %v1155 = vadd.f32 %v1123, %v1066
          %v1156 = vadd.f32 %v1124, %v1069
          %v1157 = vadd.f32 %v1125, %v1071
          %v1158 = vadd.f32 %v1126, %v1074
          %v1159 = vadd.f32 %v1127, %v1076
          %v1160 = vadd.f32 %v1128, %v1079
          %v1161 = vadd.f32 %v1129, %v1081
          %v1162 = vadd.f32 %v1130, %v1084
          %v1163 = vadd.f32 %v1131, %v1086
          %v1164 = vadd.f32 %v1132, %v1089
          %v1165 = vadd.f32 %v1133, %v1091
          %v1166 = vadd.f32 %v1134, %v1094
          %v1167 = vadd.f32 %v1135, %v1096
          %v1168 = vadd.f32 %v1136, %v1099
          %v1169 = vadd.f32 %v1137, %v1101
          %v1170 = vadd.f32 %v1138, %v1104
          %v1171 = vadd.f32 %v1139, %v1106
          %1172 = vst [vmem:[#allocation3] sm:$0xff] %v1140
          %1173 = vst [vmem:[#allocation3 + $0x8] sm:$0xff] %v1141
          %1174 = vst [vmem:[#allocation3 + $0x10] sm:$0xff] %v1142
          %1175 = vst [vmem:[#allocation3 + $0x18] sm:$0xff] %v1143
          %1176 = vst [vmem:[#allocation3 + $0x20] sm:$0xff] %v1144
          %1177 = vst [vmem:[#allocation3 + $0x28] sm:$0xff] %v1145
          %1178 = vst [vmem:[#allocation3 + $0x30] sm:$0xff] %v1146
          %1179 = vst [vmem:[#allocation3 + $0x38] sm:$0xff] %v1147
          %1180 = vst [vmem:[#allocation3 + $0x40] sm:$0xff] %v1148
          %1181 = vst [vmem:[#allocation3 + $0x48] sm:$0xff] %v1149
          %1182 = vst [vmem:[#allocation3 + $0x50] sm:$0xff] %v1150
          %1183 = vst [vmem:[#allocation3 + $0x58] sm:$0xff] %v1151
          %1184 = vst [vmem:[#allocation3 + $0x60] sm:$0xff] %v1152
          %1185 = vst [vmem:[#allocation3 + $0x68] sm:$0xff] %v1153
          %1186 = vst [vmem:[#allocation3 + $0x70] sm:$0xff] %v1154
          %1187 = vst [vmem:[#allocation3 + $0x78] sm:$0xff] %v1155
          %1188 = vst [vmem:[#allocation3 + $0x80] sm:$0xff] %v1156
          %1189 = vst [vmem:[#allocation3 + $0x88] sm:$0xff] %v1157
          %1190 = vst [vmem:[#allocation3 + $0x90] sm:$0xff] %v1158
          %1191 = vst [vmem:[#allocation3 + $0x98] sm:$0xff] %v1159
          %1192 = vst [vmem:[#allocation3 + $0xa0] sm:$0xff] %v1160
          %1193 = vst [vmem:[#allocation3 + $0xa8] sm:$0xff] %v1161
          %1194 = vst [vmem:[#allocation3 + $0xb0] sm:$0xff] %v1162
          %1195 = vst [vmem:[#allocation3 + $0xb8] sm:$0xff] %v1163
          %1196 = vst [vmem:[#allocation3 + $0xc0] sm:$0xff] %v1164
          %1197 = vst [vmem:[#allocation3 + $0xc8] sm:$0xff] %v1165
          %1198 = vst [vmem:[#allocation3 + $0xd0] sm:$0xff] %v1166
          %1199 = vst [vmem:[#allocation3 + $0xd8] sm:$0xff] %v1167
          %1200 = vst [vmem:[#allocation3 + $0xe0] sm:$0xff] %v1168
          %1201 = vst [vmem:[#allocation3 + $0xe8] sm:$0xff] %v1169
          %1202 = vst [vmem:[#allocation3 + $0xf0] sm:$0xff] %v1170
          %1203 = vst [vmem:[#allocation3 + $0xf8] sm:$0xff] %v1171
          %v1204 = vld [vmem:[%s176] sm:$0xff]
          %v1205 = vld [vmem:[%s176 + $0x8] sm:$0xff]
          %v1206 = vld [vmem:[%s176 + $0x18] sm:$0xff]
          %v1207 = vld [vmem:[%s176 + $0x20] sm:$0xff]
          %v1208 = vld [vmem:[%s176 + $0x30] sm:$0xff]
          %v1209 = vld [vmem:[%s176 + $0x38] sm:$0xff]
          %v1210 = vld [vmem:[%s176 + $0x48] sm:$0xff]
          %v1211 = vld [vmem:[%s176 + $0x50] sm:$0xff]
          %v1212 = vld [vmem:[%s176 + $0x60] sm:$0xff]
          %v1213 = vld [vmem:[%s176 + $0x68] sm:$0xff]
          %v1214 = vld [vmem:[%s176 + $0x78] sm:$0xff]
          %v1215 = vld [vmem:[%s176 + $0x80] sm:$0xff]
          %v1216 = vld [vmem:[%s176 + $0x90] sm:$0xff]
          %v1217 = vld [vmem:[%s176 + $0x98] sm:$0xff]
          %v1218 = vld [vmem:[%s176 + $0xa8] sm:$0xff]
          %v1219 = vld [vmem:[%s176 + $0xb0] sm:$0xff]
          %v1220 = vld [vmem:[%s176 + $0xc0] sm:$0xff]
          %v1221 = vld [vmem:[%s176 + $0xc8] sm:$0xff]
          %v1222 = vld [vmem:[%s176 + $0xd8] sm:$0xff]
          %v1223 = vld [vmem:[%s176 + $0xe0] sm:$0xff]
          %v1224 = vld [vmem:[%s176 + $0xf0] sm:$0xff]
          %v1225 = vld [vmem:[%s176 + $0xf8] sm:$0xff]
          %v1226 = vld [vmem:[%s176 + $0x108] sm:$0xff]
          %v1227 = vld [vmem:[%s176 + $0x110] sm:$0xff]
          %v1228 = vld [vmem:[%s176 + $0x120] sm:$0xff]
          %v1229 = vld [vmem:[%s176 + $0x128] sm:$0xff]
          %v1230 = vld [vmem:[%s176 + $0x138] sm:$0xff]
          %v1231 = vld [vmem:[%s176 + $0x140] sm:$0xff]
          %v1232 = vld [vmem:[%s176 + $0x150] sm:$0xff]
          %v1233 = vld [vmem:[%s176 + $0x158] sm:$0xff]
          %v1234 = vld [vmem:[%s176 + $0x168] sm:$0xff]
          %v1235 = vld [vmem:[%s176 + $0x170] sm:$0xff]
          %v1236 = vpack.c.bf16 %v1205, %v1204
          %v1237 = vpack.c.bf16 %v1207, %v1206
          %v1238 = vpack.c.bf16 %v1209, %v1208
          %v1239 = vpack.c.bf16 %v1211, %v1210
          %v1240 = vpack.c.bf16 %v1213, %v1212
          %v1241 = vpack.c.bf16 %v1215, %v1214
          %v1242 = vpack.c.bf16 %v1217, %v1216
          %v1243 = vpack.c.bf16 %v1219, %v1218
          %v1244 = vpack.c.bf16 %v1221, %v1220
          %v1245 = vpack.c.bf16 %v1223, %v1222
          %v1246 = vpack.c.bf16 %v1225, %v1224
          %v1247 = vpack.c.bf16 %v1227, %v1226
          %v1248 = vpack.c.bf16 %v1229, %v1228
          %v1249 = vpack.c.bf16 %v1231, %v1230
          %v1250 = vpack.c.bf16 %v1233, %v1232
          %v1251 = vpack.c.bf16 %v1235, %v1234
          %s1252 = sadd.s32 %s413, 3
          %s1253 = smul.u32 %s1252, 16
          %s1254 = smul.addr %s1253, 4
          %s1255 = scalar_lea.vmem %s1, %s1254
          %v1256 = vld [vmem:[%s1255] sm:$0xf]
          %v1257 = vld [vmem:[%s1255 + $0x4] sm:$0xf]
          %v1258 = vld [vmem:[%s1255 + $0x8] sm:$0xf]
          %v1259 = vld [vmem:[%s1255 + $0xc] sm:$0xf]
          %v1260 = vld [vmem:[%s1255 + $0x10] sm:$0xf]
          %v1261 = vld [vmem:[%s1255 + $0x14] sm:$0xf]
          %v1262 = vld [vmem:[%s1255 + $0x18] sm:$0xf]
          %v1263 = vld [vmem:[%s1255 + $0x1c] sm:$0xf]
          %v1264 = vld [vmem:[%s1255 + $0x20] sm:$0xf]
          %v1265 = vld [vmem:[%s1255 + $0x24] sm:$0xf]
          %v1266 = vld [vmem:[%s1255 + $0x28] sm:$0xf]
          %v1267 = vld [vmem:[%s1255 + $0x2c] sm:$0xf]
          %v1268 = vld [vmem:[%s1255 + $0x30] sm:$0xf]
          %v1269 = vld [vmem:[%s1255 + $0x34] sm:$0xf]
          %v1270 = vld [vmem:[%s1255 + $0x38] sm:$0xf]
          %v1271 = vld [vmem:[%s1255 + $0x3c] sm:$0xf]
          %v1288 = vunpack.c.l.b16 %v1256
          %v1289 = vunpack.c.l.b16 %v1257
          %v1290 = vunpack.c.l.b16 %v1258
          %v1291 = vunpack.c.l.b16 %v1259
          %v1292 = vunpack.c.l.b16 %v1260
          %v1293 = vunpack.c.l.b16 %v1261
          %v1294 = vunpack.c.l.b16 %v1262
          %v1295 = vunpack.c.l.b16 %v1263
          %v1296 = vunpack.c.l.b16 %v1264
          %v1297 = vunpack.c.l.b16 %v1265
          %v1298 = vunpack.c.l.b16 %v1266
          %v1299 = vunpack.c.l.b16 %v1267
          %v1300 = vunpack.c.l.b16 %v1268
          %v1301 = vunpack.c.l.b16 %v1269
          %v1302 = vunpack.c.l.b16 %v1270
          %v1303 = vunpack.c.l.b16 %v1271
          %v1304 = vpack.c.b16 %v1289, %v1288
          %v1305 = vpack.c.b16 %v1291, %v1290
          %v1306 = vpack.c.b16 %v1293, %v1292
          %v1307 = vpack.c.b16 %v1295, %v1294
          %v1308 = vpack.c.b16 %v1297, %v1296
          %v1309 = vpack.c.b16 %v1299, %v1298
          %v1310 = vpack.c.b16 %v1301, %v1300
          %v1311 = vpack.c.b16 %v1303, %v1302
          %1320 = vmatpush.bf16.msra.mxu0 %v1311
          %1321 = vmatpush.bf16.msra.mxu0 %v1310
          %1322 = vmatpush.bf16.msra.mxu0 %v1309
          %1323 = vmatpush.bf16.msra.mxu0 %v1308
          %1324 = vmatpush.bf16.msra.mxu0 %v1307
          %1325 = vmatpush.bf16.msra.mxu0 %v1306
          %1326 = vmatpush.bf16.msra.mxu0 %v1305
          %1327 = vmatpush.bf16.msra.mxu0 %v1304
          %1328 = vmatmul.bf16.gmra.mxu0 %v1236
          %v1329 = vpop.f32.mrf.mxu0
          %v1330 = vadd.f32 0.0, %v1329
          %v1331 = vpop.f32.mrf.mxu0
          %v1332 = vadd.f32 0.0, %v1331
          %1333 = vmatmul.bf16.gmra.mxu0 %v1237
          %v1334 = vpop.f32.mrf.mxu0
          %v1335 = vadd.f32 0.0, %v1334
          %v1336 = vpop.f32.mrf.mxu0
          %v1337 = vadd.f32 0.0, %v1336
          %1338 = vmatmul.bf16.gmra.mxu0 %v1238
          %v1339 = vpop.f32.mrf.mxu0
          %v1340 = vadd.f32 0.0, %v1339
          %v1341 = vpop.f32.mrf.mxu0
          %v1342 = vadd.f32 0.0, %v1341
          %1343 = vmatmul.bf16.gmra.mxu0 %v1239
          %v1344 = vpop.f32.mrf.mxu0
          %v1345 = vadd.f32 0.0, %v1344
          %v1346 = vpop.f32.mrf.mxu0
          %v1347 = vadd.f32 0.0, %v1346
          %1348 = vmatmul.bf16.gmra.mxu0 %v1240
          %v1349 = vpop.f32.mrf.mxu0
          %v1350 = vadd.f32 0.0, %v1349
          %v1351 = vpop.f32.mrf.mxu0
          %v1352 = vadd.f32 0.0, %v1351
          %1353 = vmatmul.bf16.gmra.mxu0 %v1241
          %v1354 = vpop.f32.mrf.mxu0
          %v1355 = vadd.f32 0.0, %v1354
          %v1356 = vpop.f32.mrf.mxu0
          %v1357 = vadd.f32 0.0, %v1356
          %1358 = vmatmul.bf16.gmra.mxu0 %v1242
          %v1359 = vpop.f32.mrf.mxu0
          %v1360 = vadd.f32 0.0, %v1359
          %v1361 = vpop.f32.mrf.mxu0
          %v1362 = vadd.f32 0.0, %v1361
          %1363 = vmatmul.bf16.gmra.mxu0 %v1243
          %v1364 = vpop.f32.mrf.mxu0
          %v1365 = vadd.f32 0.0, %v1364
          %v1366 = vpop.f32.mrf.mxu0
          %v1367 = vadd.f32 0.0, %v1366
          %1368 = vmatmul.bf16.gmra.mxu0 %v1244
          %v1369 = vpop.f32.mrf.mxu0
          %v1370 = vadd.f32 0.0, %v1369
          %v1371 = vpop.f32.mrf.mxu0
          %v1372 = vadd.f32 0.0, %v1371
          %1373 = vmatmul.bf16.gmra.mxu0 %v1245
          %v1374 = vpop.f32.mrf.mxu0
          %v1375 = vadd.f32 0.0, %v1374
          %v1376 = vpop.f32.mrf.mxu0
          %v1377 = vadd.f32 0.0, %v1376
          %1378 = vmatmul.bf16.gmra.mxu0 %v1246
          %v1379 = vpop.f32.mrf.mxu0
          %v1380 = vadd.f32 0.0, %v1379
          %v1381 = vpop.f32.mrf.mxu0
          %v1382 = vadd.f32 0.0, %v1381
          %1383 = vmatmul.bf16.gmra.mxu0 %v1247
          %v1384 = vpop.f32.mrf.mxu0
          %v1385 = vadd.f32 0.0, %v1384
          %v1386 = vpop.f32.mrf.mxu0
          %v1387 = vadd.f32 0.0, %v1386
          %1388 = vmatmul.bf16.gmra.mxu0 %v1248
          %v1389 = vpop.f32.mrf.mxu0
          %v1390 = vadd.f32 0.0, %v1389
          %v1391 = vpop.f32.mrf.mxu0
          %v1392 = vadd.f32 0.0, %v1391
          %1393 = vmatmul.bf16.gmra.mxu0 %v1249
          %v1394 = vpop.f32.mrf.mxu0
          %v1395 = vadd.f32 0.0, %v1394
          %v1396 = vpop.f32.mrf.mxu0
          %v1397 = vadd.f32 0.0, %v1396
          %1398 = vmatmul.bf16.gmra.mxu0 %v1250
          %v1399 = vpop.f32.mrf.mxu0
          %v1400 = vadd.f32 0.0, %v1399
          %v1401 = vpop.f32.mrf.mxu0
          %v1402 = vadd.f32 0.0, %v1401
          %1403 = vmatmul.bf16.gmra.mxu0 %v1251
          %v1404 = vpop.f32.mrf.mxu0
          %v1405 = vadd.f32 0.0, %v1404
          %v1406 = vpop.f32.mrf.mxu0
          %v1407 = vadd.f32 0.0, %v1406
          %1408 = vdwg.mxu0
          %v1409 = vld [vmem:[#allocation3] sm:$0xff]
          %v1410 = vld [vmem:[#allocation3 + $0x8] sm:$0xff]
          %v1411 = vld [vmem:[#allocation3 + $0x10] sm:$0xff]
          %v1412 = vld [vmem:[#allocation3 + $0x18] sm:$0xff]
          %v1413 = vld [vmem:[#allocation3 + $0x20] sm:$0xff]
          %v1414 = vld [vmem:[#allocation3 + $0x28] sm:$0xff]
          %v1415 = vld [vmem:[#allocation3 + $0x30] sm:$0xff]
          %v1416 = vld [vmem:[#allocation3 + $0x38] sm:$0xff]
          %v1417 = vld [vmem:[#allocation3 + $0x40] sm:$0xff]
          %v1418 = vld [vmem:[#allocation3 + $0x48] sm:$0xff]
          %v1419 = vld [vmem:[#allocation3 + $0x50] sm:$0xff]
          %v1420 = vld [vmem:[#allocation3 + $0x58] sm:$0xff]
          %v1421 = vld [vmem:[#allocation3 + $0x60] sm:$0xff]
          %v1422 = vld [vmem:[#allocation3 + $0x68] sm:$0xff]
          %v1423 = vld [vmem:[#allocation3 + $0x70] sm:$0xff]
          %v1424 = vld [vmem:[#allocation3 + $0x78] sm:$0xff]
          %v1425 = vld [vmem:[#allocation3 + $0x80] sm:$0xff]
          %v1426 = vld [vmem:[#allocation3 + $0x88] sm:$0xff]
          %v1427 = vld [vmem:[#allocation3 + $0x90] sm:$0xff]
          %v1428 = vld [vmem:[#allocation3 + $0x98] sm:$0xff]
          %v1429 = vld [vmem:[#allocation3 + $0xa0] sm:$0xff]
          %v1430 = vld [vmem:[#allocation3 + $0xa8] sm:$0xff]
          %v1431 = vld [vmem:[#allocation3 + $0xb0] sm:$0xff]
          %v1432 = vld [vmem:[#allocation3 + $0xb8] sm:$0xff]
          %v1433 = vld [vmem:[#allocation3 + $0xc0] sm:$0xff]
          %v1434 = vld [vmem:[#allocation3 + $0xc8] sm:$0xff]
          %v1435 = vld [vmem:[#allocation3 + $0xd0] sm:$0xff]
          %v1436 = vld [vmem:[#allocation3 + $0xd8] sm:$0xff]
          %v1437 = vld [vmem:[#allocation3 + $0xe0] sm:$0xff]
          %v1438 = vld [vmem:[#allocation3 + $0xe8] sm:$0xff]
          %v1439 = vld [vmem:[#allocation3 + $0xf0] sm:$0xff]
          %v1440 = vld [vmem:[#allocation3 + $0xf8] sm:$0xff]
          %v1441 = vadd.f32 %v1409, %v1330
          %v1442 = vadd.f32 %v1410, %v1332
          %v1443 = vadd.f32 %v1411, %v1335
          %v1444 = vadd.f32 %v1412, %v1337
          %v1445 = vadd.f32 %v1413, %v1340
          %v1446 = vadd.f32 %v1414, %v1342
          %v1447 = vadd.f32 %v1415, %v1345
          %v1448 = vadd.f32 %v1416, %v1347
          %v1449 = vadd.f32 %v1417, %v1350
          %v1450 = vadd.f32 %v1418, %v1352
          %v1451 = vadd.f32 %v1419, %v1355
          %v1452 = vadd.f32 %v1420, %v1357
          %v1453 = vadd.f32 %v1421, %v1360
          %v1454 = vadd.f32 %v1422, %v1362
          %v1455 = vadd.f32 %v1423, %v1365
          %v1456 = vadd.f32 %v1424, %v1367
          %v1457 = vadd.f32 %v1425, %v1370
          %v1458 = vadd.f32 %v1426, %v1372
          %v1459 = vadd.f32 %v1427, %v1375
          %v1460 = vadd.f32 %v1428, %v1377
          %v1461 = vadd.f32 %v1429, %v1380
          %v1462 = vadd.f32 %v1430, %v1382
          %v1463 = vadd.f32 %v1431, %v1385
          %v1464 = vadd.f32 %v1432, %v1387
          %v1465 = vadd.f32 %v1433, %v1390
          %v1466 = vadd.f32 %v1434, %v1392
          %v1467 = vadd.f32 %v1435, %v1395
          %v1468 = vadd.f32 %v1436, %v1397
          %v1469 = vadd.f32 %v1437, %v1400
          %v1470 = vadd.f32 %v1438, %v1402
          %v1471 = vadd.f32 %v1439, %v1405
          %v1472 = vadd.f32 %v1440, %v1407
          %1473 = vst [vmem:[#allocation3] sm:$0xff] %v1441
          %1474 = vst [vmem:[#allocation3 + $0x8] sm:$0xff] %v1442
          %1475 = vst [vmem:[#allocation3 + $0x10] sm:$0xff] %v1443
          %1476 = vst [vmem:[#allocation3 + $0x18] sm:$0xff] %v1444
          %1477 = vst [vmem:[#allocation3 + $0x20] sm:$0xff] %v1445
          %1478 = vst [vmem:[#allocation3 + $0x28] sm:$0xff] %v1446
          %1479 = vst [vmem:[#allocation3 + $0x30] sm:$0xff] %v1447
          %1480 = vst [vmem:[#allocation3 + $0x38] sm:$0xff] %v1448
          %1481 = vst [vmem:[#allocation3 + $0x40] sm:$0xff] %v1449
          %1482 = vst [vmem:[#allocation3 + $0x48] sm:$0xff] %v1450
          %1483 = vst [vmem:[#allocation3 + $0x50] sm:$0xff] %v1451
          %1484 = vst [vmem:[#allocation3 + $0x58] sm:$0xff] %v1452
          %1485 = vst [vmem:[#allocation3 + $0x60] sm:$0xff] %v1453
          %1486 = vst [vmem:[#allocation3 + $0x68] sm:$0xff] %v1454
          %1487 = vst [vmem:[#allocation3 + $0x70] sm:$0xff] %v1455
          %1488 = vst [vmem:[#allocation3 + $0x78] sm:$0xff] %v1456
          %1489 = vst [vmem:[#allocation3 + $0x80] sm:$0xff] %v1457
          %1490 = vst [vmem:[#allocation3 + $0x88] sm:$0xff] %v1458
          %1491 = vst [vmem:[#allocation3 + $0x90] sm:$0xff] %v1459
          %1492 = vst [vmem:[#allocation3 + $0x98] sm:$0xff] %v1460
          %1493 = vst [vmem:[#allocation3 + $0xa0] sm:$0xff] %v1461
          %1494 = vst [vmem:[#allocation3 + $0xa8] sm:$0xff] %v1462
          %1495 = vst [vmem:[#allocation3 + $0xb0] sm:$0xff] %v1463
          %1496 = vst [vmem:[#allocation3 + $0xb8] sm:$0xff] %v1464
          %1497 = vst [vmem:[#allocation3 + $0xc0] sm:$0xff] %v1465
          %1498 = vst [vmem:[#allocation3 + $0xc8] sm:$0xff] %v1466
          %1499 = vst [vmem:[#allocation3 + $0xd0] sm:$0xff] %v1467
          %1500 = vst [vmem:[#allocation3 + $0xd8] sm:$0xff] %v1468
          %1501 = vst [vmem:[#allocation3 + $0xe0] sm:$0xff] %v1469
          %1502 = vst [vmem:[#allocation3 + $0xe8] sm:$0xff] %v1470
          %1503 = vst [vmem:[#allocation3 + $0xf0] sm:$0xff] %v1471
          %1504 = vst [vmem:[#allocation3 + $0xf8] sm:$0xff] %v1472
          %v1505 = vld [vmem:[%s176 + $0x1] sm:$0xff]
          %v1506 = vld [vmem:[%s176 + $0x9] sm:$0xff]
          %v1507 = vld [vmem:[%s176 + $0x19] sm:$0xff]
          %v1508 = vld [vmem:[%s176 + $0x21] sm:$0xff]
          %v1509 = vld [vmem:[%s176 + $0x31] sm:$0xff]
          %v1510 = vld [vmem:[%s176 + $0x39] sm:$0xff]
          %v1511 = vld [vmem:[%s176 + $0x49] sm:$0xff]
          %v1512 = vld [vmem:[%s176 + $0x51] sm:$0xff]
          %v1513 = vld [vmem:[%s176 + $0x61] sm:$0xff]
          %v1514 = vld [vmem:[%s176 + $0x69] sm:$0xff]
          %v1515 = vld [vmem:[%s176 + $0x79] sm:$0xff]
          %v1516 = vld [vmem:[%s176 + $0x81] sm:$0xff]
          %v1517 = vld [vmem:[%s176 + $0x91] sm:$0xff]
          %v1518 = vld [vmem:[%s176 + $0x99] sm:$0xff]
          %v1519 = vld [vmem:[%s176 + $0xa9] sm:$0xff]
          %v1520 = vld [vmem:[%s176 + $0xb1] sm:$0xff]
          %v1521 = vld [vmem:[%s176 + $0xc1] sm:$0xff]
          %v1522 = vld [vmem:[%s176 + $0xc9] sm:$0xff]
          %v1523 = vld [vmem:[%s176 + $0xd9] sm:$0xff]
          %v1524 = vld [vmem:[%s176 + $0xe1] sm:$0xff]
          %v1525 = vld [vmem:[%s176 + $0xf1] sm:$0xff]
          %v1526 = vld [vmem:[%s176 + $0xf9] sm:$0xff]
          %v1527 = vld [vmem:[%s176 + $0x109] sm:$0xff]
          %v1528 = vld [vmem:[%s176 + $0x111] sm:$0xff]
          %v1529 = vld [vmem:[%s176 + $0x121] sm:$0xff]
          %v1530 = vld [vmem:[%s176 + $0x129] sm:$0xff]
          %v1531 = vld [vmem:[%s176 + $0x139] sm:$0xff]
          %v1532 = vld [vmem:[%s176 + $0x141] sm:$0xff]
          %v1533 = vld [vmem:[%s176 + $0x151] sm:$0xff]
          %v1534 = vld [vmem:[%s176 + $0x159] sm:$0xff]
          %v1535 = vld [vmem:[%s176 + $0x169] sm:$0xff]
          %v1536 = vld [vmem:[%s176 + $0x171] sm:$0xff]
          %v1537 = vpack.c.bf16 %v1506, %v1505
          %v1538 = vpack.c.bf16 %v1508, %v1507
          %v1539 = vpack.c.bf16 %v1510, %v1509
          %v1540 = vpack.c.bf16 %v1512, %v1511
          %v1541 = vpack.c.bf16 %v1514, %v1513
          %v1542 = vpack.c.bf16 %v1516, %v1515
          %v1543 = vpack.c.bf16 %v1518, %v1517
          %v1544 = vpack.c.bf16 %v1520, %v1519
          %v1545 = vpack.c.bf16 %v1522, %v1521
          %v1546 = vpack.c.bf16 %v1524, %v1523
          %v1547 = vpack.c.bf16 %v1526, %v1525
          %v1548 = vpack.c.bf16 %v1528, %v1527
          %v1549 = vpack.c.bf16 %v1530, %v1529
          %v1550 = vpack.c.bf16 %v1532, %v1531
          %v1551 = vpack.c.bf16 %v1534, %v1533
          %v1552 = vpack.c.bf16 %v1536, %v1535
          %s1553 = sadd.s32 %s413, 4
          %s1554 = smul.u32 %s1553, 16
          %s1555 = smul.addr %s1554, 4
          %s1556 = scalar_lea.vmem %s1, %s1555
          %v1557 = vld [vmem:[%s1556] sm:$0xf]
          %v1558 = vld [vmem:[%s1556 + $0x4] sm:$0xf]
          %v1559 = vld [vmem:[%s1556 + $0x8] sm:$0xf]
          %v1560 = vld [vmem:[%s1556 + $0xc] sm:$0xf]
          %v1561 = vld [vmem:[%s1556 + $0x10] sm:$0xf]
          %v1562 = vld [vmem:[%s1556 + $0x14] sm:$0xf]
          %v1563 = vld [vmem:[%s1556 + $0x18] sm:$0xf]
          %v1564 = vld [vmem:[%s1556 + $0x1c] sm:$0xf]
          %v1565 = vld [vmem:[%s1556 + $0x20] sm:$0xf]
          %v1566 = vld [vmem:[%s1556 + $0x24] sm:$0xf]
          %v1567 = vld [vmem:[%s1556 + $0x28] sm:$0xf]
          %v1568 = vld [vmem:[%s1556 + $0x2c] sm:$0xf]
          %v1569 = vld [vmem:[%s1556 + $0x30] sm:$0xf]
          %v1570 = vld [vmem:[%s1556 + $0x34] sm:$0xf]
          %v1571 = vld [vmem:[%s1556 + $0x38] sm:$0xf]
          %v1572 = vld [vmem:[%s1556 + $0x3c] sm:$0xf]
          %v1589 = vunpack.c.l.b16 %v1557
          %v1590 = vunpack.c.l.b16 %v1558
          %v1591 = vunpack.c.l.b16 %v1559
          %v1592 = vunpack.c.l.b16 %v1560
          %v1593 = vunpack.c.l.b16 %v1561
          %v1594 = vunpack.c.l.b16 %v1562
          %v1595 = vunpack.c.l.b16 %v1563
          %v1596 = vunpack.c.l.b16 %v1564
          %v1597 = vunpack.c.l.b16 %v1565
          %v1598 = vunpack.c.l.b16 %v1566
          %v1599 = vunpack.c.l.b16 %v1567
          %v1600 = vunpack.c.l.b16 %v1568
          %v1601 = vunpack.c.l.b16 %v1569
          %v1602 = vunpack.c.l.b16 %v1570
          %v1603 = vunpack.c.l.b16 %v1571
          %v1604 = vunpack.c.l.b16 %v1572
          %v1605 = vpack.c.b16 %v1590, %v1589
          %v1606 = vpack.c.b16 %v1592, %v1591
          %v1607 = vpack.c.b16 %v1594, %v1593
          %v1608 = vpack.c.b16 %v1596, %v1595
          %v1609 = vpack.c.b16 %v1598, %v1597
          %v1610 = vpack.c.b16 %v1600, %v1599
          %v1611 = vpack.c.b16 %v1602, %v1601
          %v1612 = vpack.c.b16 %v1604, %v1603
          %1621 = vmatpush.bf16.msra.mxu0 %v1612
          %1622 = vmatpush.bf16.msra.mxu0 %v1611
          %1623 = vmatpush.bf16.msra.mxu0 %v1610
          %1624 = vmatpush.bf16.msra.mxu0 %v1609
          %1625 = vmatpush.bf16.msra.mxu0 %v1608
          %1626 = vmatpush.bf16.msra.mxu0 %v1607
          %1627 = vmatpush.bf16.msra.mxu0 %v1606
          %1628 = vmatpush.bf16.msra.mxu0 %v1605
          %1629 = vmatmul.bf16.gmra.mxu0 %v1537
          %v1630 = vpop.f32.mrf.mxu0
          %v1631 = vadd.f32 0.0, %v1630
          %v1632 = vpop.f32.mrf.mxu0
          %v1633 = vadd.f32 0.0, %v1632
          %1634 = vmatmul.bf16.gmra.mxu0 %v1538
          %v1635 = vpop.f32.mrf.mxu0
          %v1636 = vadd.f32 0.0, %v1635
          %v1637 = vpop.f32.mrf.mxu0
          %v1638 = vadd.f32 0.0, %v1637
          %1639 = vmatmul.bf16.gmra.mxu0 %v1539
          %v1640 = vpop.f32.mrf.mxu0
          %v1641 = vadd.f32 0.0, %v1640
          %v1642 = vpop.f32.mrf.mxu0
          %v1643 = vadd.f32 0.0, %v1642
          %1644 = vmatmul.bf16.gmra.mxu0 %v1540
          %v1645 = vpop.f32.mrf.mxu0
          %v1646 = vadd.f32 0.0, %v1645
          %v1647 = vpop.f32.mrf.mxu0
          %v1648 = vadd.f32 0.0, %v1647
          %1649 = vmatmul.bf16.gmra.mxu0 %v1541
          %v1650 = vpop.f32.mrf.mxu0
          %v1651 = vadd.f32 0.0, %v1650
          %v1652 = vpop.f32.mrf.mxu0
          %v1653 = vadd.f32 0.0, %v1652
          %1654 = vmatmul.bf16.gmra.mxu0 %v1542
          %v1655 = vpop.f32.mrf.mxu0
          %v1656 = vadd.f32 0.0, %v1655
          %v1657 = vpop.f32.mrf.mxu0
          %v1658 = vadd.f32 0.0, %v1657
          %1659 = vmatmul.bf16.gmra.mxu0 %v1543
          %v1660 = vpop.f32.mrf.mxu0
          %v1661 = vadd.f32 0.0, %v1660
          %v1662 = vpop.f32.mrf.mxu0
          %v1663 = vadd.f32 0.0, %v1662
          %1664 = vmatmul.bf16.gmra.mxu0 %v1544
          %v1665 = vpop.f32.mrf.mxu0
          %v1666 = vadd.f32 0.0, %v1665
          %v1667 = vpop.f32.mrf.mxu0
          %v1668 = vadd.f32 0.0, %v1667
          %1669 = vmatmul.bf16.gmra.mxu0 %v1545
          %v1670 = vpop.f32.mrf.mxu0
          %v1671 = vadd.f32 0.0, %v1670
          %v1672 = vpop.f32.mrf.mxu0
          %v1673 = vadd.f32 0.0, %v1672
          %1674 = vmatmul.bf16.gmra.mxu0 %v1546
          %v1675 = vpop.f32.mrf.mxu0
          %v1676 = vadd.f32 0.0, %v1675
          %v1677 = vpop.f32.mrf.mxu0
          %v1678 = vadd.f32 0.0, %v1677
          %1679 = vmatmul.bf16.gmra.mxu0 %v1547
          %v1680 = vpop.f32.mrf.mxu0
          %v1681 = vadd.f32 0.0, %v1680
          %v1682 = vpop.f32.mrf.mxu0
          %v1683 = vadd.f32 0.0, %v1682
          %1684 = vmatmul.bf16.gmra.mxu0 %v1548
          %v1685 = vpop.f32.mrf.mxu0
          %v1686 = vadd.f32 0.0, %v1685
          %v1687 = vpop.f32.mrf.mxu0
          %v1688 = vadd.f32 0.0, %v1687
          %1689 = vmatmul.bf16.gmra.mxu0 %v1549
          %v1690 = vpop.f32.mrf.mxu0
          %v1691 = vadd.f32 0.0, %v1690
          %v1692 = vpop.f32.mrf.mxu0
          %v1693 = vadd.f32 0.0, %v1692
          %1694 = vmatmul.bf16.gmra.mxu0 %v1550
          %v1695 = vpop.f32.mrf.mxu0
          %v1696 = vadd.f32 0.0, %v1695
          %v1697 = vpop.f32.mrf.mxu0
          %v1698 = vadd.f32 0.0, %v1697
          %1699 = vmatmul.bf16.gmra.mxu0 %v1551
          %v1700 = vpop.f32.mrf.mxu0
          %v1701 = vadd.f32 0.0, %v1700
          %v1702 = vpop.f32.mrf.mxu0
          %v1703 = vadd.f32 0.0, %v1702
          %1704 = vmatmul.bf16.gmra.mxu0 %v1552
          %v1705 = vpop.f32.mrf.mxu0
          %v1706 = vadd.f32 0.0, %v1705
          %v1707 = vpop.f32.mrf.mxu0
          %v1708 = vadd.f32 0.0, %v1707
          %1709 = vdwg.mxu0
          %v1710 = vld [vmem:[#allocation3] sm:$0xff]
          %v1711 = vld [vmem:[#allocation3 + $0x8] sm:$0xff]
          %v1712 = vld [vmem:[#allocation3 + $0x10] sm:$0xff]
          %v1713 = vld [vmem:[#allocation3 + $0x18] sm:$0xff]
          %v1714 = vld [vmem:[#allocation3 + $0x20] sm:$0xff]
          %v1715 = vld [vmem:[#allocation3 + $0x28] sm:$0xff]
          %v1716 = vld [vmem:[#allocation3 + $0x30] sm:$0xff]
          %v1717 = vld [vmem:[#allocation3 + $0x38] sm:$0xff]
          %v1718 = vld [vmem:[#allocation3 + $0x40] sm:$0xff]
          %v1719 = vld [vmem:[#allocation3 + $0x48] sm:$0xff]
          %v1720 = vld [vmem:[#allocation3 + $0x50] sm:$0xff]
          %v1721 = vld [vmem:[#allocation3 + $0x58] sm:$0xff]
          %v1722 = vld [vmem:[#allocation3 + $0x60] sm:$0xff]
          %v1723 = vld [vmem:[#allocation3 + $0x68] sm:$0xff]
          %v1724 = vld [vmem:[#allocation3 + $0x70] sm:$0xff]
          %v1725 = vld [vmem:[#allocation3 + $0x78] sm:$0xff]
          %v1726 = vld [vmem:[#allocation3 + $0x80] sm:$0xff]
          %v1727 = vld [vmem:[#allocation3 + $0x88] sm:$0xff]
          %v1728 = vld [vmem:[#allocation3 + $0x90] sm:$0xff]
          %v1729 = vld [vmem:[#allocation3 + $0x98] sm:$0xff]
          %v1730 = vld [vmem:[#allocation3 + $0xa0] sm:$0xff]
          %v1731 = vld [vmem:[#allocation3 + $0xa8] sm:$0xff]
          %v1732 = vld [vmem:[#allocation3 + $0xb0] sm:$0xff]
          %v1733 = vld [vmem:[#allocation3 + $0xb8] sm:$0xff]
          %v1734 = vld [vmem:[#allocation3 + $0xc0] sm:$0xff]
          %v1735 = vld [vmem:[#allocation3 + $0xc8] sm:$0xff]
          %v1736 = vld [vmem:[#allocation3 + $0xd0] sm:$0xff]
          %v1737 = vld [vmem:[#allocation3 + $0xd8] sm:$0xff]
          %v1738 = vld [vmem:[#allocation3 + $0xe0] sm:$0xff]
          %v1739 = vld [vmem:[#allocation3 + $0xe8] sm:$0xff]
          %v1740 = vld [vmem:[#allocation3 + $0xf0] sm:$0xff]
          %v1741 = vld [vmem:[#allocation3 + $0xf8] sm:$0xff]
          %v1742 = vadd.f32 %v1710, %v1631
          %v1743 = vadd.f32 %v1711, %v1633
          %v1744 = vadd.f32 %v1712, %v1636
          %v1745 = vadd.f32 %v1713, %v1638
          %v1746 = vadd.f32 %v1714, %v1641
          %v1747 = vadd.f32 %v1715, %v1643
          %v1748 = vadd.f32 %v1716, %v1646
          %v1749 = vadd.f32 %v1717, %v1648
          %v1750 = vadd.f32 %v1718, %v1651
          %v1751 = vadd.f32 %v1719, %v1653
          %v1752 = vadd.f32 %v1720, %v1656
          %v1753 = vadd.f32 %v1721, %v1658
          %v1754 = vadd.f32 %v1722, %v1661
          %v1755 = vadd.f32 %v1723, %v1663
          %v1756 = vadd.f32 %v1724, %v1666
          %v1757 = vadd.f32 %v1725, %v1668
          %v1758 = vadd.f32 %v1726, %v1671
          %v1759 = vadd.f32 %v1727, %v1673
          %v1760 = vadd.f32 %v1728, %v1676
          %v1761 = vadd.f32 %v1729, %v1678
          %v1762 = vadd.f32 %v1730, %v1681
          %v1763 = vadd.f32 %v1731, %v1683
          %v1764 = vadd.f32 %v1732, %v1686
          %v1765 = vadd.f32 %v1733, %v1688
          %v1766 = vadd.f32 %v1734, %v1691
          %v1767 = vadd.f32 %v1735, %v1693
          %v1768 = vadd.f32 %v1736, %v1696
          %v1769 = vadd.f32 %v1737, %v1698
          %v1770 = vadd.f32 %v1738, %v1701
          %v1771 = vadd.f32 %v1739, %v1703
          %v1772 = vadd.f32 %v1740, %v1706
          %v1773 = vadd.f32 %v1741, %v1708
          %1774 = vst [vmem:[#allocation3] sm:$0xff] %v1742
          %1775 = vst [vmem:[#allocation3 + $0x8] sm:$0xff] %v1743
          %1776 = vst [vmem:[#allocation3 + $0x10] sm:$0xff] %v1744
          %1777 = vst [vmem:[#allocation3 + $0x18] sm:$0xff] %v1745
          %1778 = vst [vmem:[#allocation3 + $0x20] sm:$0xff] %v1746
          %1779 = vst [vmem:[#allocation3 + $0x28] sm:$0xff] %v1747
          %1780 = vst [vmem:[#allocation3 + $0x30] sm:$0xff] %v1748
          %1781 = vst [vmem:[#allocation3 + $0x38] sm:$0xff] %v1749
          %1782 = vst [vmem:[#allocation3 + $0x40] sm:$0xff] %v1750
          %1783 = vst [vmem:[#allocation3 + $0x48] sm:$0xff] %v1751
          %1784 = vst [vmem:[#allocation3 + $0x50] sm:$0xff] %v1752
          %1785 = vst [vmem:[#allocation3 + $0x58] sm:$0xff] %v1753
          %1786 = vst [vmem:[#allocation3 + $0x60] sm:$0xff] %v1754
          %1787 = vst [vmem:[#allocation3 + $0x68] sm:$0xff] %v1755
          %1788 = vst [vmem:[#allocation3 + $0x70] sm:$0xff] %v1756
          %1789 = vst [vmem:[#allocation3 + $0x78] sm:$0xff] %v1757
          %1790 = vst [vmem:[#allocation3 + $0x80] sm:$0xff] %v1758
          %1791 = vst [vmem:[#allocation3 + $0x88] sm:$0xff] %v1759
          %1792 = vst [vmem:[#allocation3 + $0x90] sm:$0xff] %v1760
          %1793 = vst [vmem:[#allocation3 + $0x98] sm:$0xff] %v1761
          %1794 = vst [vmem:[#allocation3 + $0xa0] sm:$0xff] %v1762
          %1795 = vst [vmem:[#allocation3 + $0xa8] sm:$0xff] %v1763
          %1796 = vst [vmem:[#allocation3 + $0xb0] sm:$0xff] %v1764
          %1797 = vst [vmem:[#allocation3 + $0xb8] sm:$0xff] %v1765
          %1798 = vst [vmem:[#allocation3 + $0xc0] sm:$0xff] %v1766
          %1799 = vst [vmem:[#allocation3 + $0xc8] sm:$0xff] %v1767
          %1800 = vst [vmem:[#allocation3 + $0xd0] sm:$0xff] %v1768
          %1801 = vst [vmem:[#allocation3 + $0xd8] sm:$0xff] %v1769
          %1802 = vst [vmem:[#allocation3 + $0xe0] sm:$0xff] %v1770
          %1803 = vst [vmem:[#allocation3 + $0xe8] sm:$0xff] %v1771
          %1804 = vst [vmem:[#allocation3 + $0xf0] sm:$0xff] %v1772
          %1805 = vst [vmem:[#allocation3 + $0xf8] sm:$0xff] %v1773
          %v1806 = vld [vmem:[%s176 + $0x2] sm:$0xff]
          %v1807 = vld [vmem:[%s176 + $0xa] sm:$0xff]
          %v1808 = vld [vmem:[%s176 + $0x1a] sm:$0xff]
          %v1809 = vld [vmem:[%s176 + $0x22] sm:$0xff]
          %v1810 = vld [vmem:[%s176 + $0x32] sm:$0xff]
          %v1811 = vld [vmem:[%s176 + $0x3a] sm:$0xff]
          %v1812 = vld [vmem:[%s176 + $0x4a] sm:$0xff]
          %v1813 = vld [vmem:[%s176 + $0x52] sm:$0xff]
          %v1814 = vld [vmem:[%s176 + $0x62] sm:$0xff]
          %v1815 = vld [vmem:[%s176 + $0x6a] sm:$0xff]
          %v1816 = vld [vmem:[%s176 + $0x7a] sm:$0xff]
          %v1817 = vld [vmem:[%s176 + $0x82] sm:$0xff]
          %v1818 = vld [vmem:[%s176 + $0x92] sm:$0xff]
          %v1819 = vld [vmem:[%s176 + $0x9a] sm:$0xff]
          %v1820 = vld [vmem:[%s176 + $0xaa] sm:$0xff]
          %v1821 = vld [vmem:[%s176 + $0xb2] sm:$0xff]
          %v1822 = vld [vmem:[%s176 + $0xc2] sm:$0xff]
          %v1823 = vld [vmem:[%s176 + $0xca] sm:$0xff]
          %v1824 = vld [vmem:[%s176 + $0xda] sm:$0xff]
          %v1825 = vld [vmem:[%s176 + $0xe2] sm:$0xff]
          %v1826 = vld [vmem:[%s176 + $0xf2] sm:$0xff]
          %v1827 = vld [vmem:[%s176 + $0xfa] sm:$0xff]
          %v1828 = vld [vmem:[%s176 + $0x10a] sm:$0xff]
          %v1829 = vld [vmem:[%s176 + $0x112] sm:$0xff]
          %v1830 = vld [vmem:[%s176 + $0x122] sm:$0xff]
          %v1831 = vld [vmem:[%s176 + $0x12a] sm:$0xff]
          %v1832 = vld [vmem:[%s176 + $0x13a] sm:$0xff]
          %v1833 = vld [vmem:[%s176 + $0x142] sm:$0xff]
          %v1834 = vld [vmem:[%s176 + $0x152] sm:$0xff]
          %v1835 = vld [vmem:[%s176 + $0x15a] sm:$0xff]
          %v1836 = vld [vmem:[%s176 + $0x16a] sm:$0xff]
          %v1837 = vld [vmem:[%s176 + $0x172] sm:$0xff]
          %v1838 = vpack.c.bf16 %v1807, %v1806
          %v1839 = vpack.c.bf16 %v1809, %v1808
          %v1840 = vpack.c.bf16 %v1811, %v1810
          %v1841 = vpack.c.bf16 %v1813, %v1812
          %v1842 = vpack.c.bf16 %v1815, %v1814
          %v1843 = vpack.c.bf16 %v1817, %v1816
          %v1844 = vpack.c.bf16 %v1819, %v1818
          %v1845 = vpack.c.bf16 %v1821, %v1820
          %v1846 = vpack.c.bf16 %v1823, %v1822
          %v1847 = vpack.c.bf16 %v1825, %v1824
          %v1848 = vpack.c.bf16 %v1827, %v1826
          %v1849 = vpack.c.bf16 %v1829, %v1828
          %v1850 = vpack.c.bf16 %v1831, %v1830
          %v1851 = vpack.c.bf16 %v1833, %v1832
          %v1852 = vpack.c.bf16 %v1835, %v1834
          %v1853 = vpack.c.bf16 %v1837, %v1836
          %s1854 = sadd.s32 %s413, 5
          %s1855 = smul.u32 %s1854, 16
          %s1856 = smul.addr %s1855, 4
          %s1857 = scalar_lea.vmem %s1, %s1856
          %v1858 = vld [vmem:[%s1857] sm:$0xf]
          %v1859 = vld [vmem:[%s1857 + $0x4] sm:$0xf]
          %v1860 = vld [vmem:[%s1857 + $0x8] sm:$0xf]
          %v1861 = vld [vmem:[%s1857 + $0xc] sm:$0xf]
          %v1862 = vld [vmem:[%s1857 + $0x10] sm:$0xf]
          %v1863 = vld [vmem:[%s1857 + $0x14] sm:$0xf]
          %v1864 = vld [vmem:[%s1857 + $0x18] sm:$0xf]
          %v1865 = vld [vmem:[%s1857 + $0x1c] sm:$0xf]
          %v1866 = vld [vmem:[%s1857 + $0x20] sm:$0xf]
          %v1867 = vld [vmem:[%s1857 + $0x24] sm:$0xf]
          %v1868 = vld [vmem:[%s1857 + $0x28] sm:$0xf]
          %v1869 = vld [vmem:[%s1857 + $0x2c] sm:$0xf]
          %v1870 = vld [vmem:[%s1857 + $0x30] sm:$0xf]
          %v1871 = vld [vmem:[%s1857 + $0x34] sm:$0xf]
          %v1872 = vld [vmem:[%s1857 + $0x38] sm:$0xf]
          %v1873 = vld [vmem:[%s1857 + $0x3c] sm:$0xf]
          %v1890 = vunpack.c.l.b16 %v1858
          %v1891 = vunpack.c.l.b16 %v1859
          %v1892 = vunpack.c.l.b16 %v1860
          %v1893 = vunpack.c.l.b16 %v1861
          %v1894 = vunpack.c.l.b16 %v1862
          %v1895 = vunpack.c.l.b16 %v1863
          %v1896 = vunpack.c.l.b16 %v1864
          %v1897 = vunpack.c.l.b16 %v1865
          %v1898 = vunpack.c.l.b16 %v1866
          %v1899 = vunpack.c.l.b16 %v1867
          %v1900 = vunpack.c.l.b16 %v1868
          %v1901 = vunpack.c.l.b16 %v1869
          %v1902 = vunpack.c.l.b16 %v1870
          %v1903 = vunpack.c.l.b16 %v1871
          %v1904 = vunpack.c.l.b16 %v1872
          %v1905 = vunpack.c.l.b16 %v1873
          %v1906 = vpack.c.b16 %v1891, %v1890
          %v1907 = vpack.c.b16 %v1893, %v1892
          %v1908 = vpack.c.b16 %v1895, %v1894
          %v1909 = vpack.c.b16 %v1897, %v1896
          %v1910 = vpack.c.b16 %v1899, %v1898
          %v1911 = vpack.c.b16 %v1901, %v1900
          %v1912 = vpack.c.b16 %v1903, %v1902
          %v1913 = vpack.c.b16 %v1905, %v1904
          %1922 = vmatpush.bf16.msra.mxu0 %v1913
          %1923 = vmatpush.bf16.msra.mxu0 %v1912
          %1924 = vmatpush.bf16.msra.mxu0 %v1911
          %1925 = vmatpush.bf16.msra.mxu0 %v1910
          %1926 = vmatpush.bf16.msra.mxu0 %v1909
          %1927 = vmatpush.bf16.msra.mxu0 %v1908
          %1928 = vmatpush.bf16.msra.mxu0 %v1907
          %1929 = vmatpush.bf16.msra.mxu0 %v1906
          %1930 = vmatmul.bf16.gmra.mxu0 %v1838
          %v1931 = vpop.f32.mrf.mxu0
          %v1932 = vadd.f32 0.0, %v1931
          %v1933 = vpop.f32.mrf.mxu0
          %v1934 = vadd.f32 0.0, %v1933
          %1935 = vmatmul.bf16.gmra.mxu0 %v1839
          %v1936 = vpop.f32.mrf.mxu0
          %v1937 = vadd.f32 0.0, %v1936
          %v1938 = vpop.f32.mrf.mxu0
          %v1939 = vadd.f32 0.0, %v1938
          %1940 = vmatmul.bf16.gmra.mxu0 %v1840
          %v1941 = vpop.f32.mrf.mxu0
          %v1942 = vadd.f32 0.0, %v1941
          %v1943 = vpop.f32.mrf.mxu0
          %v1944 = vadd.f32 0.0, %v1943
          %1945 = vmatmul.bf16.gmra.mxu0 %v1841
          %v1946 = vpop.f32.mrf.mxu0
          %v1947 = vadd.f32 0.0, %v1946
          %v1948 = vpop.f32.mrf.mxu0
          %v1949 = vadd.f32 0.0, %v1948
          %1950 = vmatmul.bf16.gmra.mxu0 %v1842
          %v1951 = vpop.f32.mrf.mxu0
          %v1952 = vadd.f32 0.0, %v1951
          %v1953 = vpop.f32.mrf.mxu0
          %v1954 = vadd.f32 0.0, %v1953
          %1955 = vmatmul.bf16.gmra.mxu0 %v1843
          %v1956 = vpop.f32.mrf.mxu0
          %v1957 = vadd.f32 0.0, %v1956
          %v1958 = vpop.f32.mrf.mxu0
          %v1959 = vadd.f32 0.0, %v1958
          %1960 = vmatmul.bf16.gmra.mxu0 %v1844
          %v1961 = vpop.f32.mrf.mxu0
          %v1962 = vadd.f32 0.0, %v1961
          %v1963 = vpop.f32.mrf.mxu0
          %v1964 = vadd.f32 0.0, %v1963
          %1965 = vmatmul.bf16.gmra.mxu0 %v1845
          %v1966 = vpop.f32.mrf.mxu0
          %v1967 = vadd.f32 0.0, %v1966
          %v1968 = vpop.f32.mrf.mxu0
          %v1969 = vadd.f32 0.0, %v1968
          %1970 = vmatmul.bf16.gmra.mxu0 %v1846
          %v1971 = vpop.f32.mrf.mxu0
          %v1972 = vadd.f32 0.0, %v1971
          %v1973 = vpop.f32.mrf.mxu0
          %v1974 = vadd.f32 0.0, %v1973
          %1975 = vmatmul.bf16.gmra.mxu0 %v1847
          %v1976 = vpop.f32.mrf.mxu0
          %v1977 = vadd.f32 0.0, %v1976
          %v1978 = vpop.f32.mrf.mxu0
          %v1979 = vadd.f32 0.0, %v1978
          %1980 = vmatmul.bf16.gmra.mxu0 %v1848
          %v1981 = vpop.f32.mrf.mxu0
          %v1982 = vadd.f32 0.0, %v1981
          %v1983 = vpop.f32.mrf.mxu0
          %v1984 = vadd.f32 0.0, %v1983
          %1985 = vmatmul.bf16.gmra.mxu0 %v1849
          %v1986 = vpop.f32.mrf.mxu0
          %v1987 = vadd.f32 0.0, %v1986
          %v1988 = vpop.f32.mrf.mxu0
          %v1989 = vadd.f32 0.0, %v1988
          %1990 = vmatmul.bf16.gmra.mxu0 %v1850
          %v1991 = vpop.f32.mrf.mxu0
          %v1992 = vadd.f32 0.0, %v1991
          %v1993 = vpop.f32.mrf.mxu0
          %v1994 = vadd.f32 0.0, %v1993
          %1995 = vmatmul.bf16.gmra.mxu0 %v1851
          %v1996 = vpop.f32.mrf.mxu0
          %v1997 = vadd.f32 0.0, %v1996
          %v1998 = vpop.f32.mrf.mxu0
          %v1999 = vadd.f32 0.0, %v1998
          %2000 = vmatmul.bf16.gmra.mxu0 %v1852
          %v2001 = vpop.f32.mrf.mxu0
          %v2002 = vadd.f32 0.0, %v2001
          %v2003 = vpop.f32.mrf.mxu0
          %v2004 = vadd.f32 0.0, %v2003
          %2005 = vmatmul.bf16.gmra.mxu0 %v1853
          %v2006 = vpop.f32.mrf.mxu0
          %v2007 = vadd.f32 0.0, %v2006
          %v2008 = vpop.f32.mrf.mxu0
          %v2009 = vadd.f32 0.0, %v2008
          %2010 = vdwg.mxu0
          %v2011 = vld [vmem:[#allocation3] sm:$0xff]
          %v2012 = vld [vmem:[#allocation3 + $0x8] sm:$0xff]
          %v2013 = vld [vmem:[#allocation3 + $0x10] sm:$0xff]
          %v2014 = vld [vmem:[#allocation3 + $0x18] sm:$0xff]
          %v2015 = vld [vmem:[#allocation3 + $0x20] sm:$0xff]
          %v2016 = vld [vmem:[#allocation3 + $0x28] sm:$0xff]
          %v2017 = vld [vmem:[#allocation3 + $0x30] sm:$0xff]
          %v2018 = vld [vmem:[#allocation3 + $0x38] sm:$0xff]
          %v2019 = vld [vmem:[#allocation3 + $0x40] sm:$0xff]
          %v2020 = vld [vmem:[#allocation3 + $0x48] sm:$0xff]
          %v2021 = vld [vmem:[#allocation3 + $0x50] sm:$0xff]
          %v2022 = vld [vmem:[#allocation3 + $0x58] sm:$0xff]
          %v2023 = vld [vmem:[#allocation3 + $0x60] sm:$0xff]
          %v2024 = vld [vmem:[#allocation3 + $0x68] sm:$0xff]
          %v2025 = vld [vmem:[#allocation3 + $0x70] sm:$0xff]
          %v2026 = vld [vmem:[#allocation3 + $0x78] sm:$0xff]
          %v2027 = vld [vmem:[#allocation3 + $0x80] sm:$0xff]
          %v2028 = vld [vmem:[#allocation3 + $0x88] sm:$0xff]
          %v2029 = vld [vmem:[#allocation3 + $0x90] sm:$0xff]
          %v2030 = vld [vmem:[#allocation3 + $0x98] sm:$0xff]
          %v2031 = vld [vmem:[#allocation3 + $0xa0] sm:$0xff]
          %v2032 = vld [vmem:[#allocation3 + $0xa8] sm:$0xff]
          %v2033 = vld [vmem:[#allocation3 + $0xb0] sm:$0xff]
          %v2034 = vld [vmem:[#allocation3 + $0xb8] sm:$0xff]
          %v2035 = vld [vmem:[#allocation3 + $0xc0] sm:$0xff]
          %v2036 = vld [vmem:[#allocation3 + $0xc8] sm:$0xff]
          %v2037 = vld [vmem:[#allocation3 + $0xd0] sm:$0xff]
          %v2038 = vld [vmem:[#allocation3 + $0xd8] sm:$0xff]
          %v2039 = vld [vmem:[#allocation3 + $0xe0] sm:$0xff]
          %v2040 = vld [vmem:[#allocation3 + $0xe8] sm:$0xff]
          %v2041 = vld [vmem:[#allocation3 + $0xf0] sm:$0xff]
          %v2042 = vld [vmem:[#allocation3 + $0xf8] sm:$0xff]
          %v2043 = vadd.f32 %v2011, %v1932
          %v2044 = vadd.f32 %v2012, %v1934
          %v2045 = vadd.f32 %v2013, %v1937
          %v2046 = vadd.f32 %v2014, %v1939
          %v2047 = vadd.f32 %v2015, %v1942
          %v2048 = vadd.f32 %v2016, %v1944
          %v2049 = vadd.f32 %v2017, %v1947
          %v2050 = vadd.f32 %v2018, %v1949
          %v2051 = vadd.f32 %v2019, %v1952
          %v2052 = vadd.f32 %v2020, %v1954
          %v2053 = vadd.f32 %v2021, %v1957
          %v2054 = vadd.f32 %v2022, %v1959
          %v2055 = vadd.f32 %v2023, %v1962
          %v2056 = vadd.f32 %v2024, %v1964
          %v2057 = vadd.f32 %v2025, %v1967
          %v2058 = vadd.f32 %v2026, %v1969
          %v2059 = vadd.f32 %v2027, %v1972
          %v2060 = vadd.f32 %v2028, %v1974
          %v2061 = vadd.f32 %v2029, %v1977
          %v2062 = vadd.f32 %v2030, %v1979
          %v2063 = vadd.f32 %v2031, %v1982
          %v2064 = vadd.f32 %v2032, %v1984
          %v2065 = vadd.f32 %v2033, %v1987
          %v2066 = vadd.f32 %v2034, %v1989
          %v2067 = vadd.f32 %v2035, %v1992
          %v2068 = vadd.f32 %v2036, %v1994
          %v2069 = vadd.f32 %v2037, %v1997
          %v2070 = vadd.f32 %v2038, %v1999
          %v2071 = vadd.f32 %v2039, %v2002
          %v2072 = vadd.f32 %v2040, %v2004
          %v2073 = vadd.f32 %v2041, %v2007
          %v2074 = vadd.f32 %v2042, %v2009
          %2075 = vst [vmem:[#allocation3] sm:$0xff] %v2043
          %2076 = vst [vmem:[#allocation3 + $0x8] sm:$0xff] %v2044
          %2077 = vst [vmem:[#allocation3 + $0x10] sm:$0xff] %v2045
          %2078 = vst [vmem:[#allocation3 + $0x18] sm:$0xff] %v2046
          %2079 = vst [vmem:[#allocation3 + $0x20] sm:$0xff] %v2047
          %2080 = vst [vmem:[#allocation3 + $0x28] sm:$0xff] %v2048
          %2081 = vst [vmem:[#allocation3 + $0x30] sm:$0xff] %v2049
          %2082 = vst [vmem:[#allocation3 + $0x38] sm:$0xff] %v2050
          %2083 = vst [vmem:[#allocation3 + $0x40] sm:$0xff] %v2051
          %2084 = vst [vmem:[#allocation3 + $0x48] sm:$0xff] %v2052
          %2085 = vst [vmem:[#allocation3 + $0x50] sm:$0xff] %v2053
          %2086 = vst [vmem:[#allocation3 + $0x58] sm:$0xff] %v2054
          %2087 = vst [vmem:[#allocation3 + $0x60] sm:$0xff] %v2055
          %2088 = vst [vmem:[#allocation3 + $0x68] sm:$0xff] %v2056
          %2089 = vst [vmem:[#allocation3 + $0x70] sm:$0xff] %v2057
          %2090 = vst [vmem:[#allocation3 + $0x78] sm:$0xff] %v2058
          %2091 = vst [vmem:[#allocation3 + $0x80] sm:$0xff] %v2059
          %2092 = vst [vmem:[#allocation3 + $0x88] sm:$0xff] %v2060
          %2093 = vst [vmem:[#allocation3 + $0x90] sm:$0xff] %v2061
          %2094 = vst [vmem:[#allocation3 + $0x98] sm:$0xff] %v2062
          %2095 = vst [vmem:[#allocation3 + $0xa0] sm:$0xff] %v2063
          %2096 = vst [vmem:[#allocation3 + $0xa8] sm:$0xff] %v2064
          %2097 = vst [vmem:[#allocation3 + $0xb0] sm:$0xff] %v2065
          %2098 = vst [vmem:[#allocation3 + $0xb8] sm:$0xff] %v2066
          %2099 = vst [vmem:[#allocation3 + $0xc0] sm:$0xff] %v2067
          %2100 = vst [vmem:[#allocation3 + $0xc8] sm:$0xff] %v2068
          %2101 = vst [vmem:[#allocation3 + $0xd0] sm:$0xff] %v2069
          %2102 = vst [vmem:[#allocation3 + $0xd8] sm:$0xff] %v2070
          %2103 = vst [vmem:[#allocation3 + $0xe0] sm:$0xff] %v2071
          %2104 = vst [vmem:[#allocation3 + $0xe8] sm:$0xff] %v2072
          %2105 = vst [vmem:[#allocation3 + $0xf0] sm:$0xff] %v2073
          %2106 = vst [vmem:[#allocation3 + $0xf8] sm:$0xff] %v2074
          %s2107 = scalar_lea.vmem [#allocation2], 48
          %v2108 = vld [vmem:[%s2107] sm:$0xff]
          %v2109 = vld [vmem:[%s2107 + $0x8] sm:$0xff]
          %v2110 = vld [vmem:[%s2107 + $0x18] sm:$0xff]
          %v2111 = vld [vmem:[%s2107 + $0x20] sm:$0xff]
          %v2112 = vld [vmem:[%s2107 + $0x30] sm:$0xff]
          %v2113 = vld [vmem:[%s2107 + $0x38] sm:$0xff]
          %v2114 = vld [vmem:[%s2107 + $0x48] sm:$0xff]
          %v2115 = vld [vmem:[%s2107 + $0x50] sm:$0xff]
          %v2116 = vld [vmem:[%s2107 + $0x60] sm:$0xff]
          %v2117 = vld [vmem:[%s2107 + $0x68] sm:$0xff]
          %v2118 = vld [vmem:[%s2107 + $0x78] sm:$0xff]
          %v2119 = vld [vmem:[%s2107 + $0x80] sm:$0xff]
          %v2120 = vld [vmem:[%s2107 + $0x90] sm:$0xff]
          %v2121 = vld [vmem:[%s2107 + $0x98] sm:$0xff]
          %v2122 = vld [vmem:[%s2107 + $0xa8] sm:$0xff]
          %v2123 = vld [vmem:[%s2107 + $0xb0] sm:$0xff]
          %v2124 = vld [vmem:[%s2107 + $0xc0] sm:$0xff]
          %v2125 = vld [vmem:[%s2107 + $0xc8] sm:$0xff]
          %v2126 = vld [vmem:[%s2107 + $0xd8] sm:$0xff]
          %v2127 = vld [vmem:[%s2107 + $0xe0] sm:$0xff]
          %v2128 = vld [vmem:[%s2107 + $0xf0] sm:$0xff]
          %v2129 = vld [vmem:[%s2107 + $0xf8] sm:$0xff]
          %v2130 = vld [vmem:[%s2107 + $0x108] sm:$0xff]
          %v2131 = vld [vmem:[%s2107 + $0x110] sm:$0xff]
          %v2132 = vld [vmem:[%s2107 + $0x120] sm:$0xff]
          %v2133 = vld [vmem:[%s2107 + $0x128] sm:$0xff]
          %v2134 = vld [vmem:[%s2107 + $0x138] sm:$0xff]
          %v2135 = vld [vmem:[%s2107 + $0x140] sm:$0xff]
          %v2136 = vld [vmem:[%s2107 + $0x150] sm:$0xff]
          %v2137 = vld [vmem:[%s2107 + $0x158] sm:$0xff]
          %v2138 = vld [vmem:[%s2107 + $0x168] sm:$0xff]
          %v2139 = vld [vmem:[%s2107 + $0x170] sm:$0xff]
          %v2140 = vpack.c.bf16 %v2109, %v2108
          %v2141 = vpack.c.bf16 %v2111, %v2110
          %v2142 = vpack.c.bf16 %v2113, %v2112
          %v2143 = vpack.c.bf16 %v2115, %v2114
          %v2144 = vpack.c.bf16 %v2117, %v2116
          %v2145 = vpack.c.bf16 %v2119, %v2118
          %v2146 = vpack.c.bf16 %v2121, %v2120
          %v2147 = vpack.c.bf16 %v2123, %v2122
          %v2148 = vpack.c.bf16 %v2125, %v2124
          %v2149 = vpack.c.bf16 %v2127, %v2126
          %v2150 = vpack.c.bf16 %v2129, %v2128
          %v2151 = vpack.c.bf16 %v2131, %v2130
          %v2152 = vpack.c.bf16 %v2133, %v2132
          %v2153 = vpack.c.bf16 %v2135, %v2134
          %v2154 = vpack.c.bf16 %v2137, %v2136
          %v2155 = vpack.c.bf16 %v2139, %v2138
          %s2156 = sadd.s32 %s413, 6
          %s2157 = smul.u32 %s2156, 16
          %s2158 = smul.addr %s2157, 4
          %s2159 = scalar_lea.vmem %s1, %s2158
          %v2160 = vld [vmem:[%s2159] sm:$0xf]
          %v2161 = vld [vmem:[%s2159 + $0x4] sm:$0xf]
          %v2162 = vld [vmem:[%s2159 + $0x8] sm:$0xf]
          %v2163 = vld [vmem:[%s2159 + $0xc] sm:$0xf]
          %v2164 = vld [vmem:[%s2159 + $0x10] sm:$0xf]
          %v2165 = vld [vmem:[%s2159 + $0x14] sm:$0xf]
          %v2166 = vld [vmem:[%s2159 + $0x18] sm:$0xf]
          %v2167 = vld [vmem:[%s2159 + $0x1c] sm:$0xf]
          %v2168 = vld [vmem:[%s2159 + $0x20] sm:$0xf]
          %v2169 = vld [vmem:[%s2159 + $0x24] sm:$0xf]
          %v2170 = vld [vmem:[%s2159 + $0x28] sm:$0xf]
          %v2171 = vld [vmem:[%s2159 + $0x2c] sm:$0xf]
          %v2172 = vld [vmem:[%s2159 + $0x30] sm:$0xf]
          %v2173 = vld [vmem:[%s2159 + $0x34] sm:$0xf]
          %v2174 = vld [vmem:[%s2159 + $0x38] sm:$0xf]
          %v2175 = vld [vmem:[%s2159 + $0x3c] sm:$0xf]
          %v2192 = vunpack.c.l.b16 %v2160
          %v2193 = vunpack.c.l.b16 %v2161
          %v2194 = vunpack.c.l.b16 %v2162
          %v2195 = vunpack.c.l.b16 %v2163
          %v2196 = vunpack.c.l.b16 %v2164
          %v2197 = vunpack.c.l.b16 %v2165
          %v2198 = vunpack.c.l.b16 %v2166
          %v2199 = vunpack.c.l.b16 %v2167
          %v2200 = vunpack.c.l.b16 %v2168
          %v2201 = vunpack.c.l.b16 %v2169
          %v2202 = vunpack.c.l.b16 %v2170
          %v2203 = vunpack.c.l.b16 %v2171
          %v2204 = vunpack.c.l.b16 %v2172
          %v2205 = vunpack.c.l.b16 %v2173
          %v2206 = vunpack.c.l.b16 %v2174
          %v2207 = vunpack.c.l.b16 %v2175
          %v2208 = vpack.c.b16 %v2193, %v2192
          %v2209 = vpack.c.b16 %v2195, %v2194
          %v2210 = vpack.c.b16 %v2197, %v2196
          %v2211 = vpack.c.b16 %v2199, %v2198
          %v2212 = vpack.c.b16 %v2201, %v2200
          %v2213 = vpack.c.b16 %v2203, %v2202
          %v2214 = vpack.c.b16 %v2205, %v2204
          %v2215 = vpack.c.b16 %v2207, %v2206
          %2224 = vmatpush.bf16.msra.mxu0 %v2215
          %2225 = vmatpush.bf16.msra.mxu0 %v2214
          %2226 = vmatpush.bf16.msra.mxu0 %v2213
          %2227 = vmatpush.bf16.msra.mxu0 %v2212
          %2228 = vmatpush.bf16.msra.mxu0 %v2211
          %2229 = vmatpush.bf16.msra.mxu0 %v2210
          %2230 = vmatpush.bf16.msra.mxu0 %v2209
          %2231 = vmatpush.bf16.msra.mxu0 %v2208
          %2232 = vmatmul.bf16.gmra.mxu0 %v2140
          %v2233 = vpop.f32.mrf.mxu0
          %v2234 = vadd.f32 0.0, %v2233
          %v2235 = vpop.f32.mrf.mxu0
          %v2236 = vadd.f32 0.0, %v2235
          %2237 = vmatmul.bf16.gmra.mxu0 %v2141
          %v2238 = vpop.f32.mrf.mxu0
          %v2239 = vadd.f32 0.0, %v2238
          %v2240 = vpop.f32.mrf.mxu0
          %v2241 = vadd.f32 0.0, %v2240
          %2242 = vmatmul.bf16.gmra.mxu0 %v2142
          %v2243 = vpop.f32.mrf.mxu0
          %v2244 = vadd.f32 0.0, %v2243
          %v2245 = vpop.f32.mrf.mxu0
          %v2246 = vadd.f32 0.0, %v2245
          %2247 = vmatmul.bf16.gmra.mxu0 %v2143
          %v2248 = vpop.f32.mrf.mxu0
          %v2249 = vadd.f32 0.0, %v2248
          %v2250 = vpop.f32.mrf.mxu0
          %v2251 = vadd.f32 0.0, %v2250
          %2252 = vmatmul.bf16.gmra.mxu0 %v2144
          %v2253 = vpop.f32.mrf.mxu0
          %v2254 = vadd.f32 0.0, %v2253
          %v2255 = vpop.f32.mrf.mxu0
          %v2256 = vadd.f32 0.0, %v2255
          %2257 = vmatmul.bf16.gmra.mxu0 %v2145
          %v2258 = vpop.f32.mrf.mxu0
          %v2259 = vadd.f32 0.0, %v2258
          %v2260 = vpop.f32.mrf.mxu0
          %v2261 = vadd.f32 0.0, %v2260
          %2262 = vmatmul.bf16.gmra.mxu0 %v2146
          %v2263 = vpop.f32.mrf.mxu0
          %v2264 = vadd.f32 0.0, %v2263
          %v2265 = vpop.f32.mrf.mxu0
          %v2266 = vadd.f32 0.0, %v2265
          %2267 = vmatmul.bf16.gmra.mxu0 %v2147
          %v2268 = vpop.f32.mrf.mxu0
          %v2269 = vadd.f32 0.0, %v2268
          %v2270 = vpop.f32.mrf.mxu0
          %v2271 = vadd.f32 0.0, %v2270
          %2272 = vmatmul.bf16.gmra.mxu0 %v2148
          %v2273 = vpop.f32.mrf.mxu0
          %v2274 = vadd.f32 0.0, %v2273
          %v2275 = vpop.f32.mrf.mxu0
          %v2276 = vadd.f32 0.0, %v2275
          %2277 = vmatmul.bf16.gmra.mxu0 %v2149
          %v2278 = vpop.f32.mrf.mxu0
          %v2279 = vadd.f32 0.0, %v2278
          %v2280 = vpop.f32.mrf.mxu0
          %v2281 = vadd.f32 0.0, %v2280
          %2282 = vmatmul.bf16.gmra.mxu0 %v2150
          %v2283 = vpop.f32.mrf.mxu0
          %v2284 = vadd.f32 0.0, %v2283
          %v2285 = vpop.f32.mrf.mxu0
          %v2286 = vadd.f32 0.0, %v2285
          %2287 = vmatmul.bf16.gmra.mxu0 %v2151
          %v2288 = vpop.f32.mrf.mxu0
          %v2289 = vadd.f32 0.0, %v2288
          %v2290 = vpop.f32.mrf.mxu0
          %v2291 = vadd.f32 0.0, %v2290
          %2292 = vmatmul.bf16.gmra.mxu0 %v2152
          %v2293 = vpop.f32.mrf.mxu0
          %v2294 = vadd.f32 0.0, %v2293
          %v2295 = vpop.f32.mrf.mxu0
          %v2296 = vadd.f32 0.0, %v2295
          %2297 = vmatmul.bf16.gmra.mxu0 %v2153
          %v2298 = vpop.f32.mrf.mxu0
          %v2299 = vadd.f32 0.0, %v2298
          %v2300 = vpop.f32.mrf.mxu0
          %v2301 = vadd.f32 0.0, %v2300
          %2302 = vmatmul.bf16.gmra.mxu0 %v2154
          %v2303 = vpop.f32.mrf.mxu0
          %v2304 = vadd.f32 0.0, %v2303
          %v2305 = vpop.f32.mrf.mxu0
          %v2306 = vadd.f32 0.0, %v2305
          %2307 = vmatmul.bf16.gmra.mxu0 %v2155
          %v2308 = vpop.f32.mrf.mxu0
          %v2309 = vadd.f32 0.0, %v2308
          %v2310 = vpop.f32.mrf.mxu0
          %v2311 = vadd.f32 0.0, %v2310
          %2312 = vdwg.mxu0
          %v2313 = vld [vmem:[#allocation3] sm:$0xff]
          %v2314 = vld [vmem:[#allocation3 + $0x8] sm:$0xff]
          %v2315 = vld [vmem:[#allocation3 + $0x10] sm:$0xff]
          %v2316 = vld [vmem:[#allocation3 + $0x18] sm:$0xff]
          %v2317 = vld [vmem:[#allocation3 + $0x20] sm:$0xff]
          %v2318 = vld [vmem:[#allocation3 + $0x28] sm:$0xff]
          %v2319 = vld [vmem:[#allocation3 + $0x30] sm:$0xff]
          %v2320 = vld [vmem:[#allocation3 + $0x38] sm:$0xff]
          %v2321 = vld [vmem:[#allocation3 + $0x40] sm:$0xff]
          %v2322 = vld [vmem:[#allocation3 + $0x48] sm:$0xff]
          %v2323 = vld [vmem:[#allocation3 + $0x50] sm:$0xff]
          %v2324 = vld [vmem:[#allocation3 + $0x58] sm:$0xff]
          %v2325 = vld [vmem:[#allocation3 + $0x60] sm:$0xff]
          %v2326 = vld [vmem:[#allocation3 + $0x68] sm:$0xff]
          %v2327 = vld [vmem:[#allocation3 + $0x70] sm:$0xff]
          %v2328 = vld [vmem:[#allocation3 + $0x78] sm:$0xff]
          %v2329 = vld [vmem:[#allocation3 + $0x80] sm:$0xff]
          %v2330 = vld [vmem:[#allocation3 + $0x88] sm:$0xff]
          %v2331 = vld [vmem:[#allocation3 + $0x90] sm:$0xff]
          %v2332 = vld [vmem:[#allocation3 + $0x98] sm:$0xff]
          %v2333 = vld [vmem:[#allocation3 + $0xa0] sm:$0xff]
          %v2334 = vld [vmem:[#allocation3 + $0xa8] sm:$0xff]
          %v2335 = vld [vmem:[#allocation3 + $0xb0] sm:$0xff]
          %v2336 = vld [vmem:[#allocation3 + $0xb8] sm:$0xff]
          %v2337 = vld [vmem:[#allocation3 + $0xc0] sm:$0xff]
          %v2338 = vld [vmem:[#allocation3 + $0xc8] sm:$0xff]
          %v2339 = vld [vmem:[#allocation3 + $0xd0] sm:$0xff]
          %v2340 = vld [vmem:[#allocation3 + $0xd8] sm:$0xff]
          %v2341 = vld [vmem:[#allocation3 + $0xe0] sm:$0xff]
          %v2342 = vld [vmem:[#allocation3 + $0xe8] sm:$0xff]
          %v2343 = vld [vmem:[#allocation3 + $0xf0] sm:$0xff]
          %v2344 = vld [vmem:[#allocation3 + $0xf8] sm:$0xff]
          %v2345 = vadd.f32 %v2313, %v2234
          %v2346 = vadd.f32 %v2314, %v2236
          %v2347 = vadd.f32 %v2315, %v2239
          %v2348 = vadd.f32 %v2316, %v2241
          %v2349 = vadd.f32 %v2317, %v2244
          %v2350 = vadd.f32 %v2318, %v2246
          %v2351 = vadd.f32 %v2319, %v2249
          %v2352 = vadd.f32 %v2320, %v2251
          %v2353 = vadd.f32 %v2321, %v2254
          %v2354 = vadd.f32 %v2322, %v2256
          %v2355 = vadd.f32 %v2323, %v2259
          %v2356 = vadd.f32 %v2324, %v2261
          %v2357 = vadd.f32 %v2325, %v2264
          %v2358 = vadd.f32 %v2326, %v2266
          %v2359 = vadd.f32 %v2327, %v2269
          %v2360 = vadd.f32 %v2328, %v2271
          %v2361 = vadd.f32 %v2329, %v2274
          %v2362 = vadd.f32 %v2330, %v2276
          %v2363 = vadd.f32 %v2331, %v2279
          %v2364 = vadd.f32 %v2332, %v2281
          %v2365 = vadd.f32 %v2333, %v2284
          %v2366 = vadd.f32 %v2334, %v2286
          %v2367 = vadd.f32 %v2335, %v2289
          %v2368 = vadd.f32 %v2336, %v2291
          %v2369 = vadd.f32 %v2337, %v2294
          %v2370 = vadd.f32 %v2338, %v2296
          %v2371 = vadd.f32 %v2339, %v2299
          %v2372 = vadd.f32 %v2340, %v2301
          %v2373 = vadd.f32 %v2341, %v2304
          %v2374 = vadd.f32 %v2342, %v2306
          %v2375 = vadd.f32 %v2343, %v2309
          %v2376 = vadd.f32 %v2344, %v2311
          %2377 = vst [vmem:[#allocation3] sm:$0xff] %v2345
          %2378 = vst [vmem:[#allocation3 + $0x8] sm:$0xff] %v2346
          %2379 = vst [vmem:[#allocation3 + $0x10] sm:$0xff] %v2347
          %2380 = vst [vmem:[#allocation3 + $0x18] sm:$0xff] %v2348
          %2381 = vst [vmem:[#allocation3 + $0x20] sm:$0xff] %v2349
          %2382 = vst [vmem:[#allocation3 + $0x28] sm:$0xff] %v2350
          %2383 = vst [vmem:[#allocation3 + $0x30] sm:$0xff] %v2351
          %2384 = vst [vmem:[#allocation3 + $0x38] sm:$0xff] %v2352
          %2385 = vst [vmem:[#allocation3 + $0x40] sm:$0xff] %v2353
          %2386 = vst [vmem:[#allocation3 + $0x48] sm:$0xff] %v2354
          %2387 = vst [vmem:[#allocation3 + $0x50] sm:$0xff] %v2355
          %2388 = vst [vmem:[#allocation3 + $0x58] sm:$0xff] %v2356
          %2389 = vst [vmem:[#allocation3 + $0x60] sm:$0xff] %v2357
          %2390 = vst [vmem:[#allocation3 + $0x68] sm:$0xff] %v2358
          %2391 = vst [vmem:[#allocation3 + $0x70] sm:$0xff] %v2359
          %2392 = vst [vmem:[#allocation3 + $0x78] sm:$0xff] %v2360
          %2393 = vst [vmem:[#allocation3 + $0x80] sm:$0xff] %v2361
          %2394 = vst [vmem:[#allocation3 + $0x88] sm:$0xff] %v2362
          %2395 = vst [vmem:[#allocation3 + $0x90] sm:$0xff] %v2363
          %2396 = vst [vmem:[#allocation3 + $0x98] sm:$0xff] %v2364
          %2397 = vst [vmem:[#allocation3 + $0xa0] sm:$0xff] %v2365
          %2398 = vst [vmem:[#allocation3 + $0xa8] sm:$0xff] %v2366
          %2399 = vst [vmem:[#allocation3 + $0xb0] sm:$0xff] %v2367
          %2400 = vst [vmem:[#allocation3 + $0xb8] sm:$0xff] %v2368
          %2401 = vst [vmem:[#allocation3 + $0xc0] sm:$0xff] %v2369
          %2402 = vst [vmem:[#allocation3 + $0xc8] sm:$0xff] %v2370
          %2403 = vst [vmem:[#allocation3 + $0xd0] sm:$0xff] %v2371
          %2404 = vst [vmem:[#allocation3 + $0xd8] sm:$0xff] %v2372
          %2405 = vst [vmem:[#allocation3 + $0xe0] sm:$0xff] %v2373
          %2406 = vst [vmem:[#allocation3 + $0xe8] sm:$0xff] %v2374
          %2407 = vst [vmem:[#allocation3 + $0xf0] sm:$0xff] %v2375
          %2408 = vst [vmem:[#allocation3 + $0xf8] sm:$0xff] %v2376
          %v2409 = vld [vmem:[%s2107 + $0x1] sm:$0xff]
          %v2410 = vld [vmem:[%s2107 + $0x9] sm:$0xff]
          %v2411 = vld [vmem:[%s2107 + $0x19] sm:$0xff]
          %v2412 = vld [vmem:[%s2107 + $0x21] sm:$0xff]
          %v2413 = vld [vmem:[%s2107 + $0x31] sm:$0xff]
          %v2414 = vld [vmem:[%s2107 + $0x39] sm:$0xff]
          %v2415 = vld [vmem:[%s2107 + $0x49] sm:$0xff]
          %v2416 = vld [vmem:[%s2107 + $0x51] sm:$0xff]
          %v2417 = vld [vmem:[%s2107 + $0x61] sm:$0xff]
          %v2418 = vld [vmem:[%s2107 + $0x69] sm:$0xff]
          %v2419 = vld [vmem:[%s2107 + $0x79] sm:$0xff]
          %v2420 = vld [vmem:[%s2107 + $0x81] sm:$0xff]
          %v2421 = vld [vmem:[%s2107 + $0x91] sm:$0xff]
          %v2422 = vld [vmem:[%s2107 + $0x99] sm:$0xff]
          %v2423 = vld [vmem:[%s2107 + $0xa9] sm:$0xff]
          %v2424 = vld [vmem:[%s2107 + $0xb1] sm:$0xff]
          %v2425 = vld [vmem:[%s2107 + $0xc1] sm:$0xff]
          %v2426 = vld [vmem:[%s2107 + $0xc9] sm:$0xff]
          %v2427 = vld [vmem:[%s2107 + $0xd9] sm:$0xff]
          %v2428 = vld [vmem:[%s2107 + $0xe1] sm:$0xff]
          %v2429 = vld [vmem:[%s2107 + $0xf1] sm:$0xff]
          %v2430 = vld [vmem:[%s2107 + $0xf9] sm:$0xff]
          %v2431 = vld [vmem:[%s2107 + $0x109] sm:$0xff]
          %v2432 = vld [vmem:[%s2107 + $0x111] sm:$0xff]
          %v2433 = vld [vmem:[%s2107 + $0x121] sm:$0xff]
          %v2434 = vld [vmem:[%s2107 + $0x129] sm:$0xff]
          %v2435 = vld [vmem:[%s2107 + $0x139] sm:$0xff]
          %v2436 = vld [vmem:[%s2107 + $0x141] sm:$0xff]
          %v2437 = vld [vmem:[%s2107 + $0x151] sm:$0xff]
          %v2438 = vld [vmem:[%s2107 + $0x159] sm:$0xff]
          %v2439 = vld [vmem:[%s2107 + $0x169] sm:$0xff]
          %v2440 = vld [vmem:[%s2107 + $0x171] sm:$0xff]
          %v2441 = vpack.c.bf16 %v2410, %v2409
          %v2442 = vpack.c.bf16 %v2412, %v2411
          %v2443 = vpack.c.bf16 %v2414, %v2413
          %v2444 = vpack.c.bf16 %v2416, %v2415
          %v2445 = vpack.c.bf16 %v2418, %v2417
          %v2446 = vpack.c.bf16 %v2420, %v2419
          %v2447 = vpack.c.bf16 %v2422, %v2421
          %v2448 = vpack.c.bf16 %v2424, %v2423
          %v2449 = vpack.c.bf16 %v2426, %v2425
          %v2450 = vpack.c.bf16 %v2428, %v2427
          %v2451 = vpack.c.bf16 %v2430, %v2429
          %v2452 = vpack.c.bf16 %v2432, %v2431
          %v2453 = vpack.c.bf16 %v2434, %v2433
          %v2454 = vpack.c.bf16 %v2436, %v2435
          %v2455 = vpack.c.bf16 %v2438, %v2437
          %v2456 = vpack.c.bf16 %v2440, %v2439
          %s2457 = sadd.s32 %s413, 7
          %s2458 = smul.u32 %s2457, 16
          %s2459 = smul.addr %s2458, 4
          %s2460 = scalar_lea.vmem %s1, %s2459
          %v2461 = vld [vmem:[%s2460] sm:$0xf]
          %v2462 = vld [vmem:[%s2460 + $0x4] sm:$0xf]
          %v2463 = vld [vmem:[%s2460 + $0x8] sm:$0xf]
          %v2464 = vld [vmem:[%s2460 + $0xc] sm:$0xf]
          %v2465 = vld [vmem:[%s2460 + $0x10] sm:$0xf]
          %v2466 = vld [vmem:[%s2460 + $0x14] sm:$0xf]
          %v2467 = vld [vmem:[%s2460 + $0x18] sm:$0xf]
          %v2468 = vld [vmem:[%s2460 + $0x1c] sm:$0xf]
          %v2469 = vld [vmem:[%s2460 + $0x20] sm:$0xf]
          %v2470 = vld [vmem:[%s2460 + $0x24] sm:$0xf]
          %v2471 = vld [vmem:[%s2460 + $0x28] sm:$0xf]
          %v2472 = vld [vmem:[%s2460 + $0x2c] sm:$0xf]
          %v2473 = vld [vmem:[%s2460 + $0x30] sm:$0xf]
          %v2474 = vld [vmem:[%s2460 + $0x34] sm:$0xf]
          %v2475 = vld [vmem:[%s2460 + $0x38] sm:$0xf]
          %v2476 = vld [vmem:[%s2460 + $0x3c] sm:$0xf]
          %v2493 = vunpack.c.l.b16 %v2461
          %v2494 = vunpack.c.l.b16 %v2462
          %v2495 = vunpack.c.l.b16 %v2463
          %v2496 = vunpack.c.l.b16 %v2464
          %v2497 = vunpack.c.l.b16 %v2465
          %v2498 = vunpack.c.l.b16 %v2466
          %v2499 = vunpack.c.l.b16 %v2467
          %v2500 = vunpack.c.l.b16 %v2468
          %v2501 = vunpack.c.l.b16 %v2469
          %v2502 = vunpack.c.l.b16 %v2470
          %v2503 = vunpack.c.l.b16 %v2471
          %v2504 = vunpack.c.l.b16 %v2472
          %v2505 = vunpack.c.l.b16 %v2473
          %v2506 = vunpack.c.l.b16 %v2474
          %v2507 = vunpack.c.l.b16 %v2475
          %v2508 = vunpack.c.l.b16 %v2476
          %v2509 = vpack.c.b16 %v2494, %v2493
          %v2510 = vpack.c.b16 %v2496, %v2495
          %v2511 = vpack.c.b16 %v2498, %v2497
          %v2512 = vpack.c.b16 %v2500, %v2499
          %v2513 = vpack.c.b16 %v2502, %v2501
          %v2514 = vpack.c.b16 %v2504, %v2503
          %v2515 = vpack.c.b16 %v2506, %v2505
          %v2516 = vpack.c.b16 %v2508, %v2507
          %2525 = vmatpush.bf16.msra.mxu0 %v2516
          %2526 = vmatpush.bf16.msra.mxu0 %v2515
          %2527 = vmatpush.bf16.msra.mxu0 %v2514
          %2528 = vmatpush.bf16.msra.mxu0 %v2513
          %2529 = vmatpush.bf16.msra.mxu0 %v2512
          %2530 = vmatpush.bf16.msra.mxu0 %v2511
          %2531 = vmatpush.bf16.msra.mxu0 %v2510
          %2532 = vmatpush.bf16.msra.mxu0 %v2509
          %2533 = vmatmul.bf16.gmra.mxu0 %v2441
          %v2534 = vpop.f32.mrf.mxu0
          %v2535 = vadd.f32 0.0, %v2534
          %v2536 = vpop.f32.mrf.mxu0
          %v2537 = vadd.f32 0.0, %v2536
          %2538 = vmatmul.bf16.gmra.mxu0 %v2442
          %v2539 = vpop.f32.mrf.mxu0
          %v2540 = vadd.f32 0.0, %v2539
          %v2541 = vpop.f32.mrf.mxu0
          %v2542 = vadd.f32 0.0, %v2541
          %2543 = vmatmul.bf16.gmra.mxu0 %v2443
          %v2544 = vpop.f32.mrf.mxu0
          %v2545 = vadd.f32 0.0, %v2544
          %v2546 = vpop.f32.mrf.mxu0
          %v2547 = vadd.f32 0.0, %v2546
          %2548 = vmatmul.bf16.gmra.mxu0 %v2444
          %v2549 = vpop.f32.mrf.mxu0
          %v2550 = vadd.f32 0.0, %v2549
          %v2551 = vpop.f32.mrf.mxu0
          %v2552 = vadd.f32 0.0, %v2551
          %2553 = vmatmul.bf16.gmra.mxu0 %v2445
          %v2554 = vpop.f32.mrf.mxu0
          %v2555 = vadd.f32 0.0, %v2554
          %v2556 = vpop.f32.mrf.mxu0
          %v2557 = vadd.f32 0.0, %v2556
          %2558 = vmatmul.bf16.gmra.mxu0 %v2446
          %v2559 = vpop.f32.mrf.mxu0
          %v2560 = vadd.f32 0.0, %v2559
          %v2561 = vpop.f32.mrf.mxu0
          %v2562 = vadd.f32 0.0, %v2561
          %2563 = vmatmul.bf16.gmra.mxu0 %v2447
          %v2564 = vpop.f32.mrf.mxu0
          %v2565 = vadd.f32 0.0, %v2564
          %v2566 = vpop.f32.mrf.mxu0
          %v2567 = vadd.f32 0.0, %v2566
          %2568 = vmatmul.bf16.gmra.mxu0 %v2448
          %v2569 = vpop.f32.mrf.mxu0
          %v2570 = vadd.f32 0.0, %v2569
          %v2571 = vpop.f32.mrf.mxu0
          %v2572 = vadd.f32 0.0, %v2571
          %2573 = vmatmul.bf16.gmra.mxu0 %v2449
          %v2574 = vpop.f32.mrf.mxu0
          %v2575 = vadd.f32 0.0, %v2574
          %v2576 = vpop.f32.mrf.mxu0
          %v2577 = vadd.f32 0.0, %v2576
          %2578 = vmatmul.bf16.gmra.mxu0 %v2450
          %v2579 = vpop.f32.mrf.mxu0
          %v2580 = vadd.f32 0.0, %v2579
          %v2581 = vpop.f32.mrf.mxu0
          %v2582 = vadd.f32 0.0, %v2581
          %2583 = vmatmul.bf16.gmra.mxu0 %v2451
          %v2584 = vpop.f32.mrf.mxu0
          %v2585 = vadd.f32 0.0, %v2584
          %v2586 = vpop.f32.mrf.mxu0
          %v2587 = vadd.f32 0.0, %v2586
          %2588 = vmatmul.bf16.gmra.mxu0 %v2452
          %v2589 = vpop.f32.mrf.mxu0
          %v2590 = vadd.f32 0.0, %v2589
          %v2591 = vpop.f32.mrf.mxu0
          %v2592 = vadd.f32 0.0, %v2591
          %2593 = vmatmul.bf16.gmra.mxu0 %v2453
          %v2594 = vpop.f32.mrf.mxu0
          %v2595 = vadd.f32 0.0, %v2594
          %v2596 = vpop.f32.mrf.mxu0
          %v2597 = vadd.f32 0.0, %v2596
          %2598 = vmatmul.bf16.gmra.mxu0 %v2454
          %v2599 = vpop.f32.mrf.mxu0
          %v2600 = vadd.f32 0.0, %v2599
          %v2601 = vpop.f32.mrf.mxu0
          %v2602 = vadd.f32 0.0, %v2601
          %2603 = vmatmul.bf16.gmra.mxu0 %v2455
          %v2604 = vpop.f32.mrf.mxu0
          %v2605 = vadd.f32 0.0, %v2604
          %v2606 = vpop.f32.mrf.mxu0
          %v2607 = vadd.f32 0.0, %v2606
          %2608 = vmatmul.bf16.gmra.mxu0 %v2456
          %v2609 = vpop.f32.mrf.mxu0
          %v2610 = vadd.f32 0.0, %v2609
          %v2611 = vpop.f32.mrf.mxu0
          %v2612 = vadd.f32 0.0, %v2611
          %2613 = vdwg.mxu0
          %v2614 = vld [vmem:[#allocation3] sm:$0xff]
          %v2615 = vld [vmem:[#allocation3 + $0x8] sm:$0xff]
          %v2616 = vld [vmem:[#allocation3 + $0x10] sm:$0xff]
          %v2617 = vld [vmem:[#allocation3 + $0x18] sm:$0xff]
          %v2618 = vld [vmem:[#allocation3 + $0x20] sm:$0xff]
          %v2619 = vld [vmem:[#allocation3 + $0x28] sm:$0xff]
          %v2620 = vld [vmem:[#allocation3 + $0x30] sm:$0xff]
          %v2621 = vld [vmem:[#allocation3 + $0x38] sm:$0xff]
          %v2622 = vld [vmem:[#allocation3 + $0x40] sm:$0xff]
          %v2623 = vld [vmem:[#allocation3 + $0x48] sm:$0xff]
          %v2624 = vld [vmem:[#allocation3 + $0x50] sm:$0xff]
          %v2625 = vld [vmem:[#allocation3 + $0x58] sm:$0xff]
          %v2626 = vld [vmem:[#allocation3 + $0x60] sm:$0xff]
          %v2627 = vld [vmem:[#allocation3 + $0x68] sm:$0xff]
          %v2628 = vld [vmem:[#allocation3 + $0x70] sm:$0xff]
          %v2629 = vld [vmem:[#allocation3 + $0x78] sm:$0xff]
          %v2630 = vld [vmem:[#allocation3 + $0x80] sm:$0xff]
          %v2631 = vld [vmem:[#allocation3 + $0x88] sm:$0xff]
          %v2632 = vld [vmem:[#allocation3 + $0x90] sm:$0xff]
          %v2633 = vld [vmem:[#allocation3 + $0x98] sm:$0xff]
          %v2634 = vld [vmem:[#allocation3 + $0xa0] sm:$0xff]
          %v2635 = vld [vmem:[#allocation3 + $0xa8] sm:$0xff]
          %v2636 = vld [vmem:[#allocation3 + $0xb0] sm:$0xff]
          %v2637 = vld [vmem:[#allocation3 + $0xb8] sm:$0xff]
          %v2638 = vld [vmem:[#allocation3 + $0xc0] sm:$0xff]
          %v2639 = vld [vmem:[#allocation3 + $0xc8] sm:$0xff]
          %v2640 = vld [vmem:[#allocation3 + $0xd0] sm:$0xff]
          %v2641 = vld [vmem:[#allocation3 + $0xd8] sm:$0xff]
          %v2642 = vld [vmem:[#allocation3 + $0xe0] sm:$0xff]
          %v2643 = vld [vmem:[#allocation3 + $0xe8] sm:$0xff]
          %v2644 = vld [vmem:[#allocation3 + $0xf0] sm:$0xff]
          %v2645 = vld [vmem:[#allocation3 + $0xf8] sm:$0xff]
          %v2646 = vadd.f32 %v2614, %v2535
          %v2647 = vadd.f32 %v2615, %v2537
          %v2648 = vadd.f32 %v2616, %v2540
          %v2649 = vadd.f32 %v2617, %v2542
          %v2650 = vadd.f32 %v2618, %v2545
          %v2651 = vadd.f32 %v2619, %v2547
          %v2652 = vadd.f32 %v2620, %v2550
          %v2653 = vadd.f32 %v2621, %v2552
          %v2654 = vadd.f32 %v2622, %v2555
          %v2655 = vadd.f32 %v2623, %v2557
          %v2656 = vadd.f32 %v2624, %v2560
          %v2657 = vadd.f32 %v2625, %v2562
          %v2658 = vadd.f32 %v2626, %v2565
          %v2659 = vadd.f32 %v2627, %v2567
          %v2660 = vadd.f32 %v2628, %v2570
          %v2661 = vadd.f32 %v2629, %v2572
          %v2662 = vadd.f32 %v2630, %v2575
          %v2663 = vadd.f32 %v2631, %v2577
          %v2664 = vadd.f32 %v2632, %v2580
          %v2665 = vadd.f32 %v2633, %v2582
          %v2666 = vadd.f32 %v2634, %v2585
          %v2667 = vadd.f32 %v2635, %v2587
          %v2668 = vadd.f32 %v2636, %v2590
          %v2669 = vadd.f32 %v2637, %v2592
          %v2670 = vadd.f32 %v2638, %v2595
          %v2671 = vadd.f32 %v2639, %v2597
          %v2672 = vadd.f32 %v2640, %v2600
          %v2673 = vadd.f32 %v2641, %v2602
          %v2674 = vadd.f32 %v2642, %v2605
          %v2675 = vadd.f32 %v2643, %v2607
          %v2676 = vadd.f32 %v2644, %v2610
          %v2677 = vadd.f32 %v2645, %v2612
          %2678 = vst [vmem:[#allocation3] sm:$0xff] %v2646
          %2679 = vst [vmem:[#allocation3 + $0x8] sm:$0xff] %v2647
          %2680 = vst [vmem:[#allocation3 + $0x10] sm:$0xff] %v2648
          %2681 = vst [vmem:[#allocation3 + $0x18] sm:$0xff] %v2649
          %2682 = vst [vmem:[#allocation3 + $0x20] sm:$0xff] %v2650
          %2683 = vst [vmem:[#allocation3 + $0x28] sm:$0xff] %v2651
          %2684 = vst [vmem:[#allocation3 + $0x30] sm:$0xff] %v2652
          %2685 = vst [vmem:[#allocation3 + $0x38] sm:$0xff] %v2653
          %2686 = vst [vmem:[#allocation3 + $0x40] sm:$0xff] %v2654
          %2687 = vst [vmem:[#allocation3 + $0x48] sm:$0xff] %v2655
          %2688 = vst [vmem:[#allocation3 + $0x50] sm:$0xff] %v2656
          %2689 = vst [vmem:[#allocation3 + $0x58] sm:$0xff] %v2657
          %2690 = vst [vmem:[#allocation3 + $0x60] sm:$0xff] %v2658
          %2691 = vst [vmem:[#allocation3 + $0x68] sm:$0xff] %v2659
          %2692 = vst [vmem:[#allocation3 + $0x70] sm:$0xff] %v2660
          %2693 = vst [vmem:[#allocation3 + $0x78] sm:$0xff] %v2661
          %2694 = vst [vmem:[#allocation3 + $0x80] sm:$0xff] %v2662
          %2695 = vst [vmem:[#allocation3 + $0x88] sm:$0xff] %v2663
          %2696 = vst [vmem:[#allocation3 + $0x90] sm:$0xff] %v2664
          %2697 = vst [vmem:[#allocation3 + $0x98] sm:$0xff] %v2665
          %2698 = vst [vmem:[#allocation3 + $0xa0] sm:$0xff] %v2666
          %2699 = vst [vmem:[#allocation3 + $0xa8] sm:$0xff] %v2667
          %2700 = vst [vmem:[#allocation3 + $0xb0] sm:$0xff] %v2668
          %2701 = vst [vmem:[#allocation3 + $0xb8] sm:$0xff] %v2669
          %2702 = vst [vmem:[#allocation3 + $0xc0] sm:$0xff] %v2670
          %2703 = vst [vmem:[#allocation3 + $0xc8] sm:$0xff] %v2671
          %2704 = vst [vmem:[#allocation3 + $0xd0] sm:$0xff] %v2672
          %2705 = vst [vmem:[#allocation3 + $0xd8] sm:$0xff] %v2673
          %2706 = vst [vmem:[#allocation3 + $0xe0] sm:$0xff] %v2674
          %2707 = vst [vmem:[#allocation3 + $0xe8] sm:$0xff] %v2675
          %2708 = vst [vmem:[#allocation3 + $0xf0] sm:$0xff] %v2676
          %2709 = vst [vmem:[#allocation3 + $0xf8] sm:$0xff] %v2677
          %v2710 = vld [vmem:[%s2107 + $0x2] sm:$0xff]
          %v2711 = vld [vmem:[%s2107 + $0xa] sm:$0xff]
          %v2712 = vld [vmem:[%s2107 + $0x1a] sm:$0xff]
          %v2713 = vld [vmem:[%s2107 + $0x22] sm:$0xff]
          %v2714 = vld [vmem:[%s2107 + $0x32] sm:$0xff]
          %v2715 = vld [vmem:[%s2107 + $0x3a] sm:$0xff]
          %v2716 = vld [vmem:[%s2107 + $0x4a] sm:$0xff]
          %v2717 = vld [vmem:[%s2107 + $0x52] sm:$0xff]
          %v2718 = vld [vmem:[%s2107 + $0x62] sm:$0xff]
          %v2719 = vld [vmem:[%s2107 + $0x6a] sm:$0xff]
          %v2720 = vld [vmem:[%s2107 + $0x7a] sm:$0xff]
          %v2721 = vld [vmem:[%s2107 + $0x82] sm:$0xff]
          %v2722 = vld [vmem:[%s2107 + $0x92] sm:$0xff]
          %v2723 = vld [vmem:[%s2107 + $0x9a] sm:$0xff]
          %v2724 = vld [vmem:[%s2107 + $0xaa] sm:$0xff]
          %v2725 = vld [vmem:[%s2107 + $0xb2] sm:$0xff]
          %v2726 = vld [vmem:[%s2107 + $0xc2] sm:$0xff]
          %v2727 = vld [vmem:[%s2107 + $0xca] sm:$0xff]
          %v2728 = vld [vmem:[%s2107 + $0xda] sm:$0xff]
          %v2729 = vld [vmem:[%s2107 + $0xe2] sm:$0xff]
          %v2730 = vld [vmem:[%s2107 + $0xf2] sm:$0xff]
          %v2731 = vld [vmem:[%s2107 + $0xfa] sm:$0xff]
          %v2732 = vld [vmem:[%s2107 + $0x10a] sm:$0xff]
          %v2733 = vld [vmem:[%s2107 + $0x112] sm:$0xff]
          %v2734 = vld [vmem:[%s2107 + $0x122] sm:$0xff]
          %v2735 = vld [vmem:[%s2107 + $0x12a] sm:$0xff]
          %v2736 = vld [vmem:[%s2107 + $0x13a] sm:$0xff]
          %v2737 = vld [vmem:[%s2107 + $0x142] sm:$0xff]
          %v2738 = vld [vmem:[%s2107 + $0x152] sm:$0xff]
          %v2739 = vld [vmem:[%s2107 + $0x15a] sm:$0xff]
          %v2740 = vld [vmem:[%s2107 + $0x16a] sm:$0xff]
          %v2741 = vld [vmem:[%s2107 + $0x172] sm:$0xff]
          %v2742 = vpack.c.bf16 %v2711, %v2710
          %v2743 = vpack.c.bf16 %v2713, %v2712
          %v2744 = vpack.c.bf16 %v2715, %v2714
          %v2745 = vpack.c.bf16 %v2717, %v2716
          %v2746 = vpack.c.bf16 %v2719, %v2718
          %v2747 = vpack.c.bf16 %v2721, %v2720
          %v2748 = vpack.c.bf16 %v2723, %v2722
          %v2749 = vpack.c.bf16 %v2725, %v2724
          %v2750 = vpack.c.bf16 %v2727, %v2726
          %v2751 = vpack.c.bf16 %v2729, %v2728
          %v2752 = vpack.c.bf16 %v2731, %v2730
          %v2753 = vpack.c.bf16 %v2733, %v2732
          %v2754 = vpack.c.bf16 %v2735, %v2734
          %v2755 = vpack.c.bf16 %v2737, %v2736
          %v2756 = vpack.c.bf16 %v2739, %v2738
          %v2757 = vpack.c.bf16 %v2741, %v2740
          %s2758 = sadd.s32 %s413, 8
          %s2759 = smul.u32 %s2758, 16
          %s2760 = smul.addr %s2759, 4
          %s2761 = scalar_lea.vmem %s1, %s2760
          %v2762 = vld [vmem:[%s2761] sm:$0xf]
          %v2763 = vld [vmem:[%s2761 + $0x4] sm:$0xf]
          %v2764 = vld [vmem:[%s2761 + $0x8] sm:$0xf]
          %v2765 = vld [vmem:[%s2761 + $0xc] sm:$0xf]
          %v2766 = vld [vmem:[%s2761 + $0x10] sm:$0xf]
          %v2767 = vld [vmem:[%s2761 + $0x14] sm:$0xf]
          %v2768 = vld [vmem:[%s2761 + $0x18] sm:$0xf]
          %v2769 = vld [vmem:[%s2761 + $0x1c] sm:$0xf]
          %v2770 = vld [vmem:[%s2761 + $0x20] sm:$0xf]
          %v2771 = vld [vmem:[%s2761 + $0x24] sm:$0xf]
          %v2772 = vld [vmem:[%s2761 + $0x28] sm:$0xf]
          %v2773 = vld [vmem:[%s2761 + $0x2c] sm:$0xf]
          %v2774 = vld [vmem:[%s2761 + $0x30] sm:$0xf]
          %v2775 = vld [vmem:[%s2761 + $0x34] sm:$0xf]
          %v2776 = vld [vmem:[%s2761 + $0x38] sm:$0xf]
          %v2777 = vld [vmem:[%s2761 + $0x3c] sm:$0xf]
          %v2794 = vunpack.c.l.b16 %v2762
          %v2795 = vunpack.c.l.b16 %v2763
          %v2796 = vunpack.c.l.b16 %v2764
          %v2797 = vunpack.c.l.b16 %v2765
          %v2798 = vunpack.c.l.b16 %v2766
          %v2799 = vunpack.c.l.b16 %v2767
          %v2800 = vunpack.c.l.b16 %v2768
          %v2801 = vunpack.c.l.b16 %v2769
          %v2802 = vunpack.c.l.b16 %v2770
          %v2803 = vunpack.c.l.b16 %v2771
          %v2804 = vunpack.c.l.b16 %v2772
          %v2805 = vunpack.c.l.b16 %v2773
          %v2806 = vunpack.c.l.b16 %v2774
          %v2807 = vunpack.c.l.b16 %v2775
          %v2808 = vunpack.c.l.b16 %v2776
          %v2809 = vunpack.c.l.b16 %v2777
          %v2810 = vpack.c.b16 %v2795, %v2794
          %v2811 = vpack.c.b16 %v2797, %v2796
          %v2812 = vpack.c.b16 %v2799, %v2798
          %v2813 = vpack.c.b16 %v2801, %v2800
          %v2814 = vpack.c.b16 %v2803, %v2802
          %v2815 = vpack.c.b16 %v2805, %v2804
          %v2816 = vpack.c.b16 %v2807, %v2806
          %v2817 = vpack.c.b16 %v2809, %v2808
          %2826 = vmatpush.bf16.msra.mxu0 %v2817
          %2827 = vmatpush.bf16.msra.mxu0 %v2816
          %2828 = vmatpush.bf16.msra.mxu0 %v2815
          %2829 = vmatpush.bf16.msra.mxu0 %v2814
          %2830 = vmatpush.bf16.msra.mxu0 %v2813
          %2831 = vmatpush.bf16.msra.mxu0 %v2812
          %2832 = vmatpush.bf16.msra.mxu0 %v2811
          %2833 = vmatpush.bf16.msra.mxu0 %v2810
          %2834 = vmatmul.bf16.gmra.mxu0 %v2742
          %v2835 = vpop.f32.mrf.mxu0
          %v2836 = vadd.f32 0.0, %v2835
          %v2837 = vpop.f32.mrf.mxu0
          %v2838 = vadd.f32 0.0, %v2837
          %2839 = vmatmul.bf16.gmra.mxu0 %v2743
          %v2840 = vpop.f32.mrf.mxu0
          %v2841 = vadd.f32 0.0, %v2840
          %v2842 = vpop.f32.mrf.mxu0
          %v2843 = vadd.f32 0.0, %v2842
          %2844 = vmatmul.bf16.gmra.mxu0 %v2744
          %v2845 = vpop.f32.mrf.mxu0
          %v2846 = vadd.f32 0.0, %v2845
          %v2847 = vpop.f32.mrf.mxu0
          %v2848 = vadd.f32 0.0, %v2847
          %2849 = vmatmul.bf16.gmra.mxu0 %v2745
          %v2850 = vpop.f32.mrf.mxu0
          %v2851 = vadd.f32 0.0, %v2850
          %v2852 = vpop.f32.mrf.mxu0
          %v2853 = vadd.f32 0.0, %v2852
          %2854 = vmatmul.bf16.gmra.mxu0 %v2746
          %v2855 = vpop.f32.mrf.mxu0
          %v2856 = vadd.f32 0.0, %v2855
          %v2857 = vpop.f32.mrf.mxu0
          %v2858 = vadd.f32 0.0, %v2857
          %2859 = vmatmul.bf16.gmra.mxu0 %v2747
          %v2860 = vpop.f32.mrf.mxu0
          %v2861 = vadd.f32 0.0, %v2860
          %v2862 = vpop.f32.mrf.mxu0
          %v2863 = vadd.f32 0.0, %v2862
          %2864 = vmatmul.bf16.gmra.mxu0 %v2748
          %v2865 = vpop.f32.mrf.mxu0
          %v2866 = vadd.f32 0.0, %v2865
          %v2867 = vpop.f32.mrf.mxu0
          %v2868 = vadd.f32 0.0, %v2867
          %2869 = vmatmul.bf16.gmra.mxu0 %v2749
          %v2870 = vpop.f32.mrf.mxu0
          %v2871 = vadd.f32 0.0, %v2870
          %v2872 = vpop.f32.mrf.mxu0
          %v2873 = vadd.f32 0.0, %v2872
          %2874 = vmatmul.bf16.gmra.mxu0 %v2750
          %v2875 = vpop.f32.mrf.mxu0
          %v2876 = vadd.f32 0.0, %v2875
          %v2877 = vpop.f32.mrf.mxu0
          %v2878 = vadd.f32 0.0, %v2877
          %2879 = vmatmul.bf16.gmra.mxu0 %v2751
          %v2880 = vpop.f32.mrf.mxu0
          %v2881 = vadd.f32 0.0, %v2880
          %v2882 = vpop.f32.mrf.mxu0
          %v2883 = vadd.f32 0.0, %v2882
          %2884 = vmatmul.bf16.gmra.mxu0 %v2752
          %v2885 = vpop.f32.mrf.mxu0
          %v2886 = vadd.f32 0.0, %v2885
          %v2887 = vpop.f32.mrf.mxu0
          %v2888 = vadd.f32 0.0, %v2887
          %2889 = vmatmul.bf16.gmra.mxu0 %v2753
          %v2890 = vpop.f32.mrf.mxu0
          %v2891 = vadd.f32 0.0, %v2890
          %v2892 = vpop.f32.mrf.mxu0
          %v2893 = vadd.f32 0.0, %v2892
          %2894 = vmatmul.bf16.gmra.mxu0 %v2754
          %v2895 = vpop.f32.mrf.mxu0
          %v2896 = vadd.f32 0.0, %v2895
          %v2897 = vpop.f32.mrf.mxu0
          %v2898 = vadd.f32 0.0, %v2897
          %2899 = vmatmul.bf16.gmra.mxu0 %v2755
          %v2900 = vpop.f32.mrf.mxu0
          %v2901 = vadd.f32 0.0, %v2900
          %v2902 = vpop.f32.mrf.mxu0
          %v2903 = vadd.f32 0.0, %v2902
          %2904 = vmatmul.bf16.gmra.mxu0 %v2756
          %v2905 = vpop.f32.mrf.mxu0
          %v2906 = vadd.f32 0.0, %v2905
          %v2907 = vpop.f32.mrf.mxu0
          %v2908 = vadd.f32 0.0, %v2907
          %2909 = vmatmul.bf16.gmra.mxu0 %v2757
          %v2910 = vpop.f32.mrf.mxu0
          %v2911 = vadd.f32 0.0, %v2910
          %v2912 = vpop.f32.mrf.mxu0
          %v2913 = vadd.f32 0.0, %v2912
          %2914 = vdwg.mxu0
          %v2915 = vld [vmem:[#allocation3] sm:$0xff]
          %v2916 = vld [vmem:[#allocation3 + $0x8] sm:$0xff]
          %v2917 = vld [vmem:[#allocation3 + $0x10] sm:$0xff]
          %v2918 = vld [vmem:[#allocation3 + $0x18] sm:$0xff]
          %v2919 = vld [vmem:[#allocation3 + $0x20] sm:$0xff]
          %v2920 = vld [vmem:[#allocation3 + $0x28] sm:$0xff]
          %v2921 = vld [vmem:[#allocation3 + $0x30] sm:$0xff]
          %v2922 = vld [vmem:[#allocation3 + $0x38] sm:$0xff]
          %v2923 = vld [vmem:[#allocation3 + $0x40] sm:$0xff]
          %v2924 = vld [vmem:[#allocation3 + $0x48] sm:$0xff]
          %v2925 = vld [vmem:[#allocation3 + $0x50] sm:$0xff]
          %v2926 = vld [vmem:[#allocation3 + $0x58] sm:$0xff]
          %v2927 = vld [vmem:[#allocation3 + $0x60] sm:$0xff]
          %v2928 = vld [vmem:[#allocation3 + $0x68] sm:$0xff]
          %v2929 = vld [vmem:[#allocation3 + $0x70] sm:$0xff]
          %v2930 = vld [vmem:[#allocation3 + $0x78] sm:$0xff]
          %v2931 = vld [vmem:[#allocation3 + $0x80] sm:$0xff]
          %v2932 = vld [vmem:[#allocation3 + $0x88] sm:$0xff]
          %v2933 = vld [vmem:[#allocation3 + $0x90] sm:$0xff]
          %v2934 = vld [vmem:[#allocation3 + $0x98] sm:$0xff]
          %v2935 = vld [vmem:[#allocation3 + $0xa0] sm:$0xff]
          %v2936 = vld [vmem:[#allocation3 + $0xa8] sm:$0xff]
          %v2937 = vld [vmem:[#allocation3 + $0xb0] sm:$0xff]
          %v2938 = vld [vmem:[#allocation3 + $0xb8] sm:$0xff]
          %v2939 = vld [vmem:[#allocation3 + $0xc0] sm:$0xff]
          %v2940 = vld [vmem:[#allocation3 + $0xc8] sm:$0xff]
          %v2941 = vld [vmem:[#allocation3 + $0xd0] sm:$0xff]
          %v2942 = vld [vmem:[#allocation3 + $0xd8] sm:$0xff]
          %v2943 = vld [vmem:[#allocation3 + $0xe0] sm:$0xff]
          %v2944 = vld [vmem:[#allocation3 + $0xe8] sm:$0xff]
          %v2945 = vld [vmem:[#allocation3 + $0xf0] sm:$0xff]
          %v2946 = vld [vmem:[#allocation3 + $0xf8] sm:$0xff]
          %v2947 = vadd.f32 %v2915, %v2836
          %v2948 = vadd.f32 %v2916, %v2838
          %v2949 = vadd.f32 %v2917, %v2841
          %v2950 = vadd.f32 %v2918, %v2843
          %v2951 = vadd.f32 %v2919, %v2846
          %v2952 = vadd.f32 %v2920, %v2848
          %v2953 = vadd.f32 %v2921, %v2851
          %v2954 = vadd.f32 %v2922, %v2853
          %v2955 = vadd.f32 %v2923, %v2856
          %v2956 = vadd.f32 %v2924, %v2858
          %v2957 = vadd.f32 %v2925, %v2861
          %v2958 = vadd.f32 %v2926, %v2863
          %v2959 = vadd.f32 %v2927, %v2866
          %v2960 = vadd.f32 %v2928, %v2868
          %v2961 = vadd.f32 %v2929, %v2871
          %v2962 = vadd.f32 %v2930, %v2873
          %v2963 = vadd.f32 %v2931, %v2876
          %v2964 = vadd.f32 %v2932, %v2878
          %v2965 = vadd.f32 %v2933, %v2881
          %v2966 = vadd.f32 %v2934, %v2883
          %v2967 = vadd.f32 %v2935, %v2886
          %v2968 = vadd.f32 %v2936, %v2888
          %v2969 = vadd.f32 %v2937, %v2891
          %v2970 = vadd.f32 %v2938, %v2893
          %v2971 = vadd.f32 %v2939, %v2896
          %v2972 = vadd.f32 %v2940, %v2898
          %v2973 = vadd.f32 %v2941, %v2901
          %v2974 = vadd.f32 %v2942, %v2903
          %v2975 = vadd.f32 %v2943, %v2906
          %v2976 = vadd.f32 %v2944, %v2908
          %v2977 = vadd.f32 %v2945, %v2911
          %v2978 = vadd.f32 %v2946, %v2913
          %2979 = vst [vmem:[#allocation3] sm:$0xff] %v2947
          %2980 = vst [vmem:[#allocation3 + $0x8] sm:$0xff] %v2948
          %2981 = vst [vmem:[#allocation3 + $0x10] sm:$0xff] %v2949
          %2982 = vst [vmem:[#allocation3 + $0x18] sm:$0xff] %v2950
          %2983 = vst [vmem:[#allocation3 + $0x20] sm:$0xff] %v2951
          %2984 = vst [vmem:[#allocation3 + $0x28] sm:$0xff] %v2952
          %2985 = vst [vmem:[#allocation3 + $0x30] sm:$0xff] %v2953
          %2986 = vst [vmem:[#allocation3 + $0x38] sm:$0xff] %v2954
          %2987 = vst [vmem:[#allocation3 + $0x40] sm:$0xff] %v2955
          %2988 = vst [vmem:[#allocation3 + $0x48] sm:$0xff] %v2956
          %2989 = vst [vmem:[#allocation3 + $0x50] sm:$0xff] %v2957
          %2990 = vst [vmem:[#allocation3 + $0x58] sm:$0xff] %v2958
          %2991 = vst [vmem:[#allocation3 + $0x60] sm:$0xff] %v2959
          %2992 = vst [vmem:[#allocation3 + $0x68] sm:$0xff] %v2960
          %2993 = vst [vmem:[#allocation3 + $0x70] sm:$0xff] %v2961
          %2994 = vst [vmem:[#allocation3 + $0x78] sm:$0xff] %v2962
          %2995 = vst [vmem:[#allocation3 + $0x80] sm:$0xff] %v2963
          %2996 = vst [vmem:[#allocation3 + $0x88] sm:$0xff] %v2964
          %2997 = vst [vmem:[#allocation3 + $0x90] sm:$0xff] %v2965
          %2998 = vst [vmem:[#allocation3 + $0x98] sm:$0xff] %v2966
          %2999 = vst [vmem:[#allocation3 + $0xa0] sm:$0xff] %v2967
          %3000 = vst [vmem:[#allocation3 + $0xa8] sm:$0xff] %v2968
          %3001 = vst [vmem:[#allocation3 + $0xb0] sm:$0xff] %v2969
          %3002 = vst [vmem:[#allocation3 + $0xb8] sm:$0xff] %v2970
          %3003 = vst [vmem:[#allocation3 + $0xc0] sm:$0xff] %v2971
          %3004 = vst [vmem:[#allocation3 + $0xc8] sm:$0xff] %v2972
          %3005 = vst [vmem:[#allocation3 + $0xd0] sm:$0xff] %v2973
          %3006 = vst [vmem:[#allocation3 + $0xd8] sm:$0xff] %v2974
          %3007 = vst [vmem:[#allocation3 + $0xe0] sm:$0xff] %v2975
          %3008 = vst [vmem:[#allocation3 + $0xe8] sm:$0xff] %v2976
          %3009 = vst [vmem:[#allocation3 + $0xf0] sm:$0xff] %v2977
          %3010 = vst [vmem:[#allocation3 + $0xf8] sm:$0xff] %v2978
          %v3011 = vld [vmem:[#allocation3] sm:$0xff]
          %v3012 = vld [vmem:[#allocation3 + $0x8] sm:$0xff]
          %v3013 = vld [vmem:[#allocation3 + $0x10] sm:$0xff]
          %v3014 = vld [vmem:[#allocation3 + $0x18] sm:$0xff]
          %v3015 = vld [vmem:[#allocation3 + $0x20] sm:$0xff]
          %v3016 = vld [vmem:[#allocation3 + $0x28] sm:$0xff]
          %v3017 = vld [vmem:[#allocation3 + $0x30] sm:$0xff]
          %v3018 = vld [vmem:[#allocation3 + $0x38] sm:$0xff]
          %v3019 = vld [vmem:[#allocation3 + $0x40] sm:$0xff]
          %v3020 = vld [vmem:[#allocation3 + $0x48] sm:$0xff]
          %v3021 = vld [vmem:[#allocation3 + $0x50] sm:$0xff]
          %v3022 = vld [vmem:[#allocation3 + $0x58] sm:$0xff]
          %v3023 = vld [vmem:[#allocation3 + $0x60] sm:$0xff]
          %v3024 = vld [vmem:[#allocation3 + $0x68] sm:$0xff]
          %v3025 = vld [vmem:[#allocation3 + $0x70] sm:$0xff]
          %v3026 = vld [vmem:[#allocation3 + $0x78] sm:$0xff]
          %v3027 = vld [vmem:[#allocation3 + $0x80] sm:$0xff]
          %v3028 = vld [vmem:[#allocation3 + $0x88] sm:$0xff]
          %v3029 = vld [vmem:[#allocation3 + $0x90] sm:$0xff]
          %v3030 = vld [vmem:[#allocation3 + $0x98] sm:$0xff]
          %v3031 = vld [vmem:[#allocation3 + $0xa0] sm:$0xff]
          %v3032 = vld [vmem:[#allocation3 + $0xa8] sm:$0xff]
          %v3033 = vld [vmem:[#allocation3 + $0xb0] sm:$0xff]
          %v3034 = vld [vmem:[#allocation3 + $0xb8] sm:$0xff]
          %v3035 = vld [vmem:[#allocation3 + $0xc0] sm:$0xff]
          %v3036 = vld [vmem:[#allocation3 + $0xc8] sm:$0xff]
          %v3037 = vld [vmem:[#allocation3 + $0xd0] sm:$0xff]
          %v3038 = vld [vmem:[#allocation3 + $0xd8] sm:$0xff]
          %v3039 = vld [vmem:[#allocation3 + $0xe0] sm:$0xff]
          %v3040 = vld [vmem:[#allocation3 + $0xe8] sm:$0xff]
          %v3041 = vld [vmem:[#allocation3 + $0xf0] sm:$0xff]
          %v3042 = vld [vmem:[#allocation3 + $0xf8] sm:$0xff]
          %s3043 = scalar_lea.vmem %s2, %s308
          %v3044 = vld [vmem:[%s3043] sm:$0x1]
          %v3046 = vperm.slane %v3044, 0
          %v3048 = vadd.f32 %v3011, %v3046
          %v3049 = vadd.f32 %v3012, %v3046
          %v3050 = vadd.f32 %v3013, %v3046
          %v3051 = vadd.f32 %v3014, %v3046
          %v3052 = vadd.f32 %v3015, %v3046
          %v3053 = vadd.f32 %v3016, %v3046
          %v3054 = vadd.f32 %v3017, %v3046
          %v3055 = vadd.f32 %v3018, %v3046
          %v3056 = vadd.f32 %v3019, %v3046
          %v3057 = vadd.f32 %v3020, %v3046
          %v3058 = vadd.f32 %v3021, %v3046
          %v3059 = vadd.f32 %v3022, %v3046
          %v3060 = vadd.f32 %v3023, %v3046
          %v3061 = vadd.f32 %v3024, %v3046
          %v3062 = vadd.f32 %v3025, %v3046
          %v3063 = vadd.f32 %v3026, %v3046
          %v3064 = vadd.f32 %v3027, %v3046
          %v3065 = vadd.f32 %v3028, %v3046
          %v3066 = vadd.f32 %v3029, %v3046
          %v3067 = vadd.f32 %v3030, %v3046
          %v3068 = vadd.f32 %v3031, %v3046
          %v3069 = vadd.f32 %v3032, %v3046
          %v3070 = vadd.f32 %v3033, %v3046
          %v3071 = vadd.f32 %v3034, %v3046
          %v3072 = vadd.f32 %v3035, %v3046
          %v3073 = vadd.f32 %v3036, %v3046
          %v3074 = vadd.f32 %v3037, %v3046
          %v3075 = vadd.f32 %v3038, %v3046
          %v3076 = vadd.f32 %v3039, %v3046
          %v3077 = vadd.f32 %v3040, %v3046
          %v3078 = vadd.f32 %v3041, %v3046
          %v3079 = vadd.f32 %v3042, %v3046
          %v3080 = vmul.f32 %v3048, 0.2
          %v3081 = vmul.f32 %v3049, 0.2
          %v3082 = vmul.f32 %v3050, 0.2
          %v3083 = vmul.f32 %v3051, 0.2
          %v3084 = vmul.f32 %v3052, 0.2
          %v3085 = vmul.f32 %v3053, 0.2
          %v3086 = vmul.f32 %v3054, 0.2
          %v3087 = vmul.f32 %v3055, 0.2
          %v3088 = vmul.f32 %v3056, 0.2
          %v3089 = vmul.f32 %v3057, 0.2
          %v3090 = vmul.f32 %v3058, 0.2
          %v3091 = vmul.f32 %v3059, 0.2
          %v3092 = vmul.f32 %v3060, 0.2
          %v3093 = vmul.f32 %v3061, 0.2
          %v3094 = vmul.f32 %v3062, 0.2
          %v3095 = vmul.f32 %v3063, 0.2
          %v3096 = vmul.f32 %v3064, 0.2
          %v3097 = vmul.f32 %v3065, 0.2
          %v3098 = vmul.f32 %v3066, 0.2
          %v3099 = vmul.f32 %v3067, 0.2
          %v3100 = vmul.f32 %v3068, 0.2
          %v3101 = vmul.f32 %v3069, 0.2
          %v3102 = vmul.f32 %v3070, 0.2
          %v3103 = vmul.f32 %v3071, 0.2
          %v3104 = vmul.f32 %v3072, 0.2
          %v3105 = vmul.f32 %v3073, 0.2
          %v3106 = vmul.f32 %v3074, 0.2
          %v3107 = vmul.f32 %v3075, 0.2
          %v3108 = vmul.f32 %v3076, 0.2
          %v3109 = vmul.f32 %v3077, 0.2
          %v3110 = vmul.f32 %v3078, 0.2
          %v3111 = vmul.f32 %v3079, 0.2
          %v3112 = vmax.f32 %v3048, %v3080
          %v3113 = vmax.f32 %v3049, %v3081
          %v3114 = vmax.f32 %v3050, %v3082
          %v3115 = vmax.f32 %v3051, %v3083
          %v3116 = vmax.f32 %v3052, %v3084
          %v3117 = vmax.f32 %v3053, %v3085
          %v3118 = vmax.f32 %v3054, %v3086
          %v3119 = vmax.f32 %v3055, %v3087
          %v3120 = vmax.f32 %v3056, %v3088
          %v3121 = vmax.f32 %v3057, %v3089
          %v3122 = vmax.f32 %v3058, %v3090
          %v3123 = vmax.f32 %v3059, %v3091
          %v3124 = vmax.f32 %v3060, %v3092
          %v3125 = vmax.f32 %v3061, %v3093
          %v3126 = vmax.f32 %v3062, %v3094
          %v3127 = vmax.f32 %v3063, %v3095
          %v3128 = vmax.f32 %v3064, %v3096
          %v3129 = vmax.f32 %v3065, %v3097
          %v3130 = vmax.f32 %v3066, %v3098
          %v3131 = vmax.f32 %v3067, %v3099
          %v3132 = vmax.f32 %v3068, %v3100
          %v3133 = vmax.f32 %v3069, %v3101
          %v3134 = vmax.f32 %v3070, %v3102
          %v3135 = vmax.f32 %v3071, %v3103
          %v3136 = vmax.f32 %v3072, %v3104
          %v3137 = vmax.f32 %v3073, %v3105
          %v3138 = vmax.f32 %v3074, %v3106
          %v3139 = vmax.f32 %v3075, %v3107
          %v3140 = vmax.f32 %v3076, %v3108
          %v3141 = vmax.f32 %v3077, %v3109
          %v3142 = vmax.f32 %v3078, %v3110
          %v3143 = vmax.f32 %v3079, %v3111
          %p3144 = scmp.eq.s32.totalorder %s325, 4
          %s3145 = scalar_select %p3144, 1, 0
          %s3146 = scvt.s32.f32 %s3145
          %v3147 = vstv %s3146
          %v3148 = vmul.f32 %v3147, %v3080
          %v3149 = vmul.f32 %v3147, %v3081
          %v3150 = vmul.f32 %v3147, %v3082
          %v3151 = vmul.f32 %v3147, %v3083
          %v3152 = vmul.f32 %v3147, %v3084
          %v3153 = vmul.f32 %v3147, %v3085
          %v3154 = vmul.f32 %v3147, %v3086
          %v3155 = vmul.f32 %v3147, %v3087
          %v3156 = vmul.f32 %v3147, %v3088
          %v3157 = vmul.f32 %v3147, %v3089
          %v3158 = vmul.f32 %v3147, %v3090
          %v3159 = vmul.f32 %v3147, %v3091
          %v3160 = vmul.f32 %v3147, %v3092
          %v3161 = vmul.f32 %v3147, %v3093
          %v3162 = vmul.f32 %v3147, %v3094
          %v3163 = vmul.f32 %v3147, %v3095
          %v3164 = vmul.f32 %v3147, %v3096
          %v3165 = vmul.f32 %v3147, %v3097
          %v3166 = vmul.f32 %v3147, %v3098
          %v3167 = vmul.f32 %v3147, %v3099
          %v3168 = vmul.f32 %v3147, %v3100
          %v3169 = vmul.f32 %v3147, %v3101
          %v3170 = vmul.f32 %v3147, %v3102
          %v3171 = vmul.f32 %v3147, %v3103
          %v3172 = vmul.f32 %v3147, %v3104
          %v3173 = vmul.f32 %v3147, %v3105
          %v3174 = vmul.f32 %v3147, %v3106
          %v3175 = vmul.f32 %v3147, %v3107
          %v3176 = vmul.f32 %v3147, %v3108
          %v3177 = vmul.f32 %v3147, %v3109
          %v3178 = vmul.f32 %v3147, %v3110
          %v3179 = vmul.f32 %v3147, %v3111
          %s3180 = ssub.f32 1.0, %s3146
          %v3181 = vstv %s3180
          %v3182 = vmul.f32 %v3181, %v3112
          %v3183 = vmul.f32 %v3181, %v3113
          %v3184 = vmul.f32 %v3181, %v3114
          %v3185 = vmul.f32 %v3181, %v3115
          %v3186 = vmul.f32 %v3181, %v3116
          %v3187 = vmul.f32 %v3181, %v3117
          %v3188 = vmul.f32 %v3181, %v3118
          %v3189 = vmul.f32 %v3181, %v3119
          %v3190 = vmul.f32 %v3181, %v3120
          %v3191 = vmul.f32 %v3181, %v3121
          %v3192 = vmul.f32 %v3181, %v3122
          %v3193 = vmul.f32 %v3181, %v3123
          %v3194 = vmul.f32 %v3181, %v3124
          %v3195 = vmul.f32 %v3181, %v3125
          %v3196 = vmul.f32 %v3181, %v3126
          %v3197 = vmul.f32 %v3181, %v3127
          %v3198 = vmul.f32 %v3181, %v3128
          %v3199 = vmul.f32 %v3181, %v3129
          %v3200 = vmul.f32 %v3181, %v3130
          %v3201 = vmul.f32 %v3181, %v3131
          %v3202 = vmul.f32 %v3181, %v3132
          %v3203 = vmul.f32 %v3181, %v3133
          %v3204 = vmul.f32 %v3181, %v3134
          %v3205 = vmul.f32 %v3181, %v3135
          %v3206 = vmul.f32 %v3181, %v3136
          %v3207 = vmul.f32 %v3181, %v3137
          %v3208 = vmul.f32 %v3181, %v3138
          %v3209 = vmul.f32 %v3181, %v3139
          %v3210 = vmul.f32 %v3181, %v3140
          %v3211 = vmul.f32 %v3181, %v3141
          %v3212 = vmul.f32 %v3181, %v3142
          %v3213 = vmul.f32 %v3181, %v3143
          %v3214 = vadd.f32 %v3148, %v3182
          %v3215 = vadd.f32 %v3149, %v3183
          %v3216 = vadd.f32 %v3150, %v3184
          %v3217 = vadd.f32 %v3151, %v3185
          %v3218 = vadd.f32 %v3152, %v3186
          %v3219 = vadd.f32 %v3153, %v3187
          %v3220 = vadd.f32 %v3154, %v3188
          %v3221 = vadd.f32 %v3155, %v3189
          %v3222 = vadd.f32 %v3156, %v3190
          %v3223 = vadd.f32 %v3157, %v3191
          %v3224 = vadd.f32 %v3158, %v3192
          %v3225 = vadd.f32 %v3159, %v3193
          %v3226 = vadd.f32 %v3160, %v3194
          %v3227 = vadd.f32 %v3161, %v3195
          %v3228 = vadd.f32 %v3162, %v3196
          %v3229 = vadd.f32 %v3163, %v3197
          %v3230 = vadd.f32 %v3164, %v3198
          %v3231 = vadd.f32 %v3165, %v3199
          %v3232 = vadd.f32 %v3166, %v3200
          %v3233 = vadd.f32 %v3167, %v3201
          %v3234 = vadd.f32 %v3168, %v3202
          %v3235 = vadd.f32 %v3169, %v3203
          %v3236 = vadd.f32 %v3170, %v3204
          %v3237 = vadd.f32 %v3171, %v3205
          %v3238 = vadd.f32 %v3172, %v3206
          %v3239 = vadd.f32 %v3173, %v3207
          %v3240 = vadd.f32 %v3174, %v3208
          %v3241 = vadd.f32 %v3175, %v3209
          %v3242 = vadd.f32 %v3176, %v3210
          %v3243 = vadd.f32 %v3177, %v3211
          %v3244 = vadd.f32 %v3178, %v3212
          %v3245 = vadd.f32 %v3179, %v3213
          %v3246 = vld [vmem:[%s176 + $0x1] sm:$0xff]
          %v3247 = vld [vmem:[%s176 + $0x9] sm:$0xff]
          %v3248 = vld [vmem:[%s176 + $0x19] sm:$0xff]
          %v3249 = vld [vmem:[%s176 + $0x21] sm:$0xff]
          %v3250 = vld [vmem:[%s176 + $0x31] sm:$0xff]
          %v3251 = vld [vmem:[%s176 + $0x39] sm:$0xff]
          %v3252 = vld [vmem:[%s176 + $0x49] sm:$0xff]
          %v3253 = vld [vmem:[%s176 + $0x51] sm:$0xff]
          %v3254 = vld [vmem:[%s176 + $0x61] sm:$0xff]
          %v3255 = vld [vmem:[%s176 + $0x69] sm:$0xff]
          %v3256 = vld [vmem:[%s176 + $0x79] sm:$0xff]
          %v3257 = vld [vmem:[%s176 + $0x81] sm:$0xff]
          %v3258 = vld [vmem:[%s176 + $0x91] sm:$0xff]
          %v3259 = vld [vmem:[%s176 + $0x99] sm:$0xff]
          %v3260 = vld [vmem:[%s176 + $0xa9] sm:$0xff]
          %v3261 = vld [vmem:[%s176 + $0xb1] sm:$0xff]
          %v3262 = vld [vmem:[%s176 + $0xc1] sm:$0xff]
          %v3263 = vld [vmem:[%s176 + $0xc9] sm:$0xff]
          %v3264 = vld [vmem:[%s176 + $0xd9] sm:$0xff]
          %v3265 = vld [vmem:[%s176 + $0xe1] sm:$0xff]
          %v3266 = vld [vmem:[%s176 + $0xf1] sm:$0xff]
          %v3267 = vld [vmem:[%s176 + $0xf9] sm:$0xff]
          %v3268 = vld [vmem:[%s176 + $0x109] sm:$0xff]
          %v3269 = vld [vmem:[%s176 + $0x111] sm:$0xff]
          %v3270 = vld [vmem:[%s176 + $0x121] sm:$0xff]
          %v3271 = vld [vmem:[%s176 + $0x129] sm:$0xff]
          %v3272 = vld [vmem:[%s176 + $0x139] sm:$0xff]
          %v3273 = vld [vmem:[%s176 + $0x141] sm:$0xff]
          %v3274 = vld [vmem:[%s176 + $0x151] sm:$0xff]
          %v3275 = vld [vmem:[%s176 + $0x159] sm:$0xff]
          %v3276 = vld [vmem:[%s176 + $0x169] sm:$0xff]
          %v3277 = vld [vmem:[%s176 + $0x171] sm:$0xff]
          %v3278 = vadd.f32 %v3246, %v3214
          %v3279 = vadd.f32 %v3247, %v3215
          %v3280 = vadd.f32 %v3248, %v3216
          %v3281 = vadd.f32 %v3249, %v3217
          %v3282 = vadd.f32 %v3250, %v3218
          %v3283 = vadd.f32 %v3251, %v3219
          %v3284 = vadd.f32 %v3252, %v3220
          %v3285 = vadd.f32 %v3253, %v3221
          %v3286 = vadd.f32 %v3254, %v3222
          %v3287 = vadd.f32 %v3255, %v3223
          %v3288 = vadd.f32 %v3256, %v3224
          %v3289 = vadd.f32 %v3257, %v3225
          %v3290 = vadd.f32 %v3258, %v3226
          %v3291 = vadd.f32 %v3259, %v3227
          %v3292 = vadd.f32 %v3260, %v3228
          %v3293 = vadd.f32 %v3261, %v3229
          %v3294 = vadd.f32 %v3262, %v3230
          %v3295 = vadd.f32 %v3263, %v3231
          %v3296 = vadd.f32 %v3264, %v3232
          %v3297 = vadd.f32 %v3265, %v3233
          %v3298 = vadd.f32 %v3266, %v3234
          %v3299 = vadd.f32 %v3267, %v3235
          %v3300 = vadd.f32 %v3268, %v3236
          %v3301 = vadd.f32 %v3269, %v3237
          %v3302 = vadd.f32 %v3270, %v3238
          %v3303 = vadd.f32 %v3271, %v3239
          %v3304 = vadd.f32 %v3272, %v3240
          %v3305 = vadd.f32 %v3273, %v3241
          %v3306 = vadd.f32 %v3274, %v3242
          %v3307 = vadd.f32 %v3275, %v3243
          %v3308 = vadd.f32 %v3276, %v3244
          %v3309 = vadd.f32 %v3277, %v3245
          %3310 = vst [vmem:[%s176 + $0x1] sm:$0xff] %v3278
          %3311 = vst [vmem:[%s176 + $0x9] sm:$0xff] %v3279
          %3312 = vst [vmem:[%s176 + $0x19] sm:$0xff] %v3280
          %3313 = vst [vmem:[%s176 + $0x21] sm:$0xff] %v3281
          %3314 = vst [vmem:[%s176 + $0x31] sm:$0xff] %v3282
          %3315 = vst [vmem:[%s176 + $0x39] sm:$0xff] %v3283
          %3316 = vst [vmem:[%s176 + $0x49] sm:$0xff] %v3284
          %3317 = vst [vmem:[%s176 + $0x51] sm:$0xff] %v3285
          %3318 = vst [vmem:[%s176 + $0x61] sm:$0xff] %v3286
          %3319 = vst [vmem:[%s176 + $0x69] sm:$0xff] %v3287
          %3320 = vst [vmem:[%s176 + $0x79] sm:$0xff] %v3288
          %3321 = vst [vmem:[%s176 + $0x81] sm:$0xff] %v3289
          %3322 = vst [vmem:[%s176 + $0x91] sm:$0xff] %v3290
          %3323 = vst [vmem:[%s176 + $0x99] sm:$0xff] %v3291
          %3324 = vst [vmem:[%s176 + $0xa9] sm:$0xff] %v3292
          %3325 = vst [vmem:[%s176 + $0xb1] sm:$0xff] %v3293
          %3326 = vst [vmem:[%s176 + $0xc1] sm:$0xff] %v3294
          %3327 = vst [vmem:[%s176 + $0xc9] sm:$0xff] %v3295
          %3328 = vst [vmem:[%s176 + $0xd9] sm:$0xff] %v3296
          %3329 = vst [vmem:[%s176 + $0xe1] sm:$0xff] %v3297
          %3330 = vst [vmem:[%s176 + $0xf1] sm:$0xff] %v3298
          %3331 = vst [vmem:[%s176 + $0xf9] sm:$0xff] %v3299
          %3332 = vst [vmem:[%s176 + $0x109] sm:$0xff] %v3300
          %3333 = vst [vmem:[%s176 + $0x111] sm:$0xff] %v3301
          %3334 = vst [vmem:[%s176 + $0x121] sm:$0xff] %v3302
          %3335 = vst [vmem:[%s176 + $0x129] sm:$0xff] %v3303
          %3336 = vst [vmem:[%s176 + $0x139] sm:$0xff] %v3304
          %3337 = vst [vmem:[%s176 + $0x141] sm:$0xff] %v3305
          %3338 = vst [vmem:[%s176 + $0x151] sm:$0xff] %v3306
          %3339 = vst [vmem:[%s176 + $0x159] sm:$0xff] %v3307
          %3340 = vst [vmem:[%s176 + $0x169] sm:$0xff] %v3308
          %3341 = vst [vmem:[%s176 + $0x171] sm:$0xff] %v3309
        $region37: #{rrdb_forward.1} parent=31 // loop_footer
          %s312 = sadd.s32 1, %s308
        $region38: #{rrdb_forward.1} parent=31 // loop_footer_branch
          %307 = sbr.rel target = $region34
        $region39: #{rrdb_forward.1} parent=31 // loop_exit
          _
        %v3342 = vld [vmem:[%s176 + $0x1] sm:$0xff]
        %v3343 = vld [vmem:[%s176 + $0x9] sm:$0xff]
        %v3344 = vld [vmem:[%s176 + $0x19] sm:$0xff]
        %v3345 = vld [vmem:[%s176 + $0x21] sm:$0xff]
        %v3346 = vld [vmem:[%s176 + $0x31] sm:$0xff]
        %v3347 = vld [vmem:[%s176 + $0x39] sm:$0xff]
        %v3348 = vld [vmem:[%s176 + $0x49] sm:$0xff]
        %v3349 = vld [vmem:[%s176 + $0x51] sm:$0xff]
        %v3350 = vld [vmem:[%s176 + $0x61] sm:$0xff]
        %v3351 = vld [vmem:[%s176 + $0x69] sm:$0xff]
        %v3352 = vld [vmem:[%s176 + $0x79] sm:$0xff]
        %v3353 = vld [vmem:[%s176 + $0x81] sm:$0xff]
        %v3354 = vld [vmem:[%s176 + $0x91] sm:$0xff]
        %v3355 = vld [vmem:[%s176 + $0x99] sm:$0xff]
        %v3356 = vld [vmem:[%s176 + $0xa9] sm:$0xff]
        %v3357 = vld [vmem:[%s176 + $0xb1] sm:$0xff]
        %v3358 = vld [vmem:[%s176 + $0xc1] sm:$0xff]
        %v3359 = vld [vmem:[%s176 + $0xc9] sm:$0xff]
        %v3360 = vld [vmem:[%s176 + $0xd9] sm:$0xff]
        %v3361 = vld [vmem:[%s176 + $0xe1] sm:$0xff]
        %v3362 = vld [vmem:[%s176 + $0xf1] sm:$0xff]
        %v3363 = vld [vmem:[%s176 + $0xf9] sm:$0xff]
        %v3364 = vld [vmem:[%s176 + $0x109] sm:$0xff]
        %v3365 = vld [vmem:[%s176 + $0x111] sm:$0xff]
        %v3366 = vld [vmem:[%s176 + $0x121] sm:$0xff]
        %v3367 = vld [vmem:[%s176 + $0x129] sm:$0xff]
        %v3368 = vld [vmem:[%s176 + $0x139] sm:$0xff]
        %v3369 = vld [vmem:[%s176 + $0x141] sm:$0xff]
        %v3370 = vld [vmem:[%s176 + $0x151] sm:$0xff]
        %v3371 = vld [vmem:[%s176 + $0x159] sm:$0xff]
        %v3372 = vld [vmem:[%s176 + $0x169] sm:$0xff]
        %v3373 = vld [vmem:[%s176 + $0x171] sm:$0xff]
        %v3374 = vmul.f32 %v3342, 0.2
        %v3375 = vmul.f32 %v3343, 0.2
        %v3376 = vmul.f32 %v3344, 0.2
        %v3377 = vmul.f32 %v3345, 0.2
        %v3378 = vmul.f32 %v3346, 0.2
        %v3379 = vmul.f32 %v3347, 0.2
        %v3380 = vmul.f32 %v3348, 0.2
        %v3381 = vmul.f32 %v3349, 0.2
        %v3382 = vmul.f32 %v3350, 0.2
        %v3383 = vmul.f32 %v3351, 0.2
        %v3384 = vmul.f32 %v3352, 0.2
        %v3385 = vmul.f32 %v3353, 0.2
        %v3386 = vmul.f32 %v3354, 0.2
        %v3387 = vmul.f32 %v3355, 0.2
        %v3388 = vmul.f32 %v3356, 0.2
        %v3389 = vmul.f32 %v3357, 0.2
        %v3390 = vmul.f32 %v3358, 0.2
        %v3391 = vmul.f32 %v3359, 0.2
        %v3392 = vmul.f32 %v3360, 0.2
        %v3393 = vmul.f32 %v3361, 0.2
        %v3394 = vmul.f32 %v3362, 0.2
        %v3395 = vmul.f32 %v3363, 0.2
        %v3396 = vmul.f32 %v3364, 0.2
        %v3397 = vmul.f32 %v3365, 0.2
        %v3398 = vmul.f32 %v3366, 0.2
        %v3399 = vmul.f32 %v3367, 0.2
        %v3400 = vmul.f32 %v3368, 0.2
        %v3401 = vmul.f32 %v3369, 0.2
        %v3402 = vmul.f32 %v3370, 0.2
        %v3403 = vmul.f32 %v3371, 0.2
        %v3404 = vmul.f32 %v3372, 0.2
        %v3405 = vmul.f32 %v3373, 0.2
        %v3406 = vld [vmem:[%s168] sm:$0xff]
        %v3407 = vld [vmem:[%s168 + $0x8] sm:$0xff]
        %v3408 = vld [vmem:[%s168 + $0x10] sm:$0xff]
        %v3409 = vld [vmem:[%s168 + $0x18] sm:$0xff]
        %v3410 = vld [vmem:[%s168 + $0x20] sm:$0xff]
        %v3411 = vld [vmem:[%s168 + $0x28] sm:$0xff]
        %v3412 = vld [vmem:[%s168 + $0x30] sm:$0xff]
        %v3413 = vld [vmem:[%s168 + $0x38] sm:$0xff]
        %v3414 = vld [vmem:[%s168 + $0x40] sm:$0xff]
        %v3415 = vld [vmem:[%s168 + $0x48] sm:$0xff]
        %v3416 = vld [vmem:[%s168 + $0x50] sm:$0xff]
        %v3417 = vld [vmem:[%s168 + $0x58] sm:$0xff]
        %v3418 = vld [vmem:[%s168 + $0x60] sm:$0xff]
        %v3419 = vld [vmem:[%s168 + $0x68] sm:$0xff]
        %v3420 = vld [vmem:[%s168 + $0x70] sm:$0xff]
        %v3421 = vld [vmem:[%s168 + $0x78] sm:$0xff]
        %v3422 = vld [vmem:[%s168 + $0x80] sm:$0xff]
        %v3423 = vld [vmem:[%s168 + $0x88] sm:$0xff]
        %v3424 = vld [vmem:[%s168 + $0x90] sm:$0xff]
        %v3425 = vld [vmem:[%s168 + $0x98] sm:$0xff]
        %v3426 = vld [vmem:[%s168 + $0xa0] sm:$0xff]
        %v3427 = vld [vmem:[%s168 + $0xa8] sm:$0xff]
        %v3428 = vld [vmem:[%s168 + $0xb0] sm:$0xff]
        %v3429 = vld [vmem:[%s168 + $0xb8] sm:$0xff]
        %v3430 = vld [vmem:[%s168 + $0xc0] sm:$0xff]
        %v3431 = vld [vmem:[%s168 + $0xc8] sm:$0xff]
        %v3432 = vld [vmem:[%s168 + $0xd0] sm:$0xff]
        %v3433 = vld [vmem:[%s168 + $0xd8] sm:$0xff]
        %v3434 = vld [vmem:[%s168 + $0xe0] sm:$0xff]
        %v3435 = vld [vmem:[%s168 + $0xe8] sm:$0xff]
        %v3436 = vld [vmem:[%s168 + $0xf0] sm:$0xff]
        %v3437 = vld [vmem:[%s168 + $0xf8] sm:$0xff]
        %v3438 = vadd.f32 %v3374, %v3406
        %v3439 = vadd.f32 %v3375, %v3407
        %v3440 = vadd.f32 %v3376, %v3408
        %v3441 = vadd.f32 %v3377, %v3409
        %v3442 = vadd.f32 %v3378, %v3410
        %v3443 = vadd.f32 %v3379, %v3411
        %v3444 = vadd.f32 %v3380, %v3412
        %v3445 = vadd.f32 %v3381, %v3413
        %v3446 = vadd.f32 %v3382, %v3414
        %v3447 = vadd.f32 %v3383, %v3415
        %v3448 = vadd.f32 %v3384, %v3416
        %v3449 = vadd.f32 %v3385, %v3417
        %v3450 = vadd.f32 %v3386, %v3418
        %v3451 = vadd.f32 %v3387, %v3419
        %v3452 = vadd.f32 %v3388, %v3420
        %v3453 = vadd.f32 %v3389, %v3421
        %v3454 = vadd.f32 %v3390, %v3422
        %v3455 = vadd.f32 %v3391, %v3423
        %v3456 = vadd.f32 %v3392, %v3424
        %v3457 = vadd.f32 %v3393, %v3425
        %v3458 = vadd.f32 %v3394, %v3426
        %v3459 = vadd.f32 %v3395, %v3427
        %v3460 = vadd.f32 %v3396, %v3428
        %v3461 = vadd.f32 %v3397, %v3429
        %v3462 = vadd.f32 %v3398, %v3430
        %v3463 = vadd.f32 %v3399, %v3431
        %v3464 = vadd.f32 %v3400, %v3432
        %v3465 = vadd.f32 %v3401, %v3433
        %v3466 = vadd.f32 %v3402, %v3434
        %v3467 = vadd.f32 %v3403, %v3435
        %v3468 = vadd.f32 %v3404, %v3436
        %v3469 = vadd.f32 %v3405, %v3437
        %3470 = vst.msk [vmem:[%s163] sm:$0xff] %vm241, %v3438
        %3471 = vst.msk [vmem:[%s163 + $0x8] sm:$0xff] %vm241, %v3439
        %3472 = vst.msk [vmem:[%s163 + $0x10] sm:$0xff] %vm241, %v3440
        %3473 = vst.msk [vmem:[%s163 + $0x18] sm:$0xff] %vm241, %v3441
        %3474 = vst.msk [vmem:[%s163 + $0x20] sm:$0xff] %vm241, %v3442
        %3475 = vst.msk [vmem:[%s163 + $0x28] sm:$0xff] %vm241, %v3443
        %3476 = vst.msk [vmem:[%s163 + $0x30] sm:$0xff] %vm241, %v3444
        %3477 = vst.msk [vmem:[%s163 + $0x38] sm:$0xff] %vm241, %v3445
        %3478 = vst.msk [vmem:[%s163 + $0x40] sm:$0xff] %vm241, %v3446
        %3479 = vst.msk [vmem:[%s163 + $0x48] sm:$0xff] %vm241, %v3447
        %3480 = vst.msk [vmem:[%s163 + $0x50] sm:$0xff] %vm241, %v3448
        %3481 = vst.msk [vmem:[%s163 + $0x58] sm:$0xff] %vm241, %v3449
        %3482 = vst.msk [vmem:[%s163 + $0x60] sm:$0xff] %vm241, %v3450
        %3483 = vst.msk [vmem:[%s163 + $0x68] sm:$0xff] %vm241, %v3451
        %3484 = vst.msk [vmem:[%s163 + $0x70] sm:$0xff] %vm241, %v3452
        %3485 = vst.msk [vmem:[%s163 + $0x78] sm:$0xff] %vm241, %v3453
        %3486 = vst.msk [vmem:[%s163 + $0x80] sm:$0xff] %vm241, %v3454
        %3487 = vst.msk [vmem:[%s163 + $0x88] sm:$0xff] %vm241, %v3455
        %3488 = vst.msk [vmem:[%s163 + $0x90] sm:$0xff] %vm241, %v3456
        %3489 = vst.msk [vmem:[%s163 + $0x98] sm:$0xff] %vm241, %v3457
        %3490 = vst.msk [vmem:[%s163 + $0xa0] sm:$0xff] %vm241, %v3458
        %3491 = vst.msk [vmem:[%s163 + $0xa8] sm:$0xff] %vm241, %v3459
        %3492 = vst.msk [vmem:[%s163 + $0xb0] sm:$0xff] %vm241, %v3460
        %3493 = vst.msk [vmem:[%s163 + $0xb8] sm:$0xff] %vm241, %v3461
        %3494 = vst.msk [vmem:[%s163 + $0xc0] sm:$0xff] %vm241, %v3462
        %3495 = vst.msk [vmem:[%s163 + $0xc8] sm:$0xff] %vm241, %v3463
        %3496 = vst.msk [vmem:[%s163 + $0xd0] sm:$0xff] %vm241, %v3464
        %3497 = vst.msk [vmem:[%s163 + $0xd8] sm:$0xff] %vm241, %v3465
        %3498 = vst.msk [vmem:[%s163 + $0xe0] sm:$0xff] %vm241, %v3466
        %3499 = vst.msk [vmem:[%s163 + $0xe8] sm:$0xff] %vm241, %v3467
        %3500 = vst.msk [vmem:[%s163 + $0xf0] sm:$0xff] %vm241, %v3468
        %3501 = vst.msk [vmem:[%s163 + $0xf8] sm:$0xff] %vm241, %v3469
        %s3502 = sand.u32 %s93, 1
        %s3503 = scalar_lea.sflag [#allocation5], %s3502
        %s3504 = sand.u32 %s93, 1
        %s3505 = smul.addr %s3504, 256
        %s3506 = scalar_lea.vmem [#allocation4], %s3505
        // Predicated region
        $region44: #{rrdb_forward.1} parent=31 // pred_check
          %p3507 = pneg %p103
        $region45: #{rrdb_forward.1} parent=31 // pred_check_branch
          %3509 = sbr.rel (%p3507) target = $region47
        $region46: #{rrdb_forward.1} parent=31 // pred_region
          %3511 = vsyncadd %s3503, 0
          %s3512 = smul.addr %s17, 32
          %s3513 = smul.addr %s3512, 8
          %s3514 = scalar_lea.hbm %s3, %s3513
          %s3515 = sshll.u32 %s3506, 4
          %s3516 = int_to_ptr.vmem [resolvable:$true] %s3515
          %s3517 = sshll.u32 %s3514, 4
          %s3518 = int_to_ptr.hbm [resolvable:$true] %s3517
          %3523 = dma.vmem_to_hbm [thread:$0]  %s3516, 4096, %s3518, %s3503, 128, 128, 8
        $region47: #{rrdb_forward.1} parent=31 // pred_fallthru
          _
      $region32: #{rrdb_forward.1} parent=5 // pred_fallthru
        _
      %p3524 = scmp.le.s32.totalorder 2, %s12
      // Predicated region
      $region48: #{rrdb_forward.1} parent=5 // pred_check
        %p3525 = pneg %p3524
      $region49: #{rrdb_forward.1} parent=5 // pred_check_branch
        %3527 = sbr.rel (%p3525) target = $region51
      $region50: #{rrdb_forward.1} parent=5 // pred_region
        %s3528 = ssub.s32 %s12, 2
        // Predicated region
        $region52: #{rrdb_forward.1} parent=50 // pred_check
          %p3529 = pneg %p109
        $region53: #{rrdb_forward.1} parent=50 // pred_check_branch
          %3531 = sbr.rel (%p3529) target = $region55
        $region54: #{rrdb_forward.1} parent=50 // pred_region
          %s3532 = sand.u32 %s94, 1
          %s3533 = scalar_lea.sflag [#allocation5], %s3532
          %s3534 = sand.u32 %s94, 1
          %s3535 = smul.addr %s3534, 256
          %s3536 = scalar_lea.vmem [#allocation4], %s3535
          %3538 = dma.done %s3533, 4096
        $region55: #{rrdb_forward.1} parent=50 // pred_fallthru
          _
      $region51: #{rrdb_forward.1} parent=5 // pred_fallthru
        _
    $region6: #{rrdb_forward.1} parent=1 // loop_footer
      %s16 = sadd.s32 1, %s12
    $region7: #{rrdb_forward.1} parent=1 // loop_footer_branch
      %11 = sbr.rel target = $region3
    $region8: #{rrdb_forward.1} parent=1 // loop_exit
      _
    %3539 = vsyncpa [#allocation5], 1
    %s3540 = scalar_lea.sflag [#allocation5], 1
    %3541 = vsyncpa %s3540, 1

</llo_original>
